<compile_context>
chip_gen: v7x
topology: tpu7x:2x2x1
jax: 0.10.0
libtpu: 0.0.40
codegen_flags: <defaults>
</compile_context>

<pallas_src>
import math
import functools

import jax
import jax.numpy as jnp
from jax.experimental import pallas as pl
from jax.experimental.pallas import tpu as pltpu


# ---------------------------------------------------------------------------
# Small BERT-ish config (shapes scaled down from prot_bert_bfd)
# ---------------------------------------------------------------------------
VOCAB_SIZE = 30
MAX_POS = 40
TYPE_VOCAB = 2
HIDDEN = 32
NUM_HEADS = 4
HEAD_DIM = HIDDEN // NUM_HEADS
INTERMEDIATE = 64
NUM_LAYERS = 2
NUM_CLASSES = 5
LN_EPS = 1e-12

BATCH = 2
SEQ = 8

C_PAD = 128          # lane-dense classifier width (real classes = NUM_CLASSES)
NEG_PAD = -1e30      # bias for padded classes -> exp() underflows to exactly 0

_VMEM_SPEC = pl.BlockSpec(memory_space=pltpu.MemorySpace.VMEM)


# ---------------------------------------------------------------------------
# Fused forward kernel
# ---------------------------------------------------------------------------
def _gelu(x):
    # tanh approximation of GELU (BERT uses erf-GELU; tanh keeps the math on
    # the EUP path -- ~1e-3 relative deviation, weights are synthetic anyway).
    c = math.sqrt(2.0 / math.pi)
    return 0.5 * x * (1.0 + jnp.tanh(c * (x + 0.044715 * x * x * x)))


def _fused_forward_kernel(*refs, compute_loss):
    if compute_loss:
        (emb_ref, mask_ref, emb_g_ref, emb_b_ref,
         wqkv_ref, bqkv_ref, wo_ref, bo_ref, ln1_g_ref, ln1_b_ref,
         w1_ref, b1_ref, w2_ref, b2_ref, ln2_g_ref, ln2_b_ref,
         cls_w_ref, cls_b_ref, labels_ref,
         probs_ref, loss_ref) = refs
    else:
        (emb_ref, mask_ref, emb_g_ref, emb_b_ref,
         wqkv_ref, bqkv_ref, wo_ref, bo_ref, ln1_g_ref, ln1_b_ref,
         w1_ref, b1_ref, w2_ref, b2_ref, ln2_g_ref, ln2_b_ref,
         cls_w_ref, cls_b_ref,
         probs_ref) = refs
        labels_ref = None
        loss_ref = None

    f32 = jnp.float32
    scale = 1.0 / math.sqrt(HEAD_DIM)

    def layernorm(y, g, b):
        mu = jnp.mean(y, axis=-1, keepdims=True)
        var = jnp.mean(jnp.square(y - mu), axis=-1, keepdims=True)
        return (y - mu) * jax.lax.rsqrt(var + LN_EPS) * g + b

    # additive attention mask built once in-kernel from the raw (B, S) mask
    mask_add = (1.0 - mask_ref[...].astype(f32)) * -1e9          # (B, S)

    # embedding LayerNorm (no fake zero residual)
    x = layernorm(emb_ref[...].astype(f32), emb_g_ref[...], emb_b_ref[...])

    # ----------------------- transformer encoder layers -------------------
    for l in range(NUM_LAYERS):
        # fused QKV projection: one (H, 3H) matmul
        qkv = jnp.dot(x, wqkv_ref[l], preferred_element_type=f32) + bqkv_ref[l]
        q = qkv[:, 0 * HIDDEN:1 * HIDDEN]
        k = qkv[:, 1 * HIDDEN:2 * HIDDEN]
        v = qkv[:, 2 * HIDDEN:3 * HIDDEN]

        # per-(batch, head) attention with static slices; results land directly
        # in the merged-head (B*S, H) layout -> no transposes at all.
        batch_ctx = []
        for b in range(BATCH):
            rows = slice(b * SEQ, (b + 1) * SEQ)
            mb = mask_add[b:b + 1, :]                             # (1, S)
            head_ctx = []
            for hh in range(NUM_HEADS):
                cols = slice(hh * HEAD_DIM, (hh + 1) * HEAD_DIM)
                qb = q[rows, cols]                                # (S, Dh)
                kb = k[rows, cols]
                vb = v[rows, cols]
                scores = jnp.einsum("qd,kd->qk", qb, kb,
                                    preferred_element_type=f32) * scale + mb
                m = jnp.max(scores, axis=-1, keepdims=True)
                p = jnp.exp(scores - m)
                p = p * pl.reciprocal(jnp.sum(p, axis=-1, keepdims=True),
                                      approx=True)
                head_ctx.append(jnp.dot(p, vb, preferred_element_type=f32))
            batch_ctx.append(jnp.concatenate(head_ctx, axis=1))   # (S, H)
        ctx = jnp.concatenate(batch_ctx, axis=0)                  # (B*S, H)

        attn_out = jnp.dot(ctx, wo_ref[l], preferred_element_type=f32) + bo_ref[l]
        x = layernorm(attn_out + x, ln1_g_ref[l], ln1_b_ref[l])

        ffn = _gelu(jnp.dot(x, w1_ref[l], preferred_element_type=f32) + b1_ref[l])
        ffn = jnp.dot(ffn, w2_ref[l], preferred_element_type=f32) + b2_ref[l]
        x = layernorm(ffn + x, ln2_g_ref[l], ln2_b_ref[l])

    # ------------- CLS pooling + classifier + softmax (lane-dense) --------
    cls = jnp.concatenate([x[b * SEQ:b * SEQ + 1, :] for b in range(BATCH)],
                          axis=0)                                 # (B, H)
    logits = jnp.dot(cls, cls_w_ref[...], preferred_element_type=f32) + cls_b_ref[...]
    m = jnp.max(logits, axis=-1, keepdims=True)
    e = jnp.exp(logits - m)
    denom = jnp.sum(e, axis=-1, keepdims=True)
    probs_ref[...] = (e / denom).astype(probs_ref.dtype)          # (B, 128)

    if compute_loss:
        # CrossEntropyLoss = mean(logsumexp(logits) - logits[label])
        lse = m + jnp.log(denom)                                          # (B, 1)
        classes = jax.lax.broadcasted_iota(jnp.int32, (BATCH, C_PAD), 1)
        onehot = (classes == labels_ref[...]).astype(f32)                 # (B, 128)
        picked = jnp.sum(logits * onehot, axis=-1, keepdims=True)         # (B, 1)
        loss = jnp.sum(lse - picked, axis=0, keepdims=True) * (1.0 / BATCH)
        loss_ref[...] = jnp.broadcast_to(loss, (1, C_PAD)).astype(loss_ref.dtype)


def _fused_forward(emb, attention_mask, params, labels=None):
    compute_loss = labels is not None
    inputs = [
        emb, attention_mask,
        params["emb_ln_g"], params["emb_ln_b"],
        params["wqkv"], params["bqkv"], params["wo"], params["bo"],
        params["ln1_g"], params["ln1_b"],
        params["w1"], params["b1"], params["w2"], params["b2"],
        params["ln2_g"], params["ln2_b"],
        params["cls_w"], params["cls_b"],
    ]
    if compute_loss:
        inputs.append(labels.reshape(BATCH, 1).astype(jnp.int32))
        out_shape = (jax.ShapeDtypeStruct((BATCH, C_PAD), jnp.float32),
                     jax.ShapeDtypeStruct((1, C_PAD), jnp.float32))
        out_specs = (_VMEM_SPEC, _VMEM_SPEC)
    else:
        out_shape = jax.ShapeDtypeStruct((BATCH, C_PAD), jnp.float32)
        out_specs = _VMEM_SPEC

    return pl.pallas_call(
        functools.partial(_fused_forward_kernel, compute_loss=compute_loss),
        out_shape=out_shape,
        in_specs=[_VMEM_SPEC] * len(inputs),
        out_specs=out_specs,
    )(*inputs)


# ---------------------------------------------------------------------------
# Parameter initialization (deterministic, synthetic, kernel-friendly layout)
# ---------------------------------------------------------------------------
def init_params(key):
    def nrm(k, shape):
        return jax.random.normal(k, shape, dtype=jnp.float32) * 0.02

    keys = iter(jax.random.split(key, 4 + 4 * NUM_LAYERS))
    p = {
        "word_emb": nrm(next(keys), (VOCAB_SIZE, HIDDEN)),
        "pos_emb": nrm(next(keys), (MAX_POS, HIDDEN)),
        "type_emb": nrm(next(keys), (TYPE_VOCAB, HIDDEN)),
        "emb_ln_g": jnp.ones((1, HIDDEN), jnp.float32),
        "emb_ln_b": jnp.zeros((1, HIDDEN), jnp.float32),
    }

    wqkv, wo, w1, w2 = [], [], [], []
    for _ in range(NUM_LAYERS):
        wqkv.append(nrm(next(keys), (HIDDEN, 3 * HIDDEN)))   # fused q|k|v weight
        wo.append(nrm(next(keys), (HIDDEN, HIDDEN)))
        w1.append(nrm(next(keys), (HIDDEN, INTERMEDIATE)))
        w2.append(nrm(next(keys), (INTERMEDIATE, HIDDEN)))
    p.update({
        "wqkv": jnp.stack(wqkv),
        "bqkv": jnp.zeros((NUM_LAYERS, 1, 3 * HIDDEN), jnp.float32),
        "wo": jnp.stack(wo),
        "bo": jnp.zeros((NUM_LAYERS, 1, HIDDEN), jnp.float32),
        "ln1_g": jnp.ones((NUM_LAYERS, 1, HIDDEN), jnp.float32),
        "ln1_b": jnp.zeros((NUM_LAYERS, 1, HIDDEN), jnp.float32),
        "w1": jnp.stack(w1),
        "b1": jnp.zeros((NUM_LAYERS, 1, INTERMEDIATE), jnp.float32),
        "w2": jnp.stack(w2),
        "b2": jnp.zeros((NUM_LAYERS, 1, HIDDEN), jnp.float32),
        "ln2_g": jnp.ones((NUM_LAYERS, 1, HIDDEN), jnp.float32),
        "ln2_b": jnp.zeros((NUM_LAYERS, 1, HIDDEN), jnp.float32),
    })

    # classifier padded to 128 lanes: padded columns get weight 0 / bias -1e30
    # so their softmax probability is exactly 0 and logsumexp is unaffected.
    cls_w = nrm(next(keys), (HIDDEN, NUM_CLASSES))
    p["cls_w"] = jnp.concatenate(
        [cls_w, jnp.zeros((HIDDEN, C_PAD - NUM_CLASSES), jnp.float32)], axis=1)
    p["cls_b"] = jnp.concatenate(
        [jnp.zeros((1, NUM_CLASSES), jnp.float32),
         jnp.full((1, C_PAD - NUM_CLASSES), NEG_PAD, jnp.float32)], axis=1)
    return p


# ---------------------------------------------------------------------------
# Forward pass (mirrors SubstrateClassifier.forward)
# ---------------------------------------------------------------------------
def substrate_classifier_forward(params, input_ids, attention_mask, labels=None):
    b, s = input_ids.shape

    # Embedding lookup is a data-dependent gather -> kept as plain-JAX glue
    # feeding the fused kernel (everything else runs inside one pallas_call).
    pos_ids = jnp.arange(s)
    emb = (jnp.take(params["word_emb"], input_ids, axis=0)
           + params["pos_emb"][pos_ids][None, :, :]
           + params["type_emb"][0][None, None, :])
    emb = emb.reshape(b * s, HIDDEN).astype(jnp.float32)

    if labels is None:
        probs_padded = _fused_forward(emb, attention_mask, params)
        return probs_padded[:, :NUM_CLASSES]

    _, loss_padded = _fused_forward(emb, attention_mask, params, labels)
    return loss_padded[0, 0]


substrate_classifier_forward = jax.jit(substrate_classifier_forward)


# ---------------------------------------------------------------------------
if __name__ == "__main__":
    key = jax.random.PRNGKey(0)
    k_params, k_ids, k_labels = jax.random.split(key, 3)

    params = init_params(k_params)
    input_ids = jax.random.randint(k_ids, (BATCH, SEQ), 0, VOCAB_SIZE, dtype=jnp.int32)
    attention_mask = jnp.ones((BATCH, SEQ), dtype=jnp.int32).at[1, SEQ - 2:].set(0)
    labels = jax.random.randint(k_labels, (BATCH,), 0, NUM_CLASSES, dtype=jnp.int32)

    # inference path (labels=None) -> softmax class probabilities
    probs = substrate_classifier_forward(params, input_ids, attention_mask)
    probs = jax.block_until_ready(probs)
    assert probs.shape == (BATCH, NUM_CLASSES)
    assert bool(jnp.all(jnp.isfinite(probs)))
    assert bool(jnp.allclose(jnp.sum(probs, axis=-1), 1.0, atol=1e-5))

    # training path (labels given) -> scalar cross-entropy loss
    loss = substrate_classifier_forward(params, input_ids, attention_mask, labels)
    loss = jax.block_until_ready(loss)
    assert loss.shape == ()
    assert bool(jnp.isfinite(loss))

    print("KERNEL_OK")
</pallas_src>

<mosaic_0001>
module attributes {stable_mosaic.version = 11 : i64} {
  func.func @_fused_forward_kernel(%arg0: memref<16x32xf32, #tpu.memory_space<vmem>>, %arg1: memref<2x8xi32, #tpu.memory_space<vmem>>, %arg2: memref<1x32xf32, #tpu.memory_space<vmem>>, %arg3: memref<1x32xf32, #tpu.memory_space<vmem>>, %arg4: memref<2x32x96xf32, #tpu.memory_space<vmem>>, %arg5: memref<2x1x96xf32, #tpu.memory_space<vmem>>, %arg6: memref<2x32x32xf32, #tpu.memory_space<vmem>>, %arg7: memref<2x1x32xf32, #tpu.memory_space<vmem>>, %arg8: memref<2x1x32xf32, #tpu.memory_space<vmem>>, %arg9: memref<2x1x32xf32, #tpu.memory_space<vmem>>, %arg10: memref<2x32x64xf32, #tpu.memory_space<vmem>>, %arg11: memref<2x1x64xf32, #tpu.memory_space<vmem>>, %arg12: memref<2x64x32xf32, #tpu.memory_space<vmem>>, %arg13: memref<2x1x32xf32, #tpu.memory_space<vmem>>, %arg14: memref<2x1x32xf32, #tpu.memory_space<vmem>>, %arg15: memref<2x1x32xf32, #tpu.memory_space<vmem>>, %arg16: memref<32x128xf32, #tpu.memory_space<vmem>>, %arg17: memref<1x128xf32, #tpu.memory_space<vmem>>, %arg18: memref<2x128xf32, #tpu.memory_space<vmem>>) attributes {dimension_semantics = [], scalar_prefetch = 0 : i64, scratch_operands = 0 : i64, tpu.core_type = #tpu.core_type<tc>} {
    %c0 = arith.constant 0 : index
    %c0_0 = arith.constant 0 : index
    %0 = vector.load %arg1[%c0, %c0_0] : memref<2x8xi32, #tpu.memory_space<vmem>>, vector<2x8xi32>
    %1 = arith.sitofp %0 : vector<2x8xi32> to vector<2x8xf32>
    %cst = arith.constant 1.000000e+00 : f32
    %2 = vector.broadcast %cst : f32 to vector<2x8xf32>
    %3 = arith.subf %2, %1 : vector<2x8xf32>
    %cst_1 = arith.constant -1.000000e+09 : f32
    %4 = vector.broadcast %cst_1 : f32 to vector<2x8xf32>
    %5 = arith.mulf %3, %4 : vector<2x8xf32>
    %c0_2 = arith.constant 0 : index
    %c0_3 = arith.constant 0 : index
    %6 = vector.load %arg0[%c0_2, %c0_3] : memref<16x32xf32, #tpu.memory_space<vmem>>, vector<16x32xf32>
    %c0_4 = arith.constant 0 : index
    %c0_5 = arith.constant 0 : index
    %7 = vector.load %arg2[%c0_4, %c0_5] : memref<1x32xf32, #tpu.memory_space<vmem>>, vector<1x32xf32>
    %c0_6 = arith.constant 0 : index
    %c0_7 = arith.constant 0 : index
    %8 = vector.load %arg3[%c0_6, %c0_7] : memref<1x32xf32, #tpu.memory_space<vmem>>, vector<1x32xf32>
    %cst_8 = arith.constant dense<0.000000e+00> : vector<16xf32>
    %9 = vector.multi_reduction <add>, %6, %cst_8 [1] : vector<16x32xf32> to vector<16xf32>
    %10 = vector.shape_cast %9 : vector<16xf32> to vector<16x1xf32>
    %cst_9 = arith.constant 3.200000e+01 : f32
    %11 = vector.broadcast %cst_9 : f32 to vector<16x1xf32>
    %12 = arith.divf %10, %11 : vector<16x1xf32>
    %13 = vector.broadcast %12 : vector<16x1xf32> to vector<16x32xf32>
    %14 = arith.subf %6, %13 : vector<16x32xf32>
    %15 = arith.mulf %14, %14 : vector<16x32xf32>
    %cst_10 = arith.constant dense<0.000000e+00> : vector<16xf32>
    %16 = vector.multi_reduction <add>, %15, %cst_10 [1] : vector<16x32xf32> to vector<16xf32>
    %17 = vector.shape_cast %16 : vector<16xf32> to vector<16x1xf32>
    %cst_11 = arith.constant 3.200000e+01 : f32
    %18 = vector.broadcast %cst_11 : f32 to vector<16x1xf32>
    %19 = arith.divf %17, %18 : vector<16x1xf32>
    %20 = vector.broadcast %12 : vector<16x1xf32> to vector<16x32xf32>
    %21 = arith.subf %6, %20 : vector<16x32xf32>
    %cst_12 = arith.constant 9.99999996E-13 : f32
    %22 = vector.broadcast %cst_12 : f32 to vector<16x1xf32>
    %23 = arith.addf %19, %22 : vector<16x1xf32>
    %24 = math.rsqrt %23 : vector<16x1xf32>
    %25 = vector.broadcast %24 : vector<16x1xf32> to vector<16x32xf32>
    %26 = arith.mulf %21, %25 : vector<16x32xf32>
    %27 = vector.broadcast %7 : vector<1x32xf32> to vector<16x32xf32>
    %28 = arith.mulf %26, %27 : vector<16x32xf32>
    %29 = vector.broadcast %8 : vector<1x32xf32> to vector<16x32xf32>
    %30 = arith.addf %28, %29 : vector<16x32xf32>
    %c0_13 = arith.constant 0 : index
    %c0_14 = arith.constant 0 : index
    %c0_15 = arith.constant 0 : index
    %31 = vector.load %arg4[%c0_13, %c0_14, %c0_15] : memref<2x32x96xf32, #tpu.memory_space<vmem>>, vector<1x32x96xf32>
    %32 = vector.shape_cast %31 : vector<1x32x96xf32> to vector<32x96xf32>
    %cst_16 = arith.constant dense<0.000000e+00> : vector<16x96xf32>
    %33 = tpu.matmul %30, %32, %cst_16 {dimension_numbers = #tpu.dot_dimension_numbers<[1], [0], [0], [1], [0, 0, 1, 1], [], []>} : vector<16x32xf32>, vector<32x96xf32>, vector<16x96xf32> -> vector<16x96xf32>
    %c0_17 = arith.constant 0 : index
    %c0_18 = arith.constant 0 : index
    %c0_19 = arith.constant 0 : index
    %34 = vector.load %arg5[%c0_17, %c0_18, %c0_19] : memref<2x1x96xf32, #tpu.memory_space<vmem>>, vector<1x1x96xf32>
    %35 = vector.shape_cast %34 : vector<1x1x96xf32> to vector<1x96xf32>
    %36 = vector.broadcast %35 : vector<1x96xf32> to vector<16x96xf32>
    %37 = arith.addf %33, %36 : vector<16x96xf32>
    %38 = vector.extract_strided_slice %37 {offsets = [0, 0], sizes = [16, 32], strides = [1, 1]} : vector<16x96xf32> to vector<16x32xf32>
    %39 = vector.extract_strided_slice %37 {offsets = [0, 32], sizes = [16, 32], strides = [1, 1]} : vector<16x96xf32> to vector<16x32xf32>
    %40 = vector.extract_strided_slice %37 {offsets = [0, 64], sizes = [16, 32], strides = [1, 1]} : vector<16x96xf32> to vector<16x32xf32>
    %41 = vector.extract_strided_slice %5 {offsets = [0, 0], sizes = [1, 8], strides = [1, 1]} : vector<2x8xf32> to vector<1x8xf32>
    %42 = vector.extract_strided_slice %38 {offsets = [0, 0], sizes = [8, 8], strides = [1, 1]} : vector<16x32xf32> to vector<8x8xf32>
    %43 = vector.extract_strided_slice %39 {offsets = [0, 0], sizes = [8, 8], strides = [1, 1]} : vector<16x32xf32> to vector<8x8xf32>
    %44 = vector.extract_strided_slice %40 {offsets = [0, 0], sizes = [8, 8], strides = [1, 1]} : vector<16x32xf32> to vector<8x8xf32>
    "tpu.trace_start"() <{level = 10 : i32, message = "qd,kd->qk"}> : () -> ()
    %cst_20 = arith.constant dense<0.000000e+00> : vector<8x8xf32>
    %45 = tpu.matmul %42, %43, %cst_20 {dimension_numbers = #tpu.dot_dimension_numbers<[1], [1], [0], [0], [0, 0, 1, 0], [], []>} : vector<8x8xf32>, vector<8x8xf32>, vector<8x8xf32> -> vector<8x8xf32>
    "tpu.trace_stop"() : () -> ()
    %cst_21 = arith.constant 0.353553385 : f32
    %46 = vector.broadcast %cst_21 : f32 to vector<8x8xf32>
    %47 = arith.mulf %45, %46 : vector<8x8xf32>
    %48 = vector.broadcast %41 : vector<1x8xf32> to vector<8x8xf32>
    %49 = arith.addf %47, %48 : vector<8x8xf32>
    %cst_22 = arith.constant dense<0xFF800000> : vector<8xf32>
    %50 = vector.multi_reduction <maximumf>, %49, %cst_22 [1] : vector<8x8xf32> to vector<8xf32>
    %51 = vector.shape_cast %50 : vector<8xf32> to vector<8x1xf32>
    %52 = vector.broadcast %51 : vector<8x1xf32> to vector<8x8xf32>
    %53 = arith.subf %49, %52 : vector<8x8xf32>
    %54 = math.exp %53 : vector<8x8xf32>
    %cst_23 = arith.constant dense<0.000000e+00> : vector<8xf32>
    %55 = vector.multi_reduction <add>, %54, %cst_23 [1] : vector<8x8xf32> to vector<8xf32>
    %56 = vector.shape_cast %55 : vector<8xf32> to vector<8x1xf32>
    %57 = tpu.reciprocal %56 {approx = true} : vector<8x1xf32> -> vector<8x1xf32>
    %58 = vector.broadcast %57 : vector<8x1xf32> to vector<8x8xf32>
    %59 = arith.mulf %54, %58 : vector<8x8xf32>
    %cst_24 = arith.constant dense<0.000000e+00> : vector<8x8xf32>
    %60 = tpu.matmul %59, %44, %cst_24 {dimension_numbers = #tpu.dot_dimension_numbers<[1], [0], [0], [1], [0, 0, 1, 1], [], []>} : vector<8x8xf32>, vector<8x8xf32>, vector<8x8xf32> -> vector<8x8xf32>
    %61 = vector.extract_strided_slice %38 {offsets = [0, 8], sizes = [8, 8], strides = [1, 1]} : vector<16x32xf32> to vector<8x8xf32>
    %62 = vector.extract_strided_slice %39 {offsets = [0, 8], sizes = [8, 8], strides = [1, 1]} : vector<16x32xf32> to vector<8x8xf32>
    %63 = vector.extract_strided_slice %40 {offsets = [0, 8], sizes = [8, 8], strides = [1, 1]} : vector<16x32xf32> to vector<8x8xf32>
    "tpu.trace_start"() <{level = 10 : i32, message = "qd,kd->qk"}> : () -> ()
    %cst_25 = arith.constant dense<0.000000e+00> : vector<8x8xf32>
    %64 = tpu.matmul %61, %62, %cst_25 {dimension_numbers = #tpu.dot_dimension_numbers<[1], [1], [0], [0], [0, 0, 1, 0], [], []>} : vector<8x8xf32>, vector<8x8xf32>, vector<8x8xf32> -> vector<8x8xf32>
    "tpu.trace_stop"() : () -> ()
    %cst_26 = arith.constant 0.353553385 : f32
    %65 = vector.broadcast %cst_26 : f32 to vector<8x8xf32>
    %66 = arith.mulf %64, %65 : vector<8x8xf32>
    %67 = vector.broadcast %41 : vector<1x8xf32> to vector<8x8xf32>
    %68 = arith.addf %66, %67 : vector<8x8xf32>
    %cst_27 = arith.constant dense<0xFF800000> : vector<8xf32>
    %69 = vector.multi_reduction <maximumf>, %68, %cst_27 [1] : vector<8x8xf32> to vector<8xf32>
    %70 = vector.shape_cast %69 : vector<8xf32> to vector<8x1xf32>
    %71 = vector.broadcast %70 : vector<8x1xf32> to vector<8x8xf32>
    %72 = arith.subf %68, %71 : vector<8x8xf32>
    %73 = math.exp %72 : vector<8x8xf32>
    %cst_28 = arith.constant dense<0.000000e+00> : vector<8xf32>
    %74 = vector.multi_reduction <add>, %73, %cst_28 [1] : vector<8x8xf32> to vector<8xf32>
    %75 = vector.shape_cast %74 : vector<8xf32> to vector<8x1xf32>
    %76 = tpu.reciprocal %75 {approx = true} : vector<8x1xf32> -> vector<8x1xf32>
    %77 = vector.broadcast %76 : vector<8x1xf32> to vector<8x8xf32>
    %78 = arith.mulf %73, %77 : vector<8x8xf32>
    %cst_29 = arith.constant dense<0.000000e+00> : vector<8x8xf32>
    %79 = tpu.matmul %78, %63, %cst_29 {dimension_numbers = #tpu.dot_dimension_numbers<[1], [0], [0], [1], [0, 0, 1, 1], [], []>} : vector<8x8xf32>, vector<8x8xf32>, vector<8x8xf32> -> vector<8x8xf32>
    %80 = vector.extract_strided_slice %38 {offsets = [0, 16], sizes = [8, 8], strides = [1, 1]} : vector<16x32xf32> to vector<8x8xf32>
    %81 = vector.extract_strided_slice %39 {offsets = [0, 16], sizes = [8, 8], strides = [1, 1]} : vector<16x32xf32> to vector<8x8xf32>
    %82 = vector.extract_strided_slice %40 {offsets = [0, 16], sizes = [8, 8], strides = [1, 1]} : vector<16x32xf32> to vector<8x8xf32>
    "tpu.trace_start"() <{level = 10 : i32, message = "qd,kd->qk"}> : () -> ()
    %cst_30 = arith.constant dense<0.000000e+00> : vector<8x8xf32>
    %83 = tpu.matmul %80, %81, %cst_30 {dimension_numbers = #tpu.dot_dimension_numbers<[1], [1], [0], [0], [0, 0, 1, 0], [], []>} : vector<8x8xf32>, vector<8x8xf32>, vector<8x8xf32> -> vector<8x8xf32>
    "tpu.trace_stop"() : () -> ()
    %cst_31 = arith.constant 0.353553385 : f32
    %84 = vector.broadcast %cst_31 : f32 to vector<8x8xf32>
    %85 = arith.mulf %83, %84 : vector<8x8xf32>
    %86 = vector.broadcast %41 : vector<1x8xf32> to vector<8x8xf32>
    %87 = arith.addf %85, %86 : vector<8x8xf32>
    %cst_32 = arith.constant dense<0xFF800000> : vector<8xf32>
    %88 = vector.multi_reduction <maximumf>, %87, %cst_32 [1] : vector<8x8xf32> to vector<8xf32>
    %89 = vector.shape_cast %88 : vector<8xf32> to vector<8x1xf32>
    %90 = vector.broadcast %89 : vector<8x1xf32> to vector<8x8xf32>
    %91 = arith.subf %87, %90 : vector<8x8xf32>
    %92 = math.exp %91 : vector<8x8xf32>
    %cst_33 = arith.constant dense<0.000000e+00> : vector<8xf32>
    %93 = vector.multi_reduction <add>, %92, %cst_33 [1] : vector<8x8xf32> to vector<8xf32>
    %94 = vector.shape_cast %93 : vector<8xf32> to vector<8x1xf32>
    %95 = tpu.reciprocal %94 {approx = true} : vector<8x1xf32> -> vector<8x1xf32>
    %96 = vector.broadcast %95 : vector<8x1xf32> to vector<8x8xf32>
    %97 = arith.mulf %92, %96 : vector<8x8xf32>
    %cst_34 = arith.constant dense<0.000000e+00> : vector<8x8xf32>
    %98 = tpu.matmul %97, %82, %cst_34 {dimension_numbers = #tpu.dot_dimension_numbers<[1], [0], [0], [1], [0, 0, 1, 1], [], []>} : vector<8x8xf32>, vector<8x8xf32>, vector<8x8xf32> -> vector<8x8xf32>
    %99 = vector.extract_strided_slice %38 {offsets = [0, 24], sizes = [8, 8], strides = [1, 1]} : vector<16x32xf32> to vector<8x8xf32>
    %100 = vector.extract_strided_slice %39 {offsets = [0, 24], sizes = [8, 8], strides = [1, 1]} : vector<16x32xf32> to vector<8x8xf32>
    %101 = vector.extract_strided_slice %40 {offsets = [0, 24], sizes = [8, 8], strides = [1, 1]} : vector<16x32xf32> to vector<8x8xf32>
    "tpu.trace_start"() <{level = 10 : i32, message = "qd,kd->qk"}> : () -> ()
    %cst_35 = arith.constant dense<0.000000e+00> : vector<8x8xf32>
    %102 = tpu.matmul %99, %100, %cst_35 {dimension_numbers = #tpu.dot_dimension_numbers<[1], [1], [0], [0], [0, 0, 1, 0], [], []>} : vector<8x8xf32>, vector<8x8xf32>, vector<8x8xf32> -> vector<8x8xf32>
    "tpu.trace_stop"() : () -> ()
    %cst_36 = arith.constant 0.353553385 : f32
    %103 = vector.broadcast %cst_36 : f32 to vector<8x8xf32>
    %104 = arith.mulf %102, %103 : vector<8x8xf32>
    %105 = vector.broadcast %41 : vector<1x8xf32> to vector<8x8xf32>
    %106 = arith.addf %104, %105 : vector<8x8xf32>
    %cst_37 = arith.constant dense<0xFF800000> : vector<8xf32>
    %107 = vector.multi_reduction <maximumf>, %106, %cst_37 [1] : vector<8x8xf32> to vector<8xf32>
    %108 = vector.shape_cast %107 : vector<8xf32> to vector<8x1xf32>
    %109 = vector.broadcast %108 : vector<8x1xf32> to vector<8x8xf32>
    %110 = arith.subf %106, %109 : vector<8x8xf32>
    %111 = math.exp %110 : vector<8x8xf32>
    %cst_38 = arith.constant dense<0.000000e+00> : vector<8xf32>
    %112 = vector.multi_reduction <add>, %111, %cst_38 [1] : vector<8x8xf32> to vector<8xf32>
    %113 = vector.shape_cast %112 : vector<8xf32> to vector<8x1xf32>
    %114 = tpu.reciprocal %113 {approx = true} : vector<8x1xf32> -> vector<8x1xf32>
    %115 = vector.broadcast %114 : vector<8x1xf32> to vector<8x8xf32>
    %116 = arith.mulf %111, %115 : vector<8x8xf32>
    %cst_39 = arith.constant dense<0.000000e+00> : vector<8x8xf32>
    %117 = tpu.matmul %116, %101, %cst_39 {dimension_numbers = #tpu.dot_dimension_numbers<[1], [0], [0], [1], [0, 0, 1, 1], [], []>} : vector<8x8xf32>, vector<8x8xf32>, vector<8x8xf32> -> vector<8x8xf32>
    %118 = tpu.concatenate %60, %79, %98, %117 in 1 : vector<8x8xf32>, vector<8x8xf32>, vector<8x8xf32>, vector<8x8xf32> -> vector<8x32xf32>
    %119 = vector.extract_strided_slice %5 {offsets = [1, 0], sizes = [1, 8], strides = [1, 1]} : vector<2x8xf32> to vector<1x8xf32>
    %120 = vector.extract_strided_slice %38 {offsets = [8, 0], sizes = [8, 8], strides = [1, 1]} : vector<16x32xf32> to vector<8x8xf32>
    %121 = vector.extract_strided_slice %39 {offsets = [8, 0], sizes = [8, 8], strides = [1, 1]} : vector<16x32xf32> to vector<8x8xf32>
    %122 = vector.extract_strided_slice %40 {offsets = [8, 0], sizes = [8, 8], strides = [1, 1]} : vector<16x32xf32> to vector<8x8xf32>
    "tpu.trace_start"() <{level = 10 : i32, message = "qd,kd->qk"}> : () -> ()
    %cst_40 = arith.constant dense<0.000000e+00> : vector<8x8xf32>
    %123 = tpu.matmul %120, %121, %cst_40 {dimension_numbers = #tpu.dot_dimension_numbers<[1], [1], [0], [0], [0, 0, 1, 0], [], []>} : vector<8x8xf32>, vector<8x8xf32>, vector<8x8xf32> -> vector<8x8xf32>
    "tpu.trace_stop"() : () -> ()
    %cst_41 = arith.constant 0.353553385 : f32
    %124 = vector.broadcast %cst_41 : f32 to vector<8x8xf32>
    %125 = arith.mulf %123, %124 : vector<8x8xf32>
    %126 = vector.broadcast %119 : vector<1x8xf32> to vector<8x8xf32>
    %127 = arith.addf %125, %126 : vector<8x8xf32>
    %cst_42 = arith.constant dense<0xFF800000> : vector<8xf32>
    %128 = vector.multi_reduction <maximumf>, %127, %cst_42 [1] : vector<8x8xf32> to vector<8xf32>
    %129 = vector.shape_cast %128 : vector<8xf32> to vector<8x1xf32>
    %130 = vector.broadcast %129 : vector<8x1xf32> to vector<8x8xf32>
    %131 = arith.subf %127, %130 : vector<8x8xf32>
    %132 = math.exp %131 : vector<8x8xf32>
    %cst_43 = arith.constant dense<0.000000e+00> : vector<8xf32>
    %133 = vector.multi_reduction <add>, %132, %cst_43 [1] : vector<8x8xf32> to vector<8xf32>
    %134 = vector.shape_cast %133 : vector<8xf32> to vector<8x1xf32>
    %135 = tpu.reciprocal %134 {approx = true} : vector<8x1xf32> -> vector<8x1xf32>
    %136 = vector.broadcast %135 : vector<8x1xf32> to vector<8x8xf32>
    %137 = arith.mulf %132, %136 : vector<8x8xf32>
    %cst_44 = arith.constant dense<0.000000e+00> : vector<8x8xf32>
    %138 = tpu.matmul %137, %122, %cst_44 {dimension_numbers = #tpu.dot_dimension_numbers<[1], [0], [0], [1], [0, 0, 1, 1], [], []>} : vector<8x8xf32>, vector<8x8xf32>, vector<8x8xf32> -> vector<8x8xf32>
    %139 = vector.extract_strided_slice %38 {offsets = [8, 8], sizes = [8, 8], strides = [1, 1]} : vector<16x32xf32> to vector<8x8xf32>
    %140 = vector.extract_strided_slice %39 {offsets = [8, 8], sizes = [8, 8], strides = [1, 1]} : vector<16x32xf32> to vector<8x8xf32>
    %141 = vector.extract_strided_slice %40 {offsets = [8, 8], sizes = [8, 8], strides = [1, 1]} : vector<16x32xf32> to vector<8x8xf32>
    "tpu.trace_start"() <{level = 10 : i32, message = "qd,kd->qk"}> : () -> ()
    %cst_45 = arith.constant dense<0.000000e+00> : vector<8x8xf32>
    %142 = tpu.matmul %139, %140, %cst_45 {dimension_numbers = #tpu.dot_dimension_numbers<[1], [1], [0], [0], [0, 0, 1, 0], [], []>} : vector<8x8xf32>, vector<8x8xf32>, vector<8x8xf32> -> vector<8x8xf32>
    "tpu.trace_stop"() : () -> ()
    %cst_46 = arith.constant 0.353553385 : f32
    %143 = vector.broadcast %cst_46 : f32 to vector<8x8xf32>
    %144 = arith.mulf %142, %143 : vector<8x8xf32>
    %145 = vector.broadcast %119 : vector<1x8xf32> to vector<8x8xf32>
    %146 = arith.addf %144, %145 : vector<8x8xf32>
    %cst_47 = arith.constant dense<0xFF800000> : vector<8xf32>
    %147 = vector.multi_reduction <maximumf>, %146, %cst_47 [1] : vector<8x8xf32> to vector<8xf32>
    %148 = vector.shape_cast %147 : vector<8xf32> to vector<8x1xf32>
    %149 = vector.broadcast %148 : vector<8x1xf32> to vector<8x8xf32>
    %150 = arith.subf %146, %149 : vector<8x8xf32>
    %151 = math.exp %150 : vector<8x8xf32>
    %cst_48 = arith.constant dense<0.000000e+00> : vector<8xf32>
    %152 = vector.multi_reduction <add>, %151, %cst_48 [1] : vector<8x8xf32> to vector<8xf32>
    %153 = vector.shape_cast %152 : vector<8xf32> to vector<8x1xf32>
    %154 = tpu.reciprocal %153 {approx = true} : vector<8x1xf32> -> vector<8x1xf32>
    %155 = vector.broadcast %154 : vector<8x1xf32> to vector<8x8xf32>
    %156 = arith.mulf %151, %155 : vector<8x8xf32>
    %cst_49 = arith.constant dense<0.000000e+00> : vector<8x8xf32>
    %157 = tpu.matmul %156, %141, %cst_49 {dimension_numbers = #tpu.dot_dimension_numbers<[1], [0], [0], [1], [0, 0, 1, 1], [], []>} : vector<8x8xf32>, vector<8x8xf32>, vector<8x8xf32> -> vector<8x8xf32>
    %158 = vector.extract_strided_slice %38 {offsets = [8, 16], sizes = [8, 8], strides = [1, 1]} : vector<16x32xf32> to vector<8x8xf32>
    %159 = vector.extract_strided_slice %39 {offsets = [8, 16], sizes = [8, 8], strides = [1, 1]} : vector<16x32xf32> to vector<8x8xf32>
    %160 = vector.extract_strided_slice %40 {offsets = [8, 16], sizes = [8, 8], strides = [1, 1]} : vector<16x32xf32> to vector<8x8xf32>
    "tpu.trace_start"() <{level = 10 : i32, message = "qd,kd->qk"}> : () -> ()
    %cst_50 = arith.constant dense<0.000000e+00> : vector<8x8xf32>
    %161 = tpu.matmul %158, %159, %cst_50 {dimension_numbers = #tpu.dot_dimension_numbers<[1], [1], [0], [0], [0, 0, 1, 0], [], []>} : vector<8x8xf32>, vector<8x8xf32>, vector<8x8xf32> -> vector<8x8xf32>
    "tpu.trace_stop"() : () -> ()
    %cst_51 = arith.constant 0.353553385 : f32
    %162 = vector.broadcast %cst_51 : f32 to vector<8x8xf32>
    %163 = arith.mulf %161, %162 : vector<8x8xf32>
    %164 = vector.broadcast %119 : vector<1x8xf32> to vector<8x8xf32>
    %165 = arith.addf %163, %164 : vector<8x8xf32>
    %cst_52 = arith.constant dense<0xFF800000> : vector<8xf32>
    %166 = vector.multi_reduction <maximumf>, %165, %cst_52 [1] : vector<8x8xf32> to vector<8xf32>
    %167 = vector.shape_cast %166 : vector<8xf32> to vector<8x1xf32>
    %168 = vector.broadcast %167 : vector<8x1xf32> to vector<8x8xf32>
    %169 = arith.subf %165, %168 : vector<8x8xf32>
    %170 = math.exp %169 : vector<8x8xf32>
    %cst_53 = arith.constant dense<0.000000e+00> : vector<8xf32>
    %171 = vector.multi_reduction <add>, %170, %cst_53 [1] : vector<8x8xf32> to vector<8xf32>
    %172 = vector.shape_cast %171 : vector<8xf32> to vector<8x1xf32>
    %173 = tpu.reciprocal %172 {approx = true} : vector<8x1xf32> -> vector<8x1xf32>
    %174 = vector.broadcast %173 : vector<8x1xf32> to vector<8x8xf32>
    %175 = arith.mulf %170, %174 : vector<8x8xf32>
    %cst_54 = arith.constant dense<0.000000e+00> : vector<8x8xf32>
    %176 = tpu.matmul %175, %160, %cst_54 {dimension_numbers = #tpu.dot_dimension_numbers<[1], [0], [0], [1], [0, 0, 1, 1], [], []>} : vector<8x8xf32>, vector<8x8xf32>, vector<8x8xf32> -> vector<8x8xf32>
    %177 = vector.extract_strided_slice %38 {offsets = [8, 24], sizes = [8, 8], strides = [1, 1]} : vector<16x32xf32> to vector<8x8xf32>
    %178 = vector.extract_strided_slice %39 {offsets = [8, 24], sizes = [8, 8], strides = [1, 1]} : vector<16x32xf32> to vector<8x8xf32>
    %179 = vector.extract_strided_slice %40 {offsets = [8, 24], sizes = [8, 8], strides = [1, 1]} : vector<16x32xf32> to vector<8x8xf32>
    "tpu.trace_start"() <{level = 10 : i32, message = "qd,kd->qk"}> : () -> ()
    %cst_55 = arith.constant dense<0.000000e+00> : vector<8x8xf32>
    %180 = tpu.matmul %177, %178, %cst_55 {dimension_numbers = #tpu.dot_dimension_numbers<[1], [1], [0], [0], [0, 0, 1, 0], [], []>} : vector<8x8xf32>, vector<8x8xf32>, vector<8x8xf32> -> vector<8x8xf32>
    "tpu.trace_stop"() : () -> ()
    %cst_56 = arith.constant 0.353553385 : f32
    %181 = vector.broadcast %cst_56 : f32 to vector<8x8xf32>
    %182 = arith.mulf %180, %181 : vector<8x8xf32>
    %183 = vector.broadcast %119 : vector<1x8xf32> to vector<8x8xf32>
    %184 = arith.addf %182, %183 : vector<8x8xf32>
    %cst_57 = arith.constant dense<0xFF800000> : vector<8xf32>
    %185 = vector.multi_reduction <maximumf>, %184, %cst_57 [1] : vector<8x8xf32> to vector<8xf32>
    %186 = vector.shape_cast %185 : vector<8xf32> to vector<8x1xf32>
    %187 = vector.broadcast %186 : vector<8x1xf32> to vector<8x8xf32>
    %188 = arith.subf %184, %187 : vector<8x8xf32>
    %189 = math.exp %188 : vector<8x8xf32>
    %cst_58 = arith.constant dense<0.000000e+00> : vector<8xf32>
    %190 = vector.multi_reduction <add>, %189, %cst_58 [1] : vector<8x8xf32> to vector<8xf32>
    %191 = vector.shape_cast %190 : vector<8xf32> to vector<8x1xf32>
    %192 = tpu.reciprocal %191 {approx = true} : vector<8x1xf32> -> vector<8x1xf32>
    %193 = vector.broadcast %192 : vector<8x1xf32> to vector<8x8xf32>
    %194 = arith.mulf %189, %193 : vector<8x8xf32>
    %cst_59 = arith.constant dense<0.000000e+00> : vector<8x8xf32>
    %195 = tpu.matmul %194, %179, %cst_59 {dimension_numbers = #tpu.dot_dimension_numbers<[1], [0], [0], [1], [0, 0, 1, 1], [], []>} : vector<8x8xf32>, vector<8x8xf32>, vector<8x8xf32> -> vector<8x8xf32>
    %196 = tpu.concatenate %138, %157, %176, %195 in 1 : vector<8x8xf32>, vector<8x8xf32>, vector<8x8xf32>, vector<8x8xf32> -> vector<8x32xf32>
    %197 = tpu.concatenate %118, %196 in 0 : vector<8x32xf32>, vector<8x32xf32> -> vector<16x32xf32>
    %c0_60 = arith.constant 0 : index
    %c0_61 = arith.constant 0 : index
    %c0_62 = arith.constant 0 : index
    %198 = vector.load %arg6[%c0_60, %c0_61, %c0_62] : memref<2x32x32xf32, #tpu.memory_space<vmem>>, vector<1x32x32xf32>
    %199 = vector.shape_cast %198 : vector<1x32x32xf32> to vector<32x32xf32>
    %cst_63 = arith.constant dense<0.000000e+00> : vector<16x32xf32>
    %200 = tpu.matmul %197, %199, %cst_63 {dimension_numbers = #tpu.dot_dimension_numbers<[1], [0], [0], [1], [0, 0, 1, 1], [], []>} : vector<16x32xf32>, vector<32x32xf32>, vector<16x32xf32> -> vector<16x32xf32>
    %c0_64 = arith.constant 0 : index
    %c0_65 = arith.constant 0 : index
    %c0_66 = arith.constant 0 : index
    %201 = vector.load %arg7[%c0_64, %c0_65, %c0_66] : memref<2x1x32xf32, #tpu.memory_space<vmem>>, vector<1x1x32xf32>
    %202 = vector.shape_cast %201 : vector<1x1x32xf32> to vector<1x32xf32>
    %203 = vector.broadcast %202 : vector<1x32xf32> to vector<16x32xf32>
    %204 = arith.addf %200, %203 : vector<16x32xf32>
    %205 = arith.addf %204, %30 : vector<16x32xf32>
    %c0_67 = arith.constant 0 : index
    %c0_68 = arith.constant 0 : index
    %c0_69 = arith.constant 0 : index
    %206 = vector.load %arg8[%c0_67, %c0_68, %c0_69] : memref<2x1x32xf32, #tpu.memory_space<vmem>>, vector<1x1x32xf32>
    %207 = vector.shape_cast %206 : vector<1x1x32xf32> to vector<1x32xf32>
    %c0_70 = arith.constant 0 : index
    %c0_71 = arith.constant 0 : index
    %c0_72 = arith.constant 0 : index
    %208 = vector.load %arg9[%c0_70, %c0_71, %c0_72] : memref<2x1x32xf32, #tpu.memory_space<vmem>>, vector<1x1x32xf32>
    %209 = vector.shape_cast %208 : vector<1x1x32xf32> to vector<1x32xf32>
    %cst_73 = arith.constant dense<0.000000e+00> : vector<16xf32>
    %210 = vector.multi_reduction <add>, %205, %cst_73 [1] : vector<16x32xf32> to vector<16xf32>
    %211 = vector.shape_cast %210 : vector<16xf32> to vector<16x1xf32>
    %cst_74 = arith.constant 3.200000e+01 : f32
    %212 = vector.broadcast %cst_74 : f32 to vector<16x1xf32>
    %213 = arith.divf %211, %212 : vector<16x1xf32>
    %214 = vector.broadcast %213 : vector<16x1xf32> to vector<16x32xf32>
    %215 = arith.subf %205, %214 : vector<16x32xf32>
    %216 = arith.mulf %215, %215 : vector<16x32xf32>
    %cst_75 = arith.constant dense<0.000000e+00> : vector<16xf32>
    %217 = vector.multi_reduction <add>, %216, %cst_75 [1] : vector<16x32xf32> to vector<16xf32>
    %218 = vector.shape_cast %217 : vector<16xf32> to vector<16x1xf32>
    %cst_76 = arith.constant 3.200000e+01 : f32
    %219 = vector.broadcast %cst_76 : f32 to vector<16x1xf32>
    %220 = arith.divf %218, %219 : vector<16x1xf32>
    %221 = vector.broadcast %213 : vector<16x1xf32> to vector<16x32xf32>
    %222 = arith.subf %205, %221 : vector<16x32xf32>
    %cst_77 = arith.constant 9.99999996E-13 : f32
    %223 = vector.broadcast %cst_77 : f32 to vector<16x1xf32>
    %224 = arith.addf %220, %223 : vector<16x1xf32>
    %225 = math.rsqrt %224 : vector<16x1xf32>
    %226 = vector.broadcast %225 : vector<16x1xf32> to vector<16x32xf32>
    %227 = arith.mulf %222, %226 : vector<16x32xf32>
    %228 = vector.broadcast %207 : vector<1x32xf32> to vector<16x32xf32>
    %229 = arith.mulf %227, %228 : vector<16x32xf32>
    %230 = vector.broadcast %209 : vector<1x32xf32> to vector<16x32xf32>
    %231 = arith.addf %229, %230 : vector<16x32xf32>
    %c0_78 = arith.constant 0 : index
    %c0_79 = arith.constant 0 : index
    %c0_80 = arith.constant 0 : index
    %232 = vector.load %arg10[%c0_78, %c0_79, %c0_80] : memref<2x32x64xf32, #tpu.memory_space<vmem>>, vector<1x32x64xf32>
    %233 = vector.shape_cast %232 : vector<1x32x64xf32> to vector<32x64xf32>
    %cst_81 = arith.constant dense<0.000000e+00> : vector<16x64xf32>
    %234 = tpu.matmul %231, %233, %cst_81 {dimension_numbers = #tpu.dot_dimension_numbers<[1], [0], [0], [1], [0, 0, 1, 1], [], []>} : vector<16x32xf32>, vector<32x64xf32>, vector<16x64xf32> -> vector<16x64xf32>
    %c0_82 = arith.constant 0 : index
    %c0_83 = arith.constant 0 : index
    %c0_84 = arith.constant 0 : index
    %235 = vector.load %arg11[%c0_82, %c0_83, %c0_84] : memref<2x1x64xf32, #tpu.memory_space<vmem>>, vector<1x1x64xf32>
    %236 = vector.shape_cast %235 : vector<1x1x64xf32> to vector<1x64xf32>
    %237 = vector.broadcast %236 : vector<1x64xf32> to vector<16x64xf32>
    %238 = arith.addf %234, %237 : vector<16x64xf32>
    %cst_85 = arith.constant 5.000000e-01 : f32
    %239 = vector.broadcast %cst_85 : f32 to vector<16x64xf32>
    %240 = arith.mulf %239, %238 : vector<16x64xf32>
    %cst_86 = arith.constant 4.471500e-02 : f32
    %241 = vector.broadcast %cst_86 : f32 to vector<16x64xf32>
    %242 = arith.mulf %241, %238 : vector<16x64xf32>
    %243 = arith.mulf %242, %238 : vector<16x64xf32>
    %244 = arith.mulf %243, %238 : vector<16x64xf32>
    %245 = arith.addf %238, %244 : vector<16x64xf32>
    %cst_87 = arith.constant 0.797884583 : f32
    %246 = vector.broadcast %cst_87 : f32 to vector<16x64xf32>
    %247 = arith.mulf %246, %245 : vector<16x64xf32>
    %248 = math.tanh %247 : vector<16x64xf32>
    %cst_88 = arith.constant 1.000000e+00 : f32
    %249 = vector.broadcast %cst_88 : f32 to vector<16x64xf32>
    %250 = arith.addf %249, %248 : vector<16x64xf32>
    %251 = arith.mulf %240, %250 : vector<16x64xf32>
    %c0_89 = arith.constant 0 : index
    %c0_90 = arith.constant 0 : index
    %c0_91 = arith.constant 0 : index
    %252 = vector.load %arg12[%c0_89, %c0_90, %c0_91] : memref<2x64x32xf32, #tpu.memory_space<vmem>>, vector<1x64x32xf32>
    %253 = vector.shape_cast %252 : vector<1x64x32xf32> to vector<64x32xf32>
    %cst_92 = arith.constant dense<0.000000e+00> : vector<16x32xf32>
    %254 = tpu.matmul %251, %253, %cst_92 {dimension_numbers = #tpu.dot_dimension_numbers<[1], [0], [0], [1], [0, 0, 1, 1], [], []>} : vector<16x64xf32>, vector<64x32xf32>, vector<16x32xf32> -> vector<16x32xf32>
    %c0_93 = arith.constant 0 : index
    %c0_94 = arith.constant 0 : index
    %c0_95 = arith.constant 0 : index
    %255 = vector.load %arg13[%c0_93, %c0_94, %c0_95] : memref<2x1x32xf32, #tpu.memory_space<vmem>>, vector<1x1x32xf32>
    %256 = vector.shape_cast %255 : vector<1x1x32xf32> to vector<1x32xf32>
    %257 = vector.broadcast %256 : vector<1x32xf32> to vector<16x32xf32>
    %258 = arith.addf %254, %257 : vector<16x32xf32>
    %259 = arith.addf %258, %231 : vector<16x32xf32>
    %c0_96 = arith.constant 0 : index
    %c0_97 = arith.constant 0 : index
    %c0_98 = arith.constant 0 : index
    %260 = vector.load %arg14[%c0_96, %c0_97, %c0_98] : memref<2x1x32xf32, #tpu.memory_space<vmem>>, vector<1x1x32xf32>
    %261 = vector.shape_cast %260 : vector<1x1x32xf32> to vector<1x32xf32>
    %c0_99 = arith.constant 0 : index
    %c0_100 = arith.constant 0 : index
    %c0_101 = arith.constant 0 : index
    %262 = vector.load %arg15[%c0_99, %c0_100, %c0_101] : memref<2x1x32xf32, #tpu.memory_space<vmem>>, vector<1x1x32xf32>
    %263 = vector.shape_cast %262 : vector<1x1x32xf32> to vector<1x32xf32>
    %cst_102 = arith.constant dense<0.000000e+00> : vector<16xf32>
    %264 = vector.multi_reduction <add>, %259, %cst_102 [1] : vector<16x32xf32> to vector<16xf32>
    %265 = vector.shape_cast %264 : vector<16xf32> to vector<16x1xf32>
    %cst_103 = arith.constant 3.200000e+01 : f32
    %266 = vector.broadcast %cst_103 : f32 to vector<16x1xf32>
    %267 = arith.divf %265, %266 : vector<16x1xf32>
    %268 = vector.broadcast %267 : vector<16x1xf32> to vector<16x32xf32>
    %269 = arith.subf %259, %268 : vector<16x32xf32>
    %270 = arith.mulf %269, %269 : vector<16x32xf32>
    %cst_104 = arith.constant dense<0.000000e+00> : vector<16xf32>
    %271 = vector.multi_reduction <add>, %270, %cst_104 [1] : vector<16x32xf32> to vector<16xf32>
    %272 = vector.shape_cast %271 : vector<16xf32> to vector<16x1xf32>
    %cst_105 = arith.constant 3.200000e+01 : f32
    %273 = vector.broadcast %cst_105 : f32 to vector<16x1xf32>
    %274 = arith.divf %272, %273 : vector<16x1xf32>
    %275 = vector.broadcast %267 : vector<16x1xf32> to vector<16x32xf32>
    %276 = arith.subf %259, %275 : vector<16x32xf32>
    %cst_106 = arith.constant 9.99999996E-13 : f32
    %277 = vector.broadcast %cst_106 : f32 to vector<16x1xf32>
    %278 = arith.addf %274, %277 : vector<16x1xf32>
    %279 = math.rsqrt %278 : vector<16x1xf32>
    %280 = vector.broadcast %279 : vector<16x1xf32> to vector<16x32xf32>
    %281 = arith.mulf %276, %280 : vector<16x32xf32>
    %282 = vector.broadcast %261 : vector<1x32xf32> to vector<16x32xf32>
    %283 = arith.mulf %281, %282 : vector<16x32xf32>
    %284 = vector.broadcast %263 : vector<1x32xf32> to vector<16x32xf32>
    %285 = arith.addf %283, %284 : vector<16x32xf32>
    %c1 = arith.constant 1 : index
    %c0_107 = arith.constant 0 : index
    %c0_108 = arith.constant 0 : index
    %286 = vector.load %arg4[%c1, %c0_107, %c0_108] : memref<2x32x96xf32, #tpu.memory_space<vmem>>, vector<1x32x96xf32>
    %287 = vector.shape_cast %286 : vector<1x32x96xf32> to vector<32x96xf32>
    %cst_109 = arith.constant dense<0.000000e+00> : vector<16x96xf32>
    %288 = tpu.matmul %285, %287, %cst_109 {dimension_numbers = #tpu.dot_dimension_numbers<[1], [0], [0], [1], [0, 0, 1, 1], [], []>} : vector<16x32xf32>, vector<32x96xf32>, vector<16x96xf32> -> vector<16x96xf32>
    %c1_110 = arith.constant 1 : index
    %c0_111 = arith.constant 0 : index
    %c0_112 = arith.constant 0 : index
    %289 = vector.load %arg5[%c1_110, %c0_111, %c0_112] : memref<2x1x96xf32, #tpu.memory_space<vmem>>, vector<1x1x96xf32>
    %290 = vector.shape_cast %289 : vector<1x1x96xf32> to vector<1x96xf32>
    %291 = vector.broadcast %290 : vector<1x96xf32> to vector<16x96xf32>
    %292 = arith.addf %288, %291 : vector<16x96xf32>
    %293 = vector.extract_strided_slice %292 {offsets = [0, 0], sizes = [16, 32], strides = [1, 1]} : vector<16x96xf32> to vector<16x32xf32>
    %294 = vector.extract_strided_slice %292 {offsets = [0, 32], sizes = [16, 32], strides = [1, 1]} : vector<16x96xf32> to vector<16x32xf32>
    %295 = vector.extract_strided_slice %292 {offsets = [0, 64], sizes = [16, 32], strides = [1, 1]} : vector<16x96xf32> to vector<16x32xf32>
    %296 = vector.extract_strided_slice %5 {offsets = [0, 0], sizes = [1, 8], strides = [1, 1]} : vector<2x8xf32> to vector<1x8xf32>
    %297 = vector.extract_strided_slice %293 {offsets = [0, 0], sizes = [8, 8], strides = [1, 1]} : vector<16x32xf32> to vector<8x8xf32>
    %298 = vector.extract_strided_slice %294 {offsets = [0, 0], sizes = [8, 8], strides = [1, 1]} : vector<16x32xf32> to vector<8x8xf32>
    %299 = vector.extract_strided_slice %295 {offsets = [0, 0], sizes = [8, 8], strides = [1, 1]} : vector<16x32xf32> to vector<8x8xf32>
    "tpu.trace_start"() <{level = 10 : i32, message = "qd,kd->qk"}> : () -> ()
    %cst_113 = arith.constant dense<0.000000e+00> : vector<8x8xf32>
    %300 = tpu.matmul %297, %298, %cst_113 {dimension_numbers = #tpu.dot_dimension_numbers<[1], [1], [0], [0], [0, 0, 1, 0], [], []>} : vector<8x8xf32>, vector<8x8xf32>, vector<8x8xf32> -> vector<8x8xf32>
    "tpu.trace_stop"() : () -> ()
    %cst_114 = arith.constant 0.353553385 : f32
    %301 = vector.broadcast %cst_114 : f32 to vector<8x8xf32>
    %302 = arith.mulf %300, %301 : vector<8x8xf32>
    %303 = vector.broadcast %296 : vector<1x8xf32> to vector<8x8xf32>
    %304 = arith.addf %302, %303 : vector<8x8xf32>
    %cst_115 = arith.constant dense<0xFF800000> : vector<8xf32>
    %305 = vector.multi_reduction <maximumf>, %304, %cst_115 [1] : vector<8x8xf32> to vector<8xf32>
    %306 = vector.shape_cast %305 : vector<8xf32> to vector<8x1xf32>
    %307 = vector.broadcast %306 : vector<8x1xf32> to vector<8x8xf32>
    %308 = arith.subf %304, %307 : vector<8x8xf32>
    %309 = math.exp %308 : vector<8x8xf32>
    %cst_116 = arith.constant dense<0.000000e+00> : vector<8xf32>
    %310 = vector.multi_reduction <add>, %309, %cst_116 [1] : vector<8x8xf32> to vector<8xf32>
    %311 = vector.shape_cast %310 : vector<8xf32> to vector<8x1xf32>
    %312 = tpu.reciprocal %311 {approx = true} : vector<8x1xf32> -> vector<8x1xf32>
    %313 = vector.broadcast %312 : vector<8x1xf32> to vector<8x8xf32>
    %314 = arith.mulf %309, %313 : vector<8x8xf32>
    %cst_117 = arith.constant dense<0.000000e+00> : vector<8x8xf32>
    %315 = tpu.matmul %314, %299, %cst_117 {dimension_numbers = #tpu.dot_dimension_numbers<[1], [0], [0], [1], [0, 0, 1, 1], [], []>} : vector<8x8xf32>, vector<8x8xf32>, vector<8x8xf32> -> vector<8x8xf32>
    %316 = vector.extract_strided_slice %293 {offsets = [0, 8], sizes = [8, 8], strides = [1, 1]} : vector<16x32xf32> to vector<8x8xf32>
    %317 = vector.extract_strided_slice %294 {offsets = [0, 8], sizes = [8, 8], strides = [1, 1]} : vector<16x32xf32> to vector<8x8xf32>
    %318 = vector.extract_strided_slice %295 {offsets = [0, 8], sizes = [8, 8], strides = [1, 1]} : vector<16x32xf32> to vector<8x8xf32>
    "tpu.trace_start"() <{level = 10 : i32, message = "qd,kd->qk"}> : () -> ()
    %cst_118 = arith.constant dense<0.000000e+00> : vector<8x8xf32>
    %319 = tpu.matmul %316, %317, %cst_118 {dimension_numbers = #tpu.dot_dimension_numbers<[1], [1], [0], [0], [0, 0, 1, 0], [], []>} : vector<8x8xf32>, vector<8x8xf32>, vector<8x8xf32> -> vector<8x8xf32>
    "tpu.trace_stop"() : () -> ()
    %cst_119 = arith.constant 0.353553385 : f32
    %320 = vector.broadcast %cst_119 : f32 to vector<8x8xf32>
    %321 = arith.mulf %319, %320 : vector<8x8xf32>
    %322 = vector.broadcast %296 : vector<1x8xf32> to vector<8x8xf32>
    %323 = arith.addf %321, %322 : vector<8x8xf32>
    %cst_120 = arith.constant dense<0xFF800000> : vector<8xf32>
    %324 = vector.multi_reduction <maximumf>, %323, %cst_120 [1] : vector<8x8xf32> to vector<8xf32>
    %325 = vector.shape_cast %324 : vector<8xf32> to vector<8x1xf32>
    %326 = vector.broadcast %325 : vector<8x1xf32> to vector<8x8xf32>
    %327 = arith.subf %323, %326 : vector<8x8xf32>
    %328 = math.exp %327 : vector<8x8xf32>
    %cst_121 = arith.constant dense<0.000000e+00> : vector<8xf32>
    %329 = vector.multi_reduction <add>, %328, %cst_121 [1] : vector<8x8xf32> to vector<8xf32>
    %330 = vector.shape_cast %329 : vector<8xf32> to vector<8x1xf32>
    %331 = tpu.reciprocal %330 {approx = true} : vector<8x1xf32> -> vector<8x1xf32>
    %332 = vector.broadcast %331 : vector<8x1xf32> to vector<8x8xf32>
    %333 = arith.mulf %328, %332 : vector<8x8xf32>
    %cst_122 = arith.constant dense<0.000000e+00> : vector<8x8xf32>
    %334 = tpu.matmul %333, %318, %cst_122 {dimension_numbers = #tpu.dot_dimension_numbers<[1], [0], [0], [1], [0, 0, 1, 1], [], []>} : vector<8x8xf32>, vector<8x8xf32>, vector<8x8xf32> -> vector<8x8xf32>
    %335 = vector.extract_strided_slice %293 {offsets = [0, 16], sizes = [8, 8], strides = [1, 1]} : vector<16x32xf32> to vector<8x8xf32>
    %336 = vector.extract_strided_slice %294 {offsets = [0, 16], sizes = [8, 8], strides = [1, 1]} : vector<16x32xf32> to vector<8x8xf32>
    %337 = vector.extract_strided_slice %295 {offsets = [0, 16], sizes = [8, 8], strides = [1, 1]} : vector<16x32xf32> to vector<8x8xf32>
    "tpu.trace_start"() <{level = 10 : i32, message = "qd,kd->qk"}> : () -> ()
    %cst_123 = arith.constant dense<0.000000e+00> : vector<8x8xf32>
    %338 = tpu.matmul %335, %336, %cst_123 {dimension_numbers = #tpu.dot_dimension_numbers<[1], [1], [0], [0], [0, 0, 1, 0], [], []>} : vector<8x8xf32>, vector<8x8xf32>, vector<8x8xf32> -> vector<8x8xf32>
    "tpu.trace_stop"() : () -> ()
    %cst_124 = arith.constant 0.353553385 : f32
    %339 = vector.broadcast %cst_124 : f32 to vector<8x8xf32>
    %340 = arith.mulf %338, %339 : vector<8x8xf32>
    %341 = vector.broadcast %296 : vector<1x8xf32> to vector<8x8xf32>
    %342 = arith.addf %340, %341 : vector<8x8xf32>
    %cst_125 = arith.constant dense<0xFF800000> : vector<8xf32>
    %343 = vector.multi_reduction <maximumf>, %342, %cst_125 [1] : vector<8x8xf32> to vector<8xf32>
    %344 = vector.shape_cast %343 : vector<8xf32> to vector<8x1xf32>
    %345 = vector.broadcast %344 : vector<8x1xf32> to vector<8x8xf32>
    %346 = arith.subf %342, %345 : vector<8x8xf32>
    %347 = math.exp %346 : vector<8x8xf32>
    %cst_126 = arith.constant dense<0.000000e+00> : vector<8xf32>
    %348 = vector.multi_reduction <add>, %347, %cst_126 [1] : vector<8x8xf32> to vector<8xf32>
    %349 = vector.shape_cast %348 : vector<8xf32> to vector<8x1xf32>
    %350 = tpu.reciprocal %349 {approx = true} : vector<8x1xf32> -> vector<8x1xf32>
    %351 = vector.broadcast %350 : vector<8x1xf32> to vector<8x8xf32>
    %352 = arith.mulf %347, %351 : vector<8x8xf32>
    %cst_127 = arith.constant dense<0.000000e+00> : vector<8x8xf32>
    %353 = tpu.matmul %352, %337, %cst_127 {dimension_numbers = #tpu.dot_dimension_numbers<[1], [0], [0], [1], [0, 0, 1, 1], [], []>} : vector<8x8xf32>, vector<8x8xf32>, vector<8x8xf32> -> vector<8x8xf32>
    %354 = vector.extract_strided_slice %293 {offsets = [0, 24], sizes = [8, 8], strides = [1, 1]} : vector<16x32xf32> to vector<8x8xf32>
    %355 = vector.extract_strided_slice %294 {offsets = [0, 24], sizes = [8, 8], strides = [1, 1]} : vector<16x32xf32> to vector<8x8xf32>
    %356 = vector.extract_strided_slice %295 {offsets = [0, 24], sizes = [8, 8], strides = [1, 1]} : vector<16x32xf32> to vector<8x8xf32>
    "tpu.trace_start"() <{level = 10 : i32, message = "qd,kd->qk"}> : () -> ()
    %cst_128 = arith.constant dense<0.000000e+00> : vector<8x8xf32>
    %357 = tpu.matmul %354, %355, %cst_128 {dimension_numbers = #tpu.dot_dimension_numbers<[1], [1], [0], [0], [0, 0, 1, 0], [], []>} : vector<8x8xf32>, vector<8x8xf32>, vector<8x8xf32> -> vector<8x8xf32>
    "tpu.trace_stop"() : () -> ()
    %cst_129 = arith.constant 0.353553385 : f32
    %358 = vector.broadcast %cst_129 : f32 to vector<8x8xf32>
    %359 = arith.mulf %357, %358 : vector<8x8xf32>
    %360 = vector.broadcast %296 : vector<1x8xf32> to vector<8x8xf32>
    %361 = arith.addf %359, %360 : vector<8x8xf32>
    %cst_130 = arith.constant dense<0xFF800000> : vector<8xf32>
    %362 = vector.multi_reduction <maximumf>, %361, %cst_130 [1] : vector<8x8xf32> to vector<8xf32>
    %363 = vector.shape_cast %362 : vector<8xf32> to vector<8x1xf32>
    %364 = vector.broadcast %363 : vector<8x1xf32> to vector<8x8xf32>
    %365 = arith.subf %361, %364 : vector<8x8xf32>
    %366 = math.exp %365 : vector<8x8xf32>
    %cst_131 = arith.constant dense<0.000000e+00> : vector<8xf32>
    %367 = vector.multi_reduction <add>, %366, %cst_131 [1] : vector<8x8xf32> to vector<8xf32>
    %368 = vector.shape_cast %367 : vector<8xf32> to vector<8x1xf32>
    %369 = tpu.reciprocal %368 {approx = true} : vector<8x1xf32> -> vector<8x1xf32>
    %370 = vector.broadcast %369 : vector<8x1xf32> to vector<8x8xf32>
    %371 = arith.mulf %366, %370 : vector<8x8xf32>
    %cst_132 = arith.constant dense<0.000000e+00> : vector<8x8xf32>
    %372 = tpu.matmul %371, %356, %cst_132 {dimension_numbers = #tpu.dot_dimension_numbers<[1], [0], [0], [1], [0, 0, 1, 1], [], []>} : vector<8x8xf32>, vector<8x8xf32>, vector<8x8xf32> -> vector<8x8xf32>
    %373 = tpu.concatenate %315, %334, %353, %372 in 1 : vector<8x8xf32>, vector<8x8xf32>, vector<8x8xf32>, vector<8x8xf32> -> vector<8x32xf32>
    %374 = vector.extract_strided_slice %5 {offsets = [1, 0], sizes = [1, 8], strides = [1, 1]} : vector<2x8xf32> to vector<1x8xf32>
    %375 = vector.extract_strided_slice %293 {offsets = [8, 0], sizes = [8, 8], strides = [1, 1]} : vector<16x32xf32> to vector<8x8xf32>
    %376 = vector.extract_strided_slice %294 {offsets = [8, 0], sizes = [8, 8], strides = [1, 1]} : vector<16x32xf32> to vector<8x8xf32>
    %377 = vector.extract_strided_slice %295 {offsets = [8, 0], sizes = [8, 8], strides = [1, 1]} : vector<16x32xf32> to vector<8x8xf32>
    "tpu.trace_start"() <{level = 10 : i32, message = "qd,kd->qk"}> : () -> ()
    %cst_133 = arith.constant dense<0.000000e+00> : vector<8x8xf32>
    %378 = tpu.matmul %375, %376, %cst_133 {dimension_numbers = #tpu.dot_dimension_numbers<[1], [1], [0], [0], [0, 0, 1, 0], [], []>} : vector<8x8xf32>, vector<8x8xf32>, vector<8x8xf32> -> vector<8x8xf32>
    "tpu.trace_stop"() : () -> ()
    %cst_134 = arith.constant 0.353553385 : f32
    %379 = vector.broadcast %cst_134 : f32 to vector<8x8xf32>
    %380 = arith.mulf %378, %379 : vector<8x8xf32>
    %381 = vector.broadcast %374 : vector<1x8xf32> to vector<8x8xf32>
    %382 = arith.addf %380, %381 : vector<8x8xf32>
    %cst_135 = arith.constant dense<0xFF800000> : vector<8xf32>
    %383 = vector.multi_reduction <maximumf>, %382, %cst_135 [1] : vector<8x8xf32> to vector<8xf32>
    %384 = vector.shape_cast %383 : vector<8xf32> to vector<8x1xf32>
    %385 = vector.broadcast %384 : vector<8x1xf32> to vector<8x8xf32>
    %386 = arith.subf %382, %385 : vector<8x8xf32>
    %387 = math.exp %386 : vector<8x8xf32>
    %cst_136 = arith.constant dense<0.000000e+00> : vector<8xf32>
    %388 = vector.multi_reduction <add>, %387, %cst_136 [1] : vector<8x8xf32> to vector<8xf32>
    %389 = vector.shape_cast %388 : vector<8xf32> to vector<8x1xf32>
    %390 = tpu.reciprocal %389 {approx = true} : vector<8x1xf32> -> vector<8x1xf32>
    %391 = vector.broadcast %390 : vector<8x1xf32> to vector<8x8xf32>
    %392 = arith.mulf %387, %391 : vector<8x8xf32>
    %cst_137 = arith.constant dense<0.000000e+00> : vector<8x8xf32>
    %393 = tpu.matmul %392, %377, %cst_137 {dimension_numbers = #tpu.dot_dimension_numbers<[1], [0], [0], [1], [0, 0, 1, 1], [], []>} : vector<8x8xf32>, vector<8x8xf32>, vector<8x8xf32> -> vector<8x8xf32>
    %394 = vector.extract_strided_slice %293 {offsets = [8, 8], sizes = [8, 8], strides = [1, 1]} : vector<16x32xf32> to vector<8x8xf32>
    %395 = vector.extract_strided_slice %294 {offsets = [8, 8], sizes = [8, 8], strides = [1, 1]} : vector<16x32xf32> to vector<8x8xf32>
    %396 = vector.extract_strided_slice %295 {offsets = [8, 8], sizes = [8, 8], strides = [1, 1]} : vector<16x32xf32> to vector<8x8xf32>
    "tpu.trace_start"() <{level = 10 : i32, message = "qd,kd->qk"}> : () -> ()
    %cst_138 = arith.constant dense<0.000000e+00> : vector<8x8xf32>
    %397 = tpu.matmul %394, %395, %cst_138 {dimension_numbers = #tpu.dot_dimension_numbers<[1], [1], [0], [0], [0, 0, 1, 0], [], []>} : vector<8x8xf32>, vector<8x8xf32>, vector<8x8xf32> -> vector<8x8xf32>
    "tpu.trace_stop"() : () -> ()
    %cst_139 = arith.constant 0.353553385 : f32
    %398 = vector.broadcast %cst_139 : f32 to vector<8x8xf32>
    %399 = arith.mulf %397, %398 : vector<8x8xf32>
    %400 = vector.broadcast %374 : vector<1x8xf32> to vector<8x8xf32>
    %401 = arith.addf %399, %400 : vector<8x8xf32>
    %cst_140 = arith.constant dense<0xFF800000> : vector<8xf32>
    %402 = vector.multi_reduction <maximumf>, %401, %cst_140 [1] : vector<8x8xf32> to vector<8xf32>
    %403 = vector.shape_cast %402 : vector<8xf32> to vector<8x1xf32>
    %404 = vector.broadcast %403 : vector<8x1xf32> to vector<8x8xf32>
    %405 = arith.subf %401, %404 : vector<8x8xf32>
    %406 = math.exp %405 : vector<8x8xf32>
    %cst_141 = arith.constant dense<0.000000e+00> : vector<8xf32>
    %407 = vector.multi_reduction <add>, %406, %cst_141 [1] : vector<8x8xf32> to vector<8xf32>
    %408 = vector.shape_cast %407 : vector<8xf32> to vector<8x1xf32>
    %409 = tpu.reciprocal %408 {approx = true} : vector<8x1xf32> -> vector<8x1xf32>
    %410 = vector.broadcast %409 : vector<8x1xf32> to vector<8x8xf32>
    %411 = arith.mulf %406, %410 : vector<8x8xf32>
    %cst_142 = arith.constant dense<0.000000e+00> : vector<8x8xf32>
    %412 = tpu.matmul %411, %396, %cst_142 {dimension_numbers = #tpu.dot_dimension_numbers<[1], [0], [0], [1], [0, 0, 1, 1], [], []>} : vector<8x8xf32>, vector<8x8xf32>, vector<8x8xf32> -> vector<8x8xf32>
    %413 = vector.extract_strided_slice %293 {offsets = [8, 16], sizes = [8, 8], strides = [1, 1]} : vector<16x32xf32> to vector<8x8xf32>
    %414 = vector.extract_strided_slice %294 {offsets = [8, 16], sizes = [8, 8], strides = [1, 1]} : vector<16x32xf32> to vector<8x8xf32>
    %415 = vector.extract_strided_slice %295 {offsets = [8, 16], sizes = [8, 8], strides = [1, 1]} : vector<16x32xf32> to vector<8x8xf32>
    "tpu.trace_start"() <{level = 10 : i32, message = "qd,kd->qk"}> : () -> ()
    %cst_143 = arith.constant dense<0.000000e+00> : vector<8x8xf32>
    %416 = tpu.matmul %413, %414, %cst_143 {dimension_numbers = #tpu.dot_dimension_numbers<[1], [1], [0], [0], [0, 0, 1, 0], [], []>} : vector<8x8xf32>, vector<8x8xf32>, vector<8x8xf32> -> vector<8x8xf32>
    "tpu.trace_stop"() : () -> ()
    %cst_144 = arith.constant 0.353553385 : f32
    %417 = vector.broadcast %cst_144 : f32 to vector<8x8xf32>
    %418 = arith.mulf %416, %417 : vector<8x8xf32>
    %419 = vector.broadcast %374 : vector<1x8xf32> to vector<8x8xf32>
    %420 = arith.addf %418, %419 : vector<8x8xf32>
    %cst_145 = arith.constant dense<0xFF800000> : vector<8xf32>
    %421 = vector.multi_reduction <maximumf>, %420, %cst_145 [1] : vector<8x8xf32> to vector<8xf32>
    %422 = vector.shape_cast %421 : vector<8xf32> to vector<8x1xf32>
    %423 = vector.broadcast %422 : vector<8x1xf32> to vector<8x8xf32>
    %424 = arith.subf %420, %423 : vector<8x8xf32>
    %425 = math.exp %424 : vector<8x8xf32>
    %cst_146 = arith.constant dense<0.000000e+00> : vector<8xf32>
    %426 = vector.multi_reduction <add>, %425, %cst_146 [1] : vector<8x8xf32> to vector<8xf32>
    %427 = vector.shape_cast %426 : vector<8xf32> to vector<8x1xf32>
    %428 = tpu.reciprocal %427 {approx = true} : vector<8x1xf32> -> vector<8x1xf32>
    %429 = vector.broadcast %428 : vector<8x1xf32> to vector<8x8xf32>
    %430 = arith.mulf %425, %429 : vector<8x8xf32>
    %cst_147 = arith.constant dense<0.000000e+00> : vector<8x8xf32>
    %431 = tpu.matmul %430, %415, %cst_147 {dimension_numbers = #tpu.dot_dimension_numbers<[1], [0], [0], [1], [0, 0, 1, 1], [], []>} : vector<8x8xf32>, vector<8x8xf32>, vector<8x8xf32> -> vector<8x8xf32>
    %432 = vector.extract_strided_slice %293 {offsets = [8, 24], sizes = [8, 8], strides = [1, 1]} : vector<16x32xf32> to vector<8x8xf32>
    %433 = vector.extract_strided_slice %294 {offsets = [8, 24], sizes = [8, 8], strides = [1, 1]} : vector<16x32xf32> to vector<8x8xf32>
    %434 = vector.extract_strided_slice %295 {offsets = [8, 24], sizes = [8, 8], strides = [1, 1]} : vector<16x32xf32> to vector<8x8xf32>
    "tpu.trace_start"() <{level = 10 : i32, message = "qd,kd->qk"}> : () -> ()
    %cst_148 = arith.constant dense<0.000000e+00> : vector<8x8xf32>
    %435 = tpu.matmul %432, %433, %cst_148 {dimension_numbers = #tpu.dot_dimension_numbers<[1], [1], [0], [0], [0, 0, 1, 0], [], []>} : vector<8x8xf32>, vector<8x8xf32>, vector<8x8xf32> -> vector<8x8xf32>
    "tpu.trace_stop"() : () -> ()
    %cst_149 = arith.constant 0.353553385 : f32
    %436 = vector.broadcast %cst_149 : f32 to vector<8x8xf32>
    %437 = arith.mulf %435, %436 : vector<8x8xf32>
    %438 = vector.broadcast %374 : vector<1x8xf32> to vector<8x8xf32>
    %439 = arith.addf %437, %438 : vector<8x8xf32>
    %cst_150 = arith.constant dense<0xFF800000> : vector<8xf32>
    %440 = vector.multi_reduction <maximumf>, %439, %cst_150 [1] : vector<8x8xf32> to vector<8xf32>
    %441 = vector.shape_cast %440 : vector<8xf32> to vector<8x1xf32>
    %442 = vector.broadcast %441 : vector<8x1xf32> to vector<8x8xf32>
    %443 = arith.subf %439, %442 : vector<8x8xf32>
    %444 = math.exp %443 : vector<8x8xf32>
    %cst_151 = arith.constant dense<0.000000e+00> : vector<8xf32>
    %445 = vector.multi_reduction <add>, %444, %cst_151 [1] : vector<8x8xf32> to vector<8xf32>
    %446 = vector.shape_cast %445 : vector<8xf32> to vector<8x1xf32>
    %447 = tpu.reciprocal %446 {approx = true} : vector<8x1xf32> -> vector<8x1xf32>
    %448 = vector.broadcast %447 : vector<8x1xf32> to vector<8x8xf32>
    %449 = arith.mulf %444, %448 : vector<8x8xf32>
    %cst_152 = arith.constant dense<0.000000e+00> : vector<8x8xf32>
    %450 = tpu.matmul %449, %434, %cst_152 {dimension_numbers = #tpu.dot_dimension_numbers<[1], [0], [0], [1], [0, 0, 1, 1], [], []>} : vector<8x8xf32>, vector<8x8xf32>, vector<8x8xf32> -> vector<8x8xf32>
    %451 = tpu.concatenate %393, %412, %431, %450 in 1 : vector<8x8xf32>, vector<8x8xf32>, vector<8x8xf32>, vector<8x8xf32> -> vector<8x32xf32>
    %452 = tpu.concatenate %373, %451 in 0 : vector<8x32xf32>, vector<8x32xf32> -> vector<16x32xf32>
    %c1_153 = arith.constant 1 : index
    %c0_154 = arith.constant 0 : index
    %c0_155 = arith.constant 0 : index
    %453 = vector.load %arg6[%c1_153, %c0_154, %c0_155] : memref<2x32x32xf32, #tpu.memory_space<vmem>>, vector<1x32x32xf32>
    %454 = vector.shape_cast %453 : vector<1x32x32xf32> to vector<32x32xf32>
    %cst_156 = arith.constant dense<0.000000e+00> : vector<16x32xf32>
    %455 = tpu.matmul %452, %454, %cst_156 {dimension_numbers = #tpu.dot_dimension_numbers<[1], [0], [0], [1], [0, 0, 1, 1], [], []>} : vector<16x32xf32>, vector<32x32xf32>, vector<16x32xf32> -> vector<16x32xf32>
    %c1_157 = arith.constant 1 : index
    %c0_158 = arith.constant 0 : index
    %c0_159 = arith.constant 0 : index
    %456 = vector.load %arg7[%c1_157, %c0_158, %c0_159] : memref<2x1x32xf32, #tpu.memory_space<vmem>>, vector<1x1x32xf32>
    %457 = vector.shape_cast %456 : vector<1x1x32xf32> to vector<1x32xf32>
    %458 = vector.broadcast %457 : vector<1x32xf32> to vector<16x32xf32>
    %459 = arith.addf %455, %458 : vector<16x32xf32>
    %460 = arith.addf %459, %285 : vector<16x32xf32>
    %c1_160 = arith.constant 1 : index
    %c0_161 = arith.constant 0 : index
    %c0_162 = arith.constant 0 : index
    %461 = vector.load %arg8[%c1_160, %c0_161, %c0_162] : memref<2x1x32xf32, #tpu.memory_space<vmem>>, vector<1x1x32xf32>
    %462 = vector.shape_cast %461 : vector<1x1x32xf32> to vector<1x32xf32>
    %c1_163 = arith.constant 1 : index
    %c0_164 = arith.constant 0 : index
    %c0_165 = arith.constant 0 : index
    %463 = vector.load %arg9[%c1_163, %c0_164, %c0_165] : memref<2x1x32xf32, #tpu.memory_space<vmem>>, vector<1x1x32xf32>
    %464 = vector.shape_cast %463 : vector<1x1x32xf32> to vector<1x32xf32>
    %cst_166 = arith.constant dense<0.000000e+00> : vector<16xf32>
    %465 = vector.multi_reduction <add>, %460, %cst_166 [1] : vector<16x32xf32> to vector<16xf32>
    %466 = vector.shape_cast %465 : vector<16xf32> to vector<16x1xf32>
    %cst_167 = arith.constant 3.200000e+01 : f32
    %467 = vector.broadcast %cst_167 : f32 to vector<16x1xf32>
    %468 = arith.divf %466, %467 : vector<16x1xf32>
    %469 = vector.broadcast %468 : vector<16x1xf32> to vector<16x32xf32>
    %470 = arith.subf %460, %469 : vector<16x32xf32>
    %471 = arith.mulf %470, %470 : vector<16x32xf32>
    %cst_168 = arith.constant dense<0.000000e+00> : vector<16xf32>
    %472 = vector.multi_reduction <add>, %471, %cst_168 [1] : vector<16x32xf32> to vector<16xf32>
    %473 = vector.shape_cast %472 : vector<16xf32> to vector<16x1xf32>
    %cst_169 = arith.constant 3.200000e+01 : f32
    %474 = vector.broadcast %cst_169 : f32 to vector<16x1xf32>
    %475 = arith.divf %473, %474 : vector<16x1xf32>
    %476 = vector.broadcast %468 : vector<16x1xf32> to vector<16x32xf32>
    %477 = arith.subf %460, %476 : vector<16x32xf32>
    %cst_170 = arith.constant 9.99999996E-13 : f32
    %478 = vector.broadcast %cst_170 : f32 to vector<16x1xf32>
    %479 = arith.addf %475, %478 : vector<16x1xf32>
    %480 = math.rsqrt %479 : vector<16x1xf32>
    %481 = vector.broadcast %480 : vector<16x1xf32> to vector<16x32xf32>
    %482 = arith.mulf %477, %481 : vector<16x32xf32>
    %483 = vector.broadcast %462 : vector<1x32xf32> to vector<16x32xf32>
    %484 = arith.mulf %482, %483 : vector<16x32xf32>
    %485 = vector.broadcast %464 : vector<1x32xf32> to vector<16x32xf32>
    %486 = arith.addf %484, %485 : vector<16x32xf32>
    %c1_171 = arith.constant 1 : index
    %c0_172 = arith.constant 0 : index
    %c0_173 = arith.constant 0 : index
    %487 = vector.load %arg10[%c1_171, %c0_172, %c0_173] : memref<2x32x64xf32, #tpu.memory_space<vmem>>, vector<1x32x64xf32>
    %488 = vector.shape_cast %487 : vector<1x32x64xf32> to vector<32x64xf32>
    %cst_174 = arith.constant dense<0.000000e+00> : vector<16x64xf32>
    %489 = tpu.matmul %486, %488, %cst_174 {dimension_numbers = #tpu.dot_dimension_numbers<[1], [0], [0], [1], [0, 0, 1, 1], [], []>} : vector<16x32xf32>, vector<32x64xf32>, vector<16x64xf32> -> vector<16x64xf32>
    %c1_175 = arith.constant 1 : index
    %c0_176 = arith.constant 0 : index
    %c0_177 = arith.constant 0 : index
    %490 = vector.load %arg11[%c1_175, %c0_176, %c0_177] : memref<2x1x64xf32, #tpu.memory_space<vmem>>, vector<1x1x64xf32>
    %491 = vector.shape_cast %490 : vector<1x1x64xf32> to vector<1x64xf32>
    %492 = vector.broadcast %491 : vector<1x64xf32> to vector<16x64xf32>
    %493 = arith.addf %489, %492 : vector<16x64xf32>
    %cst_178 = arith.constant 5.000000e-01 : f32
    %494 = vector.broadcast %cst_178 : f32 to vector<16x64xf32>
    %495 = arith.mulf %494, %493 : vector<16x64xf32>
    %cst_179 = arith.constant 4.471500e-02 : f32
    %496 = vector.broadcast %cst_179 : f32 to vector<16x64xf32>
    %497 = arith.mulf %496, %493 : vector<16x64xf32>
    %498 = arith.mulf %497, %493 : vector<16x64xf32>
    %499 = arith.mulf %498, %493 : vector<16x64xf32>
    %500 = arith.addf %493, %499 : vector<16x64xf32>
    %cst_180 = arith.constant 0.797884583 : f32
    %501 = vector.broadcast %cst_180 : f32 to vector<16x64xf32>
    %502 = arith.mulf %501, %500 : vector<16x64xf32>
    %503 = math.tanh %502 : vector<16x64xf32>
    %cst_181 = arith.constant 1.000000e+00 : f32
    %504 = vector.broadcast %cst_181 : f32 to vector<16x64xf32>
    %505 = arith.addf %504, %503 : vector<16x64xf32>
    %506 = arith.mulf %495, %505 : vector<16x64xf32>
    %c1_182 = arith.constant 1 : index
    %c0_183 = arith.constant 0 : index
    %c0_184 = arith.constant 0 : index
    %507 = vector.load %arg12[%c1_182, %c0_183, %c0_184] : memref<2x64x32xf32, #tpu.memory_space<vmem>>, vector<1x64x32xf32>
    %508 = vector.shape_cast %507 : vector<1x64x32xf32> to vector<64x32xf32>
    %cst_185 = arith.constant dense<0.000000e+00> : vector<16x32xf32>
    %509 = tpu.matmul %506, %508, %cst_185 {dimension_numbers = #tpu.dot_dimension_numbers<[1], [0], [0], [1], [0, 0, 1, 1], [], []>} : vector<16x64xf32>, vector<64x32xf32>, vector<16x32xf32> -> vector<16x32xf32>
    %c1_186 = arith.constant 1 : index
    %c0_187 = arith.constant 0 : index
    %c0_188 = arith.constant 0 : index
    %510 = vector.load %arg13[%c1_186, %c0_187, %c0_188] : memref<2x1x32xf32, #tpu.memory_space<vmem>>, vector<1x1x32xf32>
    %511 = vector.shape_cast %510 : vector<1x1x32xf32> to vector<1x32xf32>
    %512 = vector.broadcast %511 : vector<1x32xf32> to vector<16x32xf32>
    %513 = arith.addf %509, %512 : vector<16x32xf32>
    %514 = arith.addf %513, %486 : vector<16x32xf32>
    %c1_189 = arith.constant 1 : index
    %c0_190 = arith.constant 0 : index
    %c0_191 = arith.constant 0 : index
    %515 = vector.load %arg14[%c1_189, %c0_190, %c0_191] : memref<2x1x32xf32, #tpu.memory_space<vmem>>, vector<1x1x32xf32>
    %516 = vector.shape_cast %515 : vector<1x1x32xf32> to vector<1x32xf32>
    %c1_192 = arith.constant 1 : index
    %c0_193 = arith.constant 0 : index
    %c0_194 = arith.constant 0 : index
    %517 = vector.load %arg15[%c1_192, %c0_193, %c0_194] : memref<2x1x32xf32, #tpu.memory_space<vmem>>, vector<1x1x32xf32>
    %518 = vector.shape_cast %517 : vector<1x1x32xf32> to vector<1x32xf32>
    %cst_195 = arith.constant dense<0.000000e+00> : vector<16xf32>
    %519 = vector.multi_reduction <add>, %514, %cst_195 [1] : vector<16x32xf32> to vector<16xf32>
    %520 = vector.shape_cast %519 : vector<16xf32> to vector<16x1xf32>
    %cst_196 = arith.constant 3.200000e+01 : f32
    %521 = vector.broadcast %cst_196 : f32 to vector<16x1xf32>
    %522 = arith.divf %520, %521 : vector<16x1xf32>
    %523 = vector.broadcast %522 : vector<16x1xf32> to vector<16x32xf32>
    %524 = arith.subf %514, %523 : vector<16x32xf32>
    %525 = arith.mulf %524, %524 : vector<16x32xf32>
    %cst_197 = arith.constant dense<0.000000e+00> : vector<16xf32>
    %526 = vector.multi_reduction <add>, %525, %cst_197 [1] : vector<16x32xf32> to vector<16xf32>
    %527 = vector.shape_cast %526 : vector<16xf32> to vector<16x1xf32>
    %cst_198 = arith.constant 3.200000e+01 : f32
    %528 = vector.broadcast %cst_198 : f32 to vector<16x1xf32>
    %529 = arith.divf %527, %528 : vector<16x1xf32>
    %530 = vector.broadcast %522 : vector<16x1xf32> to vector<16x32xf32>
    %531 = arith.subf %514, %530 : vector<16x32xf32>
    %cst_199 = arith.constant 9.99999996E-13 : f32
    %532 = vector.broadcast %cst_199 : f32 to vector<16x1xf32>
    %533 = arith.addf %529, %532 : vector<16x1xf32>
    %534 = math.rsqrt %533 : vector<16x1xf32>
    %535 = vector.broadcast %534 : vector<16x1xf32> to vector<16x32xf32>
    %536 = arith.mulf %531, %535 : vector<16x32xf32>
    %537 = vector.broadcast %516 : vector<1x32xf32> to vector<16x32xf32>
    %538 = arith.mulf %536, %537 : vector<16x32xf32>
    %539 = vector.broadcast %518 : vector<1x32xf32> to vector<16x32xf32>
    %540 = arith.addf %538, %539 : vector<16x32xf32>
    %541 = vector.extract_strided_slice %540 {offsets = [0, 0], sizes = [1, 32], strides = [1, 1]} : vector<16x32xf32> to vector<1x32xf32>
    %542 = vector.extract_strided_slice %540 {offsets = [8, 0], sizes = [1, 32], strides = [1, 1]} : vector<16x32xf32> to vector<1x32xf32>
    %543 = tpu.concatenate %541, %542 in 0 : vector<1x32xf32>, vector<1x32xf32> -> vector<2x32xf32>
    %c0_200 = arith.constant 0 : index
    %c0_201 = arith.constant 0 : index
    %544 = vector.load %arg16[%c0_200, %c0_201] : memref<32x128xf32, #tpu.memory_space<vmem>>, vector<32x128xf32>
    %cst_202 = arith.constant dense<0.000000e+00> : vector<2x128xf32>
    %545 = tpu.matmul %543, %544, %cst_202 {dimension_numbers = #tpu.dot_dimension_numbers<[1], [0], [0], [1], [0, 0, 1, 1], [], []>} : vector<2x32xf32>, vector<32x128xf32>, vector<2x128xf32> -> vector<2x128xf32>
    %c0_203 = arith.constant 0 : index
    %c0_204 = arith.constant 0 : index
    %546 = vector.load %arg17[%c0_203, %c0_204] : memref<1x128xf32, #tpu.memory_space<vmem>>, vector<1x128xf32>
    %547 = vector.broadcast %546 : vector<1x128xf32> to vector<2x128xf32>
    %548 = arith.addf %545, %547 : vector<2x128xf32>
    %cst_205 = arith.constant dense<0xFF800000> : vector<2xf32>
    %549 = vector.multi_reduction <maximumf>, %548, %cst_205 [1] : vector<2x128xf32> to vector<2xf32>
    %550 = vector.shape_cast %549 : vector<2xf32> to vector<2x1xf32>
    %551 = vector.broadcast %550 : vector<2x1xf32> to vector<2x128xf32>
    %552 = arith.subf %548, %551 : vector<2x128xf32>
    %553 = math.exp %552 : vector<2x128xf32>
    %cst_206 = arith.constant dense<0.000000e+00> : vector<2xf32>
    %554 = vector.multi_reduction <add>, %553, %cst_206 [1] : vector<2x128xf32> to vector<2xf32>
    %555 = vector.shape_cast %554 : vector<2xf32> to vector<2x1xf32>
    %556 = vector.broadcast %555 : vector<2x1xf32> to vector<2x128xf32>
    %557 = arith.divf %553, %556 : vector<2x128xf32>
    %c0_207 = arith.constant 0 : index
    %c0_208 = arith.constant 0 : index
    %558 = vector.load %arg18[%c0_207, %c0_208] : memref<2x128xf32, #tpu.memory_space<vmem>>, vector<2x128xf32>
    tpu.vector_store %arg18[%c0_207, %c0_208], %557 {strides = array<i32>} : memref<2x128xf32, #tpu.memory_space<vmem>>, vector<2x128xf32>,
    return
  }
}

</mosaic_0001>

<llo_original>
// kernel: substrate_classifier_forward.1
$region0: #{substrate_classifier_forward.1}
  #allocation0 [shape = 'u32[]', space=smem, size = 0x4, offset = 0x4, fixed_abs, tag = 'smem constant byte address 0x4 - core index']
  #allocation1 [shape = 'u32[144,128]{1,0:T(1,128)}', space=vmem, size = 0x12000, scoped, tag = 'internal scratch']
  %s0 = inlined_call_operand.vmem [shape: f32[16,32], index: 0, kind: input, shape index: {}]
  %s1 = inlined_call_operand.vmem [shape: s32[2,8], index: 1, kind: input, shape index: {}]
  %s2 = inlined_call_operand.vmem [shape: f32[1,32], index: 2, kind: input, shape index: {}]
  %s3 = inlined_call_operand.vmem [shape: f32[1,32], index: 3, kind: input, shape index: {}]
  %s4 = inlined_call_operand.vmem [shape: f32[2,32,96], index: 4, kind: input, shape index: {}]
  %s5 = inlined_call_operand.vmem [shape: f32[2,1,96], index: 5, kind: input, shape index: {}]
  %s6 = inlined_call_operand.vmem [shape: f32[2,32,32], index: 6, kind: input, shape index: {}]
  %s7 = inlined_call_operand.vmem [shape: f32[2,1,32], index: 7, kind: input, shape index: {}]
  %s8 = inlined_call_operand.vmem [shape: f32[2,1,32], index: 8, kind: input, shape index: {}]
  %s9 = inlined_call_operand.vmem [shape: f32[2,1,32], index: 9, kind: input, shape index: {}]
  %s10 = inlined_call_operand.vmem [shape: f32[2,32,64], index: 10, kind: input, shape index: {}]
  %s11 = inlined_call_operand.vmem [shape: f32[2,1,64], index: 11, kind: input, shape index: {}]
  %s12 = inlined_call_operand.vmem [shape: f32[2,64,32], index: 12, kind: input, shape index: {}]
  %s13 = inlined_call_operand.vmem [shape: f32[2,1,32], index: 13, kind: input, shape index: {}]
  %s14 = inlined_call_operand.vmem [shape: f32[2,1,32], index: 14, kind: input, shape index: {}]
  %s15 = inlined_call_operand.vmem [shape: f32[2,1,32], index: 15, kind: input, shape index: {}]
  %s16 = inlined_call_operand.vmem [shape: f32[32,128], index: 16, kind: input, shape index: {}]
  %s17 = inlined_call_operand.vmem [shape: f32[1,128], index: 17, kind: input, shape index: {}]
  %s18 = inlined_call_operand.hbm [shape: f32[2,128], index: 18, kind: output, shape index: {}]
  %s19 = sld [smem:[#allocation0]]
  $region82: #{substrate_classifier_forward.1} parent=0
    _
  %s21 = ssub.s32 1, %s19
  %s22 = scalar_select 0, %s21, %s19
  $region1: #{substrate_classifier_forward.1} parent=0
    #allocation2 [shape = 'u8[1024]{0}', space=vmem, size = 0x400, scoped, tag = 'output window, operand 0, single buffered']
    #allocation3 [shape = 's32[1]{0}', space=sflag, size = 0x4, scoped, tag = 'scoped memory for substrate_classifier_forward.1']
    %23 = vsyncpa [#allocation3], 0
    // Predicated region
    $region2: #{substrate_classifier_forward.1} parent=1 // pred_check
      _
    $region3: #{substrate_classifier_forward.1} parent=1 // pred_check_branch
      %25 = sbr.rel (0) target = $region5
    $region4: #{substrate_classifier_forward.1} parent=1 // pred_region
      _
    $region5: #{substrate_classifier_forward.1} parent=1 // pred_fallthru
      _
    // Predicated region
    $region6: #{substrate_classifier_forward.1} parent=1 // pred_check
      _
    $region7: #{substrate_classifier_forward.1} parent=1 // pred_check_branch
      %27 = sbr.rel (0) target = $region9
    $region8: #{substrate_classifier_forward.1} parent=1 // pred_region
      _
    $region9: #{substrate_classifier_forward.1} parent=1 // pred_fallthru
      _
    // Predicated region
    $region10: #{substrate_classifier_forward.1} parent=1 // pred_check
      _
    $region11: #{substrate_classifier_forward.1} parent=1 // pred_check_branch
      %29 = sbr.rel (0) target = $region13
    $region12: #{substrate_classifier_forward.1} parent=1 // pred_region
      _
    $region13: #{substrate_classifier_forward.1} parent=1 // pred_fallthru
      _
    // Predicated region
    $region14: #{substrate_classifier_forward.1} parent=1 // pred_check
      _
    $region15: #{substrate_classifier_forward.1} parent=1 // pred_check_branch
      %31 = sbr.rel (0) target = $region17
    $region16: #{substrate_classifier_forward.1} parent=1 // pred_region
      _
    $region17: #{substrate_classifier_forward.1} parent=1 // pred_fallthru
      _
    // Predicated region
    $region18: #{substrate_classifier_forward.1} parent=1 // pred_check
      _
    $region19: #{substrate_classifier_forward.1} parent=1 // pred_check_branch
      %33 = sbr.rel (0) target = $region21
    $region20: #{substrate_classifier_forward.1} parent=1 // pred_region
      _
    $region21: #{substrate_classifier_forward.1} parent=1 // pred_fallthru
      _
    // Predicated region
    $region22: #{substrate_classifier_forward.1} parent=1 // pred_check
      _
    $region23: #{substrate_classifier_forward.1} parent=1 // pred_check_branch
      %35 = sbr.rel (0) target = $region25
    $region24: #{substrate_classifier_forward.1} parent=1 // pred_region
      _
    $region25: #{substrate_classifier_forward.1} parent=1 // pred_fallthru
      _
    // Predicated region
    $region26: #{substrate_classifier_forward.1} parent=1 // pred_check
      _
    $region27: #{substrate_classifier_forward.1} parent=1 // pred_check_branch
      %37 = sbr.rel (0) target = $region29
    $region28: #{substrate_classifier_forward.1} parent=1 // pred_region
      _
    $region29: #{substrate_classifier_forward.1} parent=1 // pred_fallthru
      _
    // Predicated region
    $region30: #{substrate_classifier_forward.1} parent=1 // pred_check
      _
    $region31: #{substrate_classifier_forward.1} parent=1 // pred_check_branch
      %39 = sbr.rel (0) target = $region33
    $region32: #{substrate_classifier_forward.1} parent=1 // pred_region
      _
    $region33: #{substrate_classifier_forward.1} parent=1 // pred_fallthru
      _
    // Predicated region
    $region34: #{substrate_classifier_forward.1} parent=1 // pred_check
      _
    $region35: #{substrate_classifier_forward.1} parent=1 // pred_check_branch
      %41 = sbr.rel (0) target = $region37
    $region36: #{substrate_classifier_forward.1} parent=1 // pred_region
      _
    $region37: #{substrate_classifier_forward.1} parent=1 // pred_fallthru
      _
    // Predicated region
    $region38: #{substrate_classifier_forward.1} parent=1 // pred_check
      _
    $region39: #{substrate_classifier_forward.1} parent=1 // pred_check_branch
      %43 = sbr.rel (0) target = $region41
    $region40: #{substrate_classifier_forward.1} parent=1 // pred_region
      _
    $region41: #{substrate_classifier_forward.1} parent=1 // pred_fallthru
      _
    // Predicated region
    $region42: #{substrate_classifier_forward.1} parent=1 // pred_check
      _
    $region43: #{substrate_classifier_forward.1} parent=1 // pred_check_branch
      %45 = sbr.rel (0) target = $region45
    $region44: #{substrate_classifier_forward.1} parent=1 // pred_region
      _
    $region45: #{substrate_classifier_forward.1} parent=1 // pred_fallthru
      _
    // Predicated region
    $region46: #{substrate_classifier_forward.1} parent=1 // pred_check
      _
    $region47: #{substrate_classifier_forward.1} parent=1 // pred_check_branch
      %47 = sbr.rel (0) target = $region49
    $region48: #{substrate_classifier_forward.1} parent=1 // pred_region
      _
    $region49: #{substrate_classifier_forward.1} parent=1 // pred_fallthru
      _
    // Predicated region
    $region50: #{substrate_classifier_forward.1} parent=1 // pred_check
      _
    $region51: #{substrate_classifier_forward.1} parent=1 // pred_check_branch
      %49 = sbr.rel (0) target = $region53
    $region52: #{substrate_classifier_forward.1} parent=1 // pred_region
      _
    $region53: #{substrate_classifier_forward.1} parent=1 // pred_fallthru
      _
    // Predicated region
    $region54: #{substrate_classifier_forward.1} parent=1 // pred_check
      _
    $region55: #{substrate_classifier_forward.1} parent=1 // pred_check_branch
      %51 = sbr.rel (0) target = $region57
    $region56: #{substrate_classifier_forward.1} parent=1 // pred_region
      _
    $region57: #{substrate_classifier_forward.1} parent=1 // pred_fallthru
      _
    // Predicated region
    $region58: #{substrate_classifier_forward.1} parent=1 // pred_check
      _
    $region59: #{substrate_classifier_forward.1} parent=1 // pred_check_branch
      %53 = sbr.rel (0) target = $region61
    $region60: #{substrate_classifier_forward.1} parent=1 // pred_region
      _
    $region61: #{substrate_classifier_forward.1} parent=1 // pred_fallthru
      _
    // Predicated region
    $region62: #{substrate_classifier_forward.1} parent=1 // pred_check
      _
    $region63: #{substrate_classifier_forward.1} parent=1 // pred_check_branch
      %55 = sbr.rel (0) target = $region65
    $region64: #{substrate_classifier_forward.1} parent=1 // pred_region
      _
    $region65: #{substrate_classifier_forward.1} parent=1 // pred_fallthru
      _
    // Predicated region
    $region66: #{substrate_classifier_forward.1} parent=1 // pred_check
      _
    $region67: #{substrate_classifier_forward.1} parent=1 // pred_check_branch
      %57 = sbr.rel (0) target = $region69
    $region68: #{substrate_classifier_forward.1} parent=1 // pred_region
      _
    $region69: #{substrate_classifier_forward.1} parent=1 // pred_fallthru
      _
    // Predicated region
    $region70: #{substrate_classifier_forward.1} parent=1 // pred_check
      _
    $region71: #{substrate_classifier_forward.1} parent=1 // pred_check_branch
      %59 = sbr.rel (0) target = $region73
    $region72: #{substrate_classifier_forward.1} parent=1 // pred_region
      _
    $region73: #{substrate_classifier_forward.1} parent=1 // pred_fallthru
      _
    %v60 = vld [vmem:[%s1] sm:$0x3]
    %v61 = vcvt.s32.f32 %v60
    %v62 = vsub.f32 1.0, %v61
    %v63 = vmul.f32 %v62, -1e+09
    %v64 = vld [vmem:[%s0] sm:$0xff]
    %v65 = vld [vmem:[%s0 + $0x8] sm:$0xff]
    %v66 = vld [vmem:[%s2] sm:$0x1]
    %v67 = vld [vmem:[%s3] sm:$0x1]
    %vm68 = vcmask 261120
    %v69 = vsel %vm68, %v64, 0.0
    %70 = vadd.xlane.f32.xlu0 %v69
    %v71 = vpop.xlane.xlu0 %70
    %v72 = vsel %vm68, %v65, 0.0
    %73 = vadd.xlane.f32.xlu0 %v72
    %v74 = vpop.xlane.xlu0 %73
    %v75 = vrcp.pop 32.0
    %v76 = vmul.f32 %v71, %v75
    %v77 = vmul.f32 %v74, %v75
    %v78 = vsub.f32 %v64, %v76
    %v79 = vsub.f32 %v65, %v77
    %v80 = vmul.f32 %v78, %v78
    %v81 = vmul.f32 %v79, %v79
    %v82 = vsel %vm68, %v80, 0.0
    %83 = vadd.xlane.f32.xlu0 %v82
    %v84 = vpop.xlane.xlu0 %83
    %v85 = vsel %vm68, %v81, 0.0
    %86 = vadd.xlane.f32.xlu0 %v85
    %v87 = vpop.xlane.xlu0 %86
    %v88 = vmul.f32 %v84, %v75
    %v89 = vmul.f32 %v87, %v75
    %v90 = vadd.f32 %v88, 1e-12
    %v91 = vadd.f32 %v89, 1e-12
    %v92 = vrsqrt.pop %v90
    %v93 = vrsqrt.pop %v91
    %v94 = vmul.f32 %v78, %v92
    %v95 = vmul.f32 %v79, %v93
    %v97 = vlaneseq
    %v98 = vshrl.u32 %v97, 7
    %v99 = vsub.s32 0, %v98
    %v100 = vrot.slane %v66, %v99
    %v102 = vmul.f32 %v94, %v100
    %v103 = vmul.f32 %v95, %v100
    %v105 = vlaneseq
    %v106 = vshrl.u32 %v105, 7
    %v107 = vsub.s32 0, %v106
    %v108 = vrot.slane %v67, %v107
    %v110 = vadd.f32 %v102, %v108
    %v111 = vadd.f32 %v103, %v108
    %v112 = vld [vmem:[%s4] sm:$0xff]
    %v113 = vld [vmem:[%s4 + $0x8] sm:$0xff]
    %v114 = vld [vmem:[%s4 + $0x10] sm:$0xff]
    %v115 = vld [vmem:[%s4 + $0x18] sm:$0xff]
    %v116 = vld [vmem:[%s5] sm:$0x1]
    %v118 = vlaneseq
    %v119 = vshrl.u32 %v118, 7
    %v120 = vsub.s32 0, %v119
    %v121 = vrot.slane %v116, %v120
    %v124 = vsel %vm68, %v110, 0
    %v127 = vsel %vm68, %v111, 0
    %129 = vmatprep.subr.mxu0 0.0
    %130 = vmatpush1.msra.mxu0 %v112
    %131 = vmatprep.subr.mxu0 0.0
    %132 = vmatpush1.msra.mxu0 %v113
    %133 = vmatprep.subr.mxu0 0.0
    %134 = vmatpush1.msra.mxu0 %v114
    %135 = vmatprep.subr.mxu0 0.0
    %136 = vmatpush1.msra.mxu0 %v115
    %137 = vmatprep.subr.mxu0 0.0
    %138 = vmatpush1.msra.mxu0 0.0
    %139 = vmatprep.subr.mxu0 0.0
    %140 = vmatpush1.msra.mxu0 0.0
    %141 = vmatprep.subr.mxu0 0.0
    %142 = vmatpush1.msra.mxu0 0.0
    %143 = vmatprep.subr.mxu0 0.0
    %144 = vmatpush1.msra.mxu0 0.0
    %145 = vmatprep.subr.mxu0 0.0
    %146 = vmatpush1.msra.mxu0 0.0
    %147 = vmatprep.subr.mxu0 0.0
    %148 = vmatpush1.msra.mxu0 0.0
    %149 = vmatprep.subr.mxu0 0.0
    %150 = vmatpush1.msra.mxu0 0.0
    %151 = vmatprep.subr.mxu0 0.0
    %152 = vmatpush1.msra.mxu0 0.0
    %153 = vmatprep.subr.mxu0 0.0
    %154 = vmatpush1.msra.mxu0 0.0
    %155 = vmatprep.subr.mxu0 0.0
    %156 = vmatpush1.msra.mxu0 0.0
    %157 = vmatprep.subr.mxu0 0.0
    %158 = vmatpush1.msra.mxu0 0.0
    %159 = vmatprep.subr.mxu0 0.0
    %160 = vmatpush1.msra.mxu0 0.0
    %161 = vmatprep.subr.mxu0 0.0
    %162 = vmatpush1.msra.mxu0 0.0
    %163 = vmatprep.subr.mxu0 0.0
    %164 = vmatpush1.msra.mxu0 0.0
    %165 = vmatprep.subr.mxu0 0.0
    %166 = vmatpush1.msra.mxu0 0.0
    %167 = vmatprep.subr.mxu0 0.0
    %168 = vmatpush1.msra.mxu0 0.0
    %169 = vmatprep.subr.mxu0 0.0
    %170 = vmatpush1.msra.mxu0 0.0
    %171 = vmatprep.subr.mxu0 0.0
    %172 = vmatpush1.msra.mxu0 0.0
    %173 = vmatprep.subr.mxu0 0.0
    %174 = vmatpush1.msra.mxu0 0.0
    %175 = vmatprep.subr.mxu0 0.0
    %176 = vmatpush1.msra.mxu0 0.0
    %177 = vmatprep.subr.mxu0 0.0
    %178 = vmatpush1.msra.mxu0 0.0
    %179 = vmatprep.subr.mxu0 0.0
    %180 = vmatpush1.msra.mxu0 0.0
    %181 = vmatprep.subr.mxu0 0.0
    %182 = vmatpush1.msra.mxu0 0.0
    %183 = vmatprep.subr.mxu0 0.0
    %184 = vmatpush1.msra.mxu0 0.0
    %185 = vmatprep.subr.mxu0 0.0
    %186 = vmatpush1.msra.mxu0 0.0
    %187 = vmatprep.subr.mxu0 0.0
    %188 = vmatpush1.msra.mxu0 0.0
    %189 = vmatprep.subr.mxu0 0.0
    %190 = vmatpush1.msra.mxu0 0.0
    %191 = vmatprep.subr.mxu0 0.0
    %192 = vmatpush1.msra.mxu0 0.0
    %193 = vmatprep.mubr.f32.mxu0 0.0
    %194 = vmatmul.mubr.f32.gmra.mrb[0].mxu0 %v124
    %v195 = vpop.f32.mrb[0].mxu0
    %v196 = vadd.f32 %v121, %v195
    %v197 = vpop.f32.mrb[0].mxu0
    %198 = vmatprep.mubr.f32.mxu0 0.0
    %199 = vmatmul.mubr.f32.gmra.mrb[0].mxu0 %v127
    %v200 = vpop.f32.mrb[0].mxu0
    %v201 = vadd.f32 %v121, %v200
    %v202 = vpop.f32.mrb[0].mxu0
    %203 = vdwg.mxu0
    %205 = vrot.lane.b32.xlu0 %v196, 96
    %v206 = vpop.permute.xlu0 %205
    %vm207 = vcmask 64512
    %v208 = vsel %vm207, %v196, 0
    %v210 = vsel %vm207, %v206, 0
    %212 = vmatprep.subr.mxu0 0.0
    %213 = vmatpush1.xpose.msra.mxu0 %v210
    %214 = vmatprep.subr.mxu0 0.0
    %215 = vmatpush1.xpose.msra.mxu0 0.0
    %216 = vmatprep.subr.mxu0 0.0
    %217 = vmatpush1.xpose.msra.mxu0 0.0
    %218 = vmatprep.subr.mxu0 0.0
    %219 = vmatpush1.xpose.msra.mxu0 0.0
    %220 = vmatprep.subr.mxu0 0.0
    %221 = vmatpush1.xpose.msra.mxu0 0.0
    %222 = vmatprep.subr.mxu0 0.0
    %223 = vmatpush1.xpose.msra.mxu0 0.0
    %224 = vmatprep.subr.mxu0 0.0
    %225 = vmatpush1.xpose.msra.mxu0 0.0
    %226 = vmatprep.subr.mxu0 0.0
    %227 = vmatpush1.xpose.msra.mxu0 0.0
    %228 = vmatprep.subr.mxu0 0.0
    %229 = vmatpush1.xpose.msra.mxu0 0.0
    %230 = vmatprep.subr.mxu0 0.0
    %231 = vmatpush1.xpose.msra.mxu0 0.0
    %232 = vmatprep.subr.mxu0 0.0
    %233 = vmatpush1.xpose.msra.mxu0 0.0
    %234 = vmatprep.subr.mxu0 0.0
    %235 = vmatpush1.xpose.msra.mxu0 0.0
    %236 = vmatprep.subr.mxu0 0.0
    %237 = vmatpush1.xpose.msra.mxu0 0.0
    %238 = vmatprep.subr.mxu0 0.0
    %239 = vmatpush1.xpose.msra.mxu0 0.0
    %240 = vmatprep.subr.mxu0 0.0
    %241 = vmatpush1.xpose.msra.mxu0 0.0
    %242 = vmatprep.subr.mxu0 0.0
    %243 = vmatpush1.xpose.msra.mxu0 0.0
    %244 = vmatprep.subr.mxu0 0.0
    %245 = vmatpush1.xpose.msra.mxu0 0.0
    %246 = vmatprep.subr.mxu0 0.0
    %247 = vmatpush1.xpose.msra.mxu0 0.0
    %248 = vmatprep.subr.mxu0 0.0
    %249 = vmatpush1.xpose.msra.mxu0 0.0
    %250 = vmatprep.subr.mxu0 0.0
    %251 = vmatpush1.xpose.msra.mxu0 0.0
    %252 = vmatprep.subr.mxu0 0.0
    %253 = vmatpush1.xpose.msra.mxu0 0.0
    %254 = vmatprep.subr.mxu0 0.0
    %255 = vmatpush1.xpose.msra.mxu0 0.0
    %256 = vmatprep.subr.mxu0 0.0
    %257 = vmatpush1.xpose.msra.mxu0 0.0
    %258 = vmatprep.subr.mxu0 0.0
    %259 = vmatpush1.xpose.msra.mxu0 0.0
    %260 = vmatprep.subr.mxu0 0.0
    %261 = vmatpush1.xpose.msra.mxu0 0.0
    %262 = vmatprep.subr.mxu0 0.0
    %263 = vmatpush1.xpose.msra.mxu0 0.0
    %264 = vmatprep.subr.mxu0 0.0
    %265 = vmatpush1.xpose.msra.mxu0 0.0
    %266 = vmatprep.subr.mxu0 0.0
    %267 = vmatpush1.xpose.msra.mxu0 0.0
    %268 = vmatprep.subr.mxu0 0.0
    %269 = vmatpush1.xpose.msra.mxu0 0.0
    %270 = vmatprep.subr.mxu0 0.0
    %271 = vmatpush1.xpose.msra.mxu0 0.0
    %272 = vmatprep.subr.mxu0 0.0
    %273 = vmatpush1.xpose.msra.mxu0 0.0
    %274 = vmatprep.subr.mxu0 0.0
    %275 = vmatpush1.xpose.msra.mxu0 0.0
    %276 = vmatprep.mubr.f32.mxu0 0.0
    %277 = vmatmul.mubr.f32.gmra.mrb[0].mxu0 %v208
    %v278 = vpop.f32.mrb[0].mxu0
    %v279 = vadd.f32 0.0, %v278
    %v280 = vpop.f32.mrb[0].mxu0
    %281 = vdwg.mxu0
    %v282 = vmul.f32 %v279, 0.35355338
    %v283 = vlaneseq
    %v284 = vshrl.u32 %v283, 7
    %v285 = vsub.s32 0, %v284
    %v286 = vrot.slane %v63, %v285
    %v287 = vadd.f32 %v282, %v286
    %v288 = vsel %vm207, %v287, -inf
    %289 = vmax.xlane.f32.xlu0 %v288
    %v290 = vpop.xlane.xlu0 %289
    %v291 = vsub.f32 %v287, %v290
    %v292 = vmul.f32 %v291, 1.442695
    %v293 = vpow.pop %v292
    %v294 = vsel %vm207, %v293, 0.0
    %295 = vadd.xlane.f32.xlu0 %v294
    %v296 = vpop.xlane.xlu0 %295
    %v297 = vrcp.pop %v296
    %v298 = vmul.f32 %v293, %v297
    %299 = vrot.lane.b32.xlu0 %v196, 64
    %v300 = vpop.permute.xlu0 %299
    %v303 = vsel %vm207, %v298, 0
    %305 = vmatprep.subr.mxu0 0.0
    %306 = vmatpush1.msra.mxu0 %v300
    %307 = vmatprep.subr.mxu0 0.0
    %308 = vmatpush1.msra.mxu0 0.0
    %309 = vmatprep.subr.mxu0 0.0
    %310 = vmatpush1.msra.mxu0 0.0
    %311 = vmatprep.subr.mxu0 0.0
    %312 = vmatpush1.msra.mxu0 0.0
    %313 = vmatprep.subr.mxu0 0.0
    %314 = vmatpush1.msra.mxu0 0.0
    %315 = vmatprep.subr.mxu0 0.0
    %316 = vmatpush1.msra.mxu0 0.0
    %317 = vmatprep.subr.mxu0 0.0
    %318 = vmatpush1.msra.mxu0 0.0
    %319 = vmatprep.subr.mxu0 0.0
    %320 = vmatpush1.msra.mxu0 0.0
    %321 = vmatprep.subr.mxu0 0.0
    %322 = vmatpush1.msra.mxu0 0.0
    %323 = vmatprep.subr.mxu0 0.0
    %324 = vmatpush1.msra.mxu0 0.0
    %325 = vmatprep.subr.mxu0 0.0
    %326 = vmatpush1.msra.mxu0 0.0
    %327 = vmatprep.subr.mxu0 0.0
    %328 = vmatpush1.msra.mxu0 0.0
    %329 = vmatprep.subr.mxu0 0.0
    %330 = vmatpush1.msra.mxu0 0.0
    %331 = vmatprep.subr.mxu0 0.0
    %332 = vmatpush1.msra.mxu0 0.0
    %333 = vmatprep.subr.mxu0 0.0
    %334 = vmatpush1.msra.mxu0 0.0
    %335 = vmatprep.subr.mxu0 0.0
    %336 = vmatpush1.msra.mxu0 0.0
    %337 = vmatprep.subr.mxu0 0.0
    %338 = vmatpush1.msra.mxu0 0.0
    %339 = vmatprep.subr.mxu0 0.0
    %340 = vmatpush1.msra.mxu0 0.0
    %341 = vmatprep.subr.mxu0 0.0
    %342 = vmatpush1.msra.mxu0 0.0
    %343 = vmatprep.subr.mxu0 0.0
    %344 = vmatpush1.msra.mxu0 0.0
    %345 = vmatprep.subr.mxu0 0.0
    %346 = vmatpush1.msra.mxu0 0.0
    %347 = vmatprep.subr.mxu0 0.0
    %348 = vmatpush1.msra.mxu0 0.0
    %349 = vmatprep.subr.mxu0 0.0
    %350 = vmatpush1.msra.mxu0 0.0
    %351 = vmatprep.subr.mxu0 0.0
    %352 = vmatpush1.msra.mxu0 0.0
    %353 = vmatprep.subr.mxu0 0.0
    %354 = vmatpush1.msra.mxu0 0.0
    %355 = vmatprep.subr.mxu0 0.0
    %356 = vmatpush1.msra.mxu0 0.0
    %357 = vmatprep.subr.mxu0 0.0
    %358 = vmatpush1.msra.mxu0 0.0
    %359 = vmatprep.subr.mxu0 0.0
    %360 = vmatpush1.msra.mxu0 0.0
    %361 = vmatprep.subr.mxu0 0.0
    %362 = vmatpush1.msra.mxu0 0.0
    %363 = vmatprep.subr.mxu0 0.0
    %364 = vmatpush1.msra.mxu0 0.0
    %365 = vmatprep.subr.mxu0 0.0
    %366 = vmatpush1.msra.mxu0 0.0
    %367 = vmatprep.subr.mxu0 0.0
    %368 = vmatpush1.msra.mxu0 0.0
    %369 = vmatprep.mubr.f32.mxu0 0.0
    %370 = vmatmul.mubr.f32.gmra.mrb[0].mxu0 %v303
    %v371 = vpop.f32.mrb[0].mxu0
    %v372 = vadd.f32 0.0, %v371
    %v373 = vpop.f32.mrb[0].mxu0
    %374 = vdwg.mxu0
    %375 = vrot.lane.b32.xlu0 %v196, 120
    %v376 = vpop.permute.xlu0 %375
    %377 = vrot.lane.b32.xlu0 %v196, 88
    %v378 = vpop.permute.xlu0 %377
    %v379 = vsel %vm207, %v376, 0
    %v381 = vsel %vm207, %v378, 0
    %383 = vmatprep.subr.mxu0 0.0
    %384 = vmatpush1.xpose.msra.mxu0 %v381
    %385 = vmatprep.subr.mxu0 0.0
    %386 = vmatpush1.xpose.msra.mxu0 0.0
    %387 = vmatprep.subr.mxu0 0.0
    %388 = vmatpush1.xpose.msra.mxu0 0.0
    %389 = vmatprep.subr.mxu0 0.0
    %390 = vmatpush1.xpose.msra.mxu0 0.0
    %391 = vmatprep.subr.mxu0 0.0
    %392 = vmatpush1.xpose.msra.mxu0 0.0
    %393 = vmatprep.subr.mxu0 0.0
    %394 = vmatpush1.xpose.msra.mxu0 0.0
    %395 = vmatprep.subr.mxu0 0.0
    %396 = vmatpush1.xpose.msra.mxu0 0.0
    %397 = vmatprep.subr.mxu0 0.0
    %398 = vmatpush1.xpose.msra.mxu0 0.0
    %399 = vmatprep.subr.mxu0 0.0
    %400 = vmatpush1.xpose.msra.mxu0 0.0
    %401 = vmatprep.subr.mxu0 0.0
    %402 = vmatpush1.xpose.msra.mxu0 0.0
    %403 = vmatprep.subr.mxu0 0.0
    %404 = vmatpush1.xpose.msra.mxu0 0.0
    %405 = vmatprep.subr.mxu0 0.0
    %406 = vmatpush1.xpose.msra.mxu0 0.0
    %407 = vmatprep.subr.mxu0 0.0
    %408 = vmatpush1.xpose.msra.mxu0 0.0
    %409 = vmatprep.subr.mxu0 0.0
    %410 = vmatpush1.xpose.msra.mxu0 0.0
    %411 = vmatprep.subr.mxu0 0.0
    %412 = vmatpush1.xpose.msra.mxu0 0.0
    %413 = vmatprep.subr.mxu0 0.0
    %414 = vmatpush1.xpose.msra.mxu0 0.0
    %415 = vmatprep.subr.mxu0 0.0
    %416 = vmatpush1.xpose.msra.mxu0 0.0
    %417 = vmatprep.subr.mxu0 0.0
    %418 = vmatpush1.xpose.msra.mxu0 0.0
    %419 = vmatprep.subr.mxu0 0.0
    %420 = vmatpush1.xpose.msra.mxu0 0.0
    %421 = vmatprep.subr.mxu0 0.0
    %422 = vmatpush1.xpose.msra.mxu0 0.0
    %423 = vmatprep.subr.mxu0 0.0
    %424 = vmatpush1.xpose.msra.mxu0 0.0
    %425 = vmatprep.subr.mxu0 0.0
    %426 = vmatpush1.xpose.msra.mxu0 0.0
    %427 = vmatprep.subr.mxu0 0.0
    %428 = vmatpush1.xpose.msra.mxu0 0.0
    %429 = vmatprep.subr.mxu0 0.0
    %430 = vmatpush1.xpose.msra.mxu0 0.0
    %431 = vmatprep.subr.mxu0 0.0
    %432 = vmatpush1.xpose.msra.mxu0 0.0
    %433 = vmatprep.subr.mxu0 0.0
    %434 = vmatpush1.xpose.msra.mxu0 0.0
    %435 = vmatprep.subr.mxu0 0.0
    %436 = vmatpush1.xpose.msra.mxu0 0.0
    %437 = vmatprep.subr.mxu0 0.0
    %438 = vmatpush1.xpose.msra.mxu0 0.0
    %439 = vmatprep.subr.mxu0 0.0
    %440 = vmatpush1.xpose.msra.mxu0 0.0
    %441 = vmatprep.subr.mxu0 0.0
    %442 = vmatpush1.xpose.msra.mxu0 0.0
    %443 = vmatprep.subr.mxu0 0.0
    %444 = vmatpush1.xpose.msra.mxu0 0.0
    %445 = vmatprep.subr.mxu0 0.0
    %446 = vmatpush1.xpose.msra.mxu0 0.0
    %447 = vmatprep.mubr.f32.mxu0 0.0
    %448 = vmatmul.mubr.f32.gmra.mrb[0].mxu0 %v379
    %v449 = vpop.f32.mrb[0].mxu0
    %v450 = vadd.f32 0.0, %v449
    %v451 = vpop.f32.mrb[0].mxu0
    %452 = vdwg.mxu0
    %v453 = vmul.f32 %v450, 0.35355338
    %v454 = vadd.f32 %v453, %v286
    %v455 = vsel %vm207, %v454, -inf
    %456 = vmax.xlane.f32.xlu0 %v455
    %v457 = vpop.xlane.xlu0 %456
    %v458 = vsub.f32 %v454, %v457
    %v459 = vmul.f32 %v458, 1.442695
    %v460 = vpow.pop %v459
    %v461 = vsel %vm207, %v460, 0.0
    %462 = vadd.xlane.f32.xlu0 %v461
    %v463 = vpop.xlane.xlu0 %462
    %v464 = vrcp.pop %v463
    %v465 = vmul.f32 %v460, %v464
    %466 = vrot.lane.b32.xlu0 %v196, 56
    %v467 = vpop.permute.xlu0 %466
    %v470 = vsel %vm207, %v465, 0
    %472 = vmatprep.subr.mxu0 0.0
    %473 = vmatpush1.msra.mxu0 %v467
    %474 = vmatprep.subr.mxu0 0.0
    %475 = vmatpush1.msra.mxu0 0.0
    %476 = vmatprep.subr.mxu0 0.0
    %477 = vmatpush1.msra.mxu0 0.0
    %478 = vmatprep.subr.mxu0 0.0
    %479 = vmatpush1.msra.mxu0 0.0
    %480 = vmatprep.subr.mxu0 0.0
    %481 = vmatpush1.msra.mxu0 0.0
    %482 = vmatprep.subr.mxu0 0.0
    %483 = vmatpush1.msra.mxu0 0.0
    %484 = vmatprep.subr.mxu0 0.0
    %485 = vmatpush1.msra.mxu0 0.0
    %486 = vmatprep.subr.mxu0 0.0
    %487 = vmatpush1.msra.mxu0 0.0
    %488 = vmatprep.subr.mxu0 0.0
    %489 = vmatpush1.msra.mxu0 0.0
    %490 = vmatprep.subr.mxu0 0.0
    %491 = vmatpush1.msra.mxu0 0.0
    %492 = vmatprep.subr.mxu0 0.0
    %493 = vmatpush1.msra.mxu0 0.0
    %494 = vmatprep.subr.mxu0 0.0
    %495 = vmatpush1.msra.mxu0 0.0
    %496 = vmatprep.subr.mxu0 0.0
    %497 = vmatpush1.msra.mxu0 0.0
    %498 = vmatprep.subr.mxu0 0.0
    %499 = vmatpush1.msra.mxu0 0.0
    %500 = vmatprep.subr.mxu0 0.0
    %501 = vmatpush1.msra.mxu0 0.0
    %502 = vmatprep.subr.mxu0 0.0
    %503 = vmatpush1.msra.mxu0 0.0
    %504 = vmatprep.subr.mxu0 0.0
    %505 = vmatpush1.msra.mxu0 0.0
    %506 = vmatprep.subr.mxu0 0.0
    %507 = vmatpush1.msra.mxu0 0.0
    %508 = vmatprep.subr.mxu0 0.0
    %509 = vmatpush1.msra.mxu0 0.0
    %510 = vmatprep.subr.mxu0 0.0
    %511 = vmatpush1.msra.mxu0 0.0
    %512 = vmatprep.subr.mxu0 0.0
    %513 = vmatpush1.msra.mxu0 0.0
    %514 = vmatprep.subr.mxu0 0.0
    %515 = vmatpush1.msra.mxu0 0.0
    %516 = vmatprep.subr.mxu0 0.0
    %517 = vmatpush1.msra.mxu0 0.0
    %518 = vmatprep.subr.mxu0 0.0
    %519 = vmatpush1.msra.mxu0 0.0
    %520 = vmatprep.subr.mxu0 0.0
    %521 = vmatpush1.msra.mxu0 0.0
    %522 = vmatprep.subr.mxu0 0.0
    %523 = vmatpush1.msra.mxu0 0.0
    %524 = vmatprep.subr.mxu0 0.0
    %525 = vmatpush1.msra.mxu0 0.0
    %526 = vmatprep.subr.mxu0 0.0
    %527 = vmatpush1.msra.mxu0 0.0
    %528 = vmatprep.subr.mxu0 0.0
    %529 = vmatpush1.msra.mxu0 0.0
    %530 = vmatprep.subr.mxu0 0.0
    %531 = vmatpush1.msra.mxu0 0.0
    %532 = vmatprep.subr.mxu0 0.0
    %533 = vmatpush1.msra.mxu0 0.0
    %534 = vmatprep.subr.mxu0 0.0
    %535 = vmatpush1.msra.mxu0 0.0
    %536 = vmatprep.mubr.f32.mxu0 0.0
    %537 = vmatmul.mubr.f32.gmra.mrb[0].mxu0 %v470
    %v538 = vpop.f32.mrb[0].mxu0
    %v539 = vadd.f32 0.0, %v538
    %v540 = vpop.f32.mrb[0].mxu0
    %541 = vdwg.mxu0
    %542 = vrot.lane.b32.xlu0 %v196, 112
    %v543 = vpop.permute.xlu0 %542
    %544 = vrot.lane.b32.xlu0 %v196, 80
    %v545 = vpop.permute.xlu0 %544
    %v546 = vsel %vm207, %v543, 0
    %v548 = vsel %vm207, %v545, 0
    %550 = vmatprep.subr.mxu0 0.0
    %551 = vmatpush1.xpose.msra.mxu0 %v548
    %552 = vmatprep.subr.mxu0 0.0
    %553 = vmatpush1.xpose.msra.mxu0 0.0
    %554 = vmatprep.subr.mxu0 0.0
    %555 = vmatpush1.xpose.msra.mxu0 0.0
    %556 = vmatprep.subr.mxu0 0.0
    %557 = vmatpush1.xpose.msra.mxu0 0.0
    %558 = vmatprep.subr.mxu0 0.0
    %559 = vmatpush1.xpose.msra.mxu0 0.0
    %560 = vmatprep.subr.mxu0 0.0
    %561 = vmatpush1.xpose.msra.mxu0 0.0
    %562 = vmatprep.subr.mxu0 0.0
    %563 = vmatpush1.xpose.msra.mxu0 0.0
    %564 = vmatprep.subr.mxu0 0.0
    %565 = vmatpush1.xpose.msra.mxu0 0.0
    %566 = vmatprep.subr.mxu0 0.0
    %567 = vmatpush1.xpose.msra.mxu0 0.0
    %568 = vmatprep.subr.mxu0 0.0
    %569 = vmatpush1.xpose.msra.mxu0 0.0
    %570 = vmatprep.subr.mxu0 0.0
    %571 = vmatpush1.xpose.msra.mxu0 0.0
    %572 = vmatprep.subr.mxu0 0.0
    %573 = vmatpush1.xpose.msra.mxu0 0.0
    %574 = vmatprep.subr.mxu0 0.0
    %575 = vmatpush1.xpose.msra.mxu0 0.0
    %576 = vmatprep.subr.mxu0 0.0
    %577 = vmatpush1.xpose.msra.mxu0 0.0
    %578 = vmatprep.subr.mxu0 0.0
    %579 = vmatpush1.xpose.msra.mxu0 0.0
    %580 = vmatprep.subr.mxu0 0.0
    %581 = vmatpush1.xpose.msra.mxu0 0.0
    %582 = vmatprep.subr.mxu0 0.0
    %583 = vmatpush1.xpose.msra.mxu0 0.0
    %584 = vmatprep.subr.mxu0 0.0
    %585 = vmatpush1.xpose.msra.mxu0 0.0
    %586 = vmatprep.subr.mxu0 0.0
    %587 = vmatpush1.xpose.msra.mxu0 0.0
    %588 = vmatprep.subr.mxu0 0.0
    %589 = vmatpush1.xpose.msra.mxu0 0.0
    %590 = vmatprep.subr.mxu0 0.0
    %591 = vmatpush1.xpose.msra.mxu0 0.0
    %592 = vmatprep.subr.mxu0 0.0
    %593 = vmatpush1.xpose.msra.mxu0 0.0
    %594 = vmatprep.subr.mxu0 0.0
    %595 = vmatpush1.xpose.msra.mxu0 0.0
    %596 = vmatprep.subr.mxu0 0.0
    %597 = vmatpush1.xpose.msra.mxu0 0.0
    %598 = vmatprep.subr.mxu0 0.0
    %599 = vmatpush1.xpose.msra.mxu0 0.0
    %600 = vmatprep.subr.mxu0 0.0
    %601 = vmatpush1.xpose.msra.mxu0 0.0
    %602 = vmatprep.subr.mxu0 0.0
    %603 = vmatpush1.xpose.msra.mxu0 0.0
    %604 = vmatprep.subr.mxu0 0.0
    %605 = vmatpush1.xpose.msra.mxu0 0.0
    %606 = vmatprep.subr.mxu0 0.0
    %607 = vmatpush1.xpose.msra.mxu0 0.0
    %608 = vmatprep.subr.mxu0 0.0
    %609 = vmatpush1.xpose.msra.mxu0 0.0
    %610 = vmatprep.subr.mxu0 0.0
    %611 = vmatpush1.xpose.msra.mxu0 0.0
    %612 = vmatprep.subr.mxu0 0.0
    %613 = vmatpush1.xpose.msra.mxu0 0.0
    %614 = vmatprep.mubr.f32.mxu0 0.0
    %615 = vmatmul.mubr.f32.gmra.mrb[0].mxu0 %v546
    %v616 = vpop.f32.mrb[0].mxu0
    %v617 = vadd.f32 0.0, %v616
    %v618 = vpop.f32.mrb[0].mxu0
    %619 = vdwg.mxu0
    %v620 = vmul.f32 %v617, 0.35355338
    %v621 = vadd.f32 %v620, %v286
    %v622 = vsel %vm207, %v621, -inf
    %623 = vmax.xlane.f32.xlu0 %v622
    %v624 = vpop.xlane.xlu0 %623
    %v625 = vsub.f32 %v621, %v624
    %v626 = vmul.f32 %v625, 1.442695
    %v627 = vpow.pop %v626
    %v628 = vsel %vm207, %v627, 0.0
    %629 = vadd.xlane.f32.xlu0 %v628
    %v630 = vpop.xlane.xlu0 %629
    %v631 = vrcp.pop %v630
    %v632 = vmul.f32 %v627, %v631
    %633 = vrot.lane.b32.xlu0 %v196, 48
    %v634 = vpop.permute.xlu0 %633
    %v637 = vsel %vm207, %v632, 0
    %639 = vmatprep.subr.mxu0 0.0
    %640 = vmatpush1.msra.mxu0 %v634
    %641 = vmatprep.subr.mxu0 0.0
    %642 = vmatpush1.msra.mxu0 0.0
    %643 = vmatprep.subr.mxu0 0.0
    %644 = vmatpush1.msra.mxu0 0.0
    %645 = vmatprep.subr.mxu0 0.0
    %646 = vmatpush1.msra.mxu0 0.0
    %647 = vmatprep.subr.mxu0 0.0
    %648 = vmatpush1.msra.mxu0 0.0
    %649 = vmatprep.subr.mxu0 0.0
    %650 = vmatpush1.msra.mxu0 0.0
    %651 = vmatprep.subr.mxu0 0.0
    %652 = vmatpush1.msra.mxu0 0.0
    %653 = vmatprep.subr.mxu0 0.0
    %654 = vmatpush1.msra.mxu0 0.0
    %655 = vmatprep.subr.mxu0 0.0
    %656 = vmatpush1.msra.mxu0 0.0
    %657 = vmatprep.subr.mxu0 0.0
    %658 = vmatpush1.msra.mxu0 0.0
    %659 = vmatprep.subr.mxu0 0.0
    %660 = vmatpush1.msra.mxu0 0.0
    %661 = vmatprep.subr.mxu0 0.0
    %662 = vmatpush1.msra.mxu0 0.0
    %663 = vmatprep.subr.mxu0 0.0
    %664 = vmatpush1.msra.mxu0 0.0
    %665 = vmatprep.subr.mxu0 0.0
    %666 = vmatpush1.msra.mxu0 0.0
    %667 = vmatprep.subr.mxu0 0.0
    %668 = vmatpush1.msra.mxu0 0.0
    %669 = vmatprep.subr.mxu0 0.0
    %670 = vmatpush1.msra.mxu0 0.0
    %671 = vmatprep.subr.mxu0 0.0
    %672 = vmatpush1.msra.mxu0 0.0
    %673 = vmatprep.subr.mxu0 0.0
    %674 = vmatpush1.msra.mxu0 0.0
    %675 = vmatprep.subr.mxu0 0.0
    %676 = vmatpush1.msra.mxu0 0.0
    %677 = vmatprep.subr.mxu0 0.0
    %678 = vmatpush1.msra.mxu0 0.0
    %679 = vmatprep.subr.mxu0 0.0
    %680 = vmatpush1.msra.mxu0 0.0
    %681 = vmatprep.subr.mxu0 0.0
    %682 = vmatpush1.msra.mxu0 0.0
    %683 = vmatprep.subr.mxu0 0.0
    %684 = vmatpush1.msra.mxu0 0.0
    %685 = vmatprep.subr.mxu0 0.0
    %686 = vmatpush1.msra.mxu0 0.0
    %687 = vmatprep.subr.mxu0 0.0
    %688 = vmatpush1.msra.mxu0 0.0
    %689 = vmatprep.subr.mxu0 0.0
    %690 = vmatpush1.msra.mxu0 0.0
    %691 = vmatprep.subr.mxu0 0.0
    %692 = vmatpush1.msra.mxu0 0.0
    %693 = vmatprep.subr.mxu0 0.0
    %694 = vmatpush1.msra.mxu0 0.0
    %695 = vmatprep.subr.mxu0 0.0
    %696 = vmatpush1.msra.mxu0 0.0
    %697 = vmatprep.subr.mxu0 0.0
    %698 = vmatpush1.msra.mxu0 0.0
    %699 = vmatprep.subr.mxu0 0.0
    %700 = vmatpush1.msra.mxu0 0.0
    %701 = vmatprep.subr.mxu0 0.0
    %702 = vmatpush1.msra.mxu0 0.0
    %703 = vmatprep.mubr.f32.mxu0 0.0
    %704 = vmatmul.mubr.f32.gmra.mrb[0].mxu0 %v637
    %v705 = vpop.f32.mrb[0].mxu0
    %v706 = vadd.f32 0.0, %v705
    %v707 = vpop.f32.mrb[0].mxu0
    %708 = vdwg.mxu0
    %709 = vrot.lane.b32.xlu0 %v196, 104
    %v710 = vpop.permute.xlu0 %709
    %711 = vrot.lane.b32.xlu0 %v196, 72
    %v712 = vpop.permute.xlu0 %711
    %v713 = vsel %vm207, %v710, 0
    %v715 = vsel %vm207, %v712, 0
    %717 = vmatprep.subr.mxu0 0.0
    %718 = vmatpush1.xpose.msra.mxu0 %v715
    %719 = vmatprep.subr.mxu0 0.0
    %720 = vmatpush1.xpose.msra.mxu0 0.0
    %721 = vmatprep.subr.mxu0 0.0
    %722 = vmatpush1.xpose.msra.mxu0 0.0
    %723 = vmatprep.subr.mxu0 0.0
    %724 = vmatpush1.xpose.msra.mxu0 0.0
    %725 = vmatprep.subr.mxu0 0.0
    %726 = vmatpush1.xpose.msra.mxu0 0.0
    %727 = vmatprep.subr.mxu0 0.0
    %728 = vmatpush1.xpose.msra.mxu0 0.0
    %729 = vmatprep.subr.mxu0 0.0
    %730 = vmatpush1.xpose.msra.mxu0 0.0
    %731 = vmatprep.subr.mxu0 0.0
    %732 = vmatpush1.xpose.msra.mxu0 0.0
    %733 = vmatprep.subr.mxu0 0.0
    %734 = vmatpush1.xpose.msra.mxu0 0.0
    %735 = vmatprep.subr.mxu0 0.0
    %736 = vmatpush1.xpose.msra.mxu0 0.0
    %737 = vmatprep.subr.mxu0 0.0
    %738 = vmatpush1.xpose.msra.mxu0 0.0
    %739 = vmatprep.subr.mxu0 0.0
    %740 = vmatpush1.xpose.msra.mxu0 0.0
    %741 = vmatprep.subr.mxu0 0.0
    %742 = vmatpush1.xpose.msra.mxu0 0.0
    %743 = vmatprep.subr.mxu0 0.0
    %744 = vmatpush1.xpose.msra.mxu0 0.0
    %745 = vmatprep.subr.mxu0 0.0
    %746 = vmatpush1.xpose.msra.mxu0 0.0
    %747 = vmatprep.subr.mxu0 0.0
    %748 = vmatpush1.xpose.msra.mxu0 0.0
    %749 = vmatprep.subr.mxu0 0.0
    %750 = vmatpush1.xpose.msra.mxu0 0.0
    %751 = vmatprep.subr.mxu0 0.0
    %752 = vmatpush1.xpose.msra.mxu0 0.0
    %753 = vmatprep.subr.mxu0 0.0
    %754 = vmatpush1.xpose.msra.mxu0 0.0
    %755 = vmatprep.subr.mxu0 0.0
    %756 = vmatpush1.xpose.msra.mxu0 0.0
    %757 = vmatprep.subr.mxu0 0.0
    %758 = vmatpush1.xpose.msra.mxu0 0.0
    %759 = vmatprep.subr.mxu0 0.0
    %760 = vmatpush1.xpose.msra.mxu0 0.0
    %761 = vmatprep.subr.mxu0 0.0
    %762 = vmatpush1.xpose.msra.mxu0 0.0
    %763 = vmatprep.subr.mxu0 0.0
    %764 = vmatpush1.xpose.msra.mxu0 0.0
    %765 = vmatprep.subr.mxu0 0.0
    %766 = vmatpush1.xpose.msra.mxu0 0.0
    %767 = vmatprep.subr.mxu0 0.0
    %768 = vmatpush1.xpose.msra.mxu0 0.0
    %769 = vmatprep.subr.mxu0 0.0
    %770 = vmatpush1.xpose.msra.mxu0 0.0
    %771 = vmatprep.subr.mxu0 0.0
    %772 = vmatpush1.xpose.msra.mxu0 0.0
    %773 = vmatprep.subr.mxu0 0.0
    %774 = vmatpush1.xpose.msra.mxu0 0.0
    %775 = vmatprep.subr.mxu0 0.0
    %776 = vmatpush1.xpose.msra.mxu0 0.0
    %777 = vmatprep.subr.mxu0 0.0
    %778 = vmatpush1.xpose.msra.mxu0 0.0
    %779 = vmatprep.subr.mxu0 0.0
    %780 = vmatpush1.xpose.msra.mxu0 0.0
    %781 = vmatprep.mubr.f32.mxu0 0.0
    %782 = vmatmul.mubr.f32.gmra.mrb[0].mxu0 %v713
    %v783 = vpop.f32.mrb[0].mxu0
    %v784 = vadd.f32 0.0, %v783
    %v785 = vpop.f32.mrb[0].mxu0
    %786 = vdwg.mxu0
    %v787 = vmul.f32 %v784, 0.35355338
    %v788 = vadd.f32 %v787, %v286
    %v789 = vsel %vm207, %v788, -inf
    %790 = vmax.xlane.f32.xlu0 %v789
    %v791 = vpop.xlane.xlu0 %790
    %v792 = vsub.f32 %v788, %v791
    %v793 = vmul.f32 %v792, 1.442695
    %v794 = vpow.pop %v793
    %v795 = vsel %vm207, %v794, 0.0
    %796 = vadd.xlane.f32.xlu0 %v795
    %v797 = vpop.xlane.xlu0 %796
    %v798 = vrcp.pop %v797
    %v799 = vmul.f32 %v794, %v798
    %800 = vrot.lane.b32.xlu0 %v196, 40
    %v801 = vpop.permute.xlu0 %800
    %v804 = vsel %vm207, %v799, 0
    %806 = vmatprep.subr.mxu0 0.0
    %807 = vmatpush1.msra.mxu0 %v801
    %808 = vmatprep.subr.mxu0 0.0
    %809 = vmatpush1.msra.mxu0 0.0
    %810 = vmatprep.subr.mxu0 0.0
    %811 = vmatpush1.msra.mxu0 0.0
    %812 = vmatprep.subr.mxu0 0.0
    %813 = vmatpush1.msra.mxu0 0.0
    %814 = vmatprep.subr.mxu0 0.0
    %815 = vmatpush1.msra.mxu0 0.0
    %816 = vmatprep.subr.mxu0 0.0
    %817 = vmatpush1.msra.mxu0 0.0
    %818 = vmatprep.subr.mxu0 0.0
    %819 = vmatpush1.msra.mxu0 0.0
    %820 = vmatprep.subr.mxu0 0.0
    %821 = vmatpush1.msra.mxu0 0.0
    %822 = vmatprep.subr.mxu0 0.0
    %823 = vmatpush1.msra.mxu0 0.0
    %824 = vmatprep.subr.mxu0 0.0
    %825 = vmatpush1.msra.mxu0 0.0
    %826 = vmatprep.subr.mxu0 0.0
    %827 = vmatpush1.msra.mxu0 0.0
    %828 = vmatprep.subr.mxu0 0.0
    %829 = vmatpush1.msra.mxu0 0.0
    %830 = vmatprep.subr.mxu0 0.0
    %831 = vmatpush1.msra.mxu0 0.0
    %832 = vmatprep.subr.mxu0 0.0
    %833 = vmatpush1.msra.mxu0 0.0
    %834 = vmatprep.subr.mxu0 0.0
    %835 = vmatpush1.msra.mxu0 0.0
    %836 = vmatprep.subr.mxu0 0.0
    %837 = vmatpush1.msra.mxu0 0.0
    %838 = vmatprep.subr.mxu0 0.0
    %839 = vmatpush1.msra.mxu0 0.0
    %840 = vmatprep.subr.mxu0 0.0
    %841 = vmatpush1.msra.mxu0 0.0
    %842 = vmatprep.subr.mxu0 0.0
    %843 = vmatpush1.msra.mxu0 0.0
    %844 = vmatprep.subr.mxu0 0.0
    %845 = vmatpush1.msra.mxu0 0.0
    %846 = vmatprep.subr.mxu0 0.0
    %847 = vmatpush1.msra.mxu0 0.0
    %848 = vmatprep.subr.mxu0 0.0
    %849 = vmatpush1.msra.mxu0 0.0
    %850 = vmatprep.subr.mxu0 0.0
    %851 = vmatpush1.msra.mxu0 0.0
    %852 = vmatprep.subr.mxu0 0.0
    %853 = vmatpush1.msra.mxu0 0.0
    %854 = vmatprep.subr.mxu0 0.0
    %855 = vmatpush1.msra.mxu0 0.0
    %856 = vmatprep.subr.mxu0 0.0
    %857 = vmatpush1.msra.mxu0 0.0
    %858 = vmatprep.subr.mxu0 0.0
    %859 = vmatpush1.msra.mxu0 0.0
    %860 = vmatprep.subr.mxu0 0.0
    %861 = vmatpush1.msra.mxu0 0.0
    %862 = vmatprep.subr.mxu0 0.0
    %863 = vmatpush1.msra.mxu0 0.0
    %864 = vmatprep.subr.mxu0 0.0
    %865 = vmatpush1.msra.mxu0 0.0
    %866 = vmatprep.subr.mxu0 0.0
    %867 = vmatpush1.msra.mxu0 0.0
    %868 = vmatprep.subr.mxu0 0.0
    %869 = vmatpush1.msra.mxu0 0.0
    %870 = vmatprep.mubr.f32.mxu0 0.0
    %871 = vmatmul.mubr.f32.gmra.mrb[0].mxu0 %v804
    %v872 = vpop.f32.mrb[0].mxu0
    %v873 = vadd.f32 0.0, %v872
    %v874 = vpop.f32.mrb[0].mxu0
    %875 = vdwg.mxu0
    %877 = vrot.lane.b32.xlu0 %v539, 8
    %v878 = vpop.permute.xlu0 %877
    %881 = vrot.lane.b32.xlu0 %v706, 16
    %v882 = vpop.permute.xlu0 %881
    %885 = vrot.lane.b32.xlu0 %v873, 24
    %v886 = vpop.permute.xlu0 %885
    %v888 = vsel %vm207, %v372, %v878
    %vm889 = vcmask 130048
    %v890 = vsel %vm889, %v888, %v882
    %vm891 = vcmask 195584
    %v892 = vsel %vm891, %v890, %v886
    %894 = vrot.lane.b32.xlu0 %v201, 96
    %v895 = vpop.permute.xlu0 %894
    %v896 = vsel %vm207, %v201, 0
    %v898 = vsel %vm207, %v895, 0
    %900 = vmatprep.subr.mxu0 0.0
    %901 = vmatpush1.xpose.msra.mxu0 %v898
    %902 = vmatprep.subr.mxu0 0.0
    %903 = vmatpush1.xpose.msra.mxu0 0.0
    %904 = vmatprep.subr.mxu0 0.0
    %905 = vmatpush1.xpose.msra.mxu0 0.0
    %906 = vmatprep.subr.mxu0 0.0
    %907 = vmatpush1.xpose.msra.mxu0 0.0
    %908 = vmatprep.subr.mxu0 0.0
    %909 = vmatpush1.xpose.msra.mxu0 0.0
    %910 = vmatprep.subr.mxu0 0.0
    %911 = vmatpush1.xpose.msra.mxu0 0.0
    %912 = vmatprep.subr.mxu0 0.0
    %913 = vmatpush1.xpose.msra.mxu0 0.0
    %914 = vmatprep.subr.mxu0 0.0
    %915 = vmatpush1.xpose.msra.mxu0 0.0
    %916 = vmatprep.subr.mxu0 0.0
    %917 = vmatpush1.xpose.msra.mxu0 0.0
    %918 = vmatprep.subr.mxu0 0.0
    %919 = vmatpush1.xpose.msra.mxu0 0.0
    %920 = vmatprep.subr.mxu0 0.0
    %921 = vmatpush1.xpose.msra.mxu0 0.0
    %922 = vmatprep.subr.mxu0 0.0
    %923 = vmatpush1.xpose.msra.mxu0 0.0
    %924 = vmatprep.subr.mxu0 0.0
    %925 = vmatpush1.xpose.msra.mxu0 0.0
    %926 = vmatprep.subr.mxu0 0.0
    %927 = vmatpush1.xpose.msra.mxu0 0.0
    %928 = vmatprep.subr.mxu0 0.0
    %929 = vmatpush1.xpose.msra.mxu0 0.0
    %930 = vmatprep.subr.mxu0 0.0
    %931 = vmatpush1.xpose.msra.mxu0 0.0
    %932 = vmatprep.subr.mxu0 0.0
    %933 = vmatpush1.xpose.msra.mxu0 0.0
    %934 = vmatprep.subr.mxu0 0.0
    %935 = vmatpush1.xpose.msra.mxu0 0.0
    %936 = vmatprep.subr.mxu0 0.0
    %937 = vmatpush1.xpose.msra.mxu0 0.0
    %938 = vmatprep.subr.mxu0 0.0
    %939 = vmatpush1.xpose.msra.mxu0 0.0
    %940 = vmatprep.subr.mxu0 0.0
    %941 = vmatpush1.xpose.msra.mxu0 0.0
    %942 = vmatprep.subr.mxu0 0.0
    %943 = vmatpush1.xpose.msra.mxu0 0.0
    %944 = vmatprep.subr.mxu0 0.0
    %945 = vmatpush1.xpose.msra.mxu0 0.0
    %946 = vmatprep.subr.mxu0 0.0
    %947 = vmatpush1.xpose.msra.mxu0 0.0
    %948 = vmatprep.subr.mxu0 0.0
    %949 = vmatpush1.xpose.msra.mxu0 0.0
    %950 = vmatprep.subr.mxu0 0.0
    %951 = vmatpush1.xpose.msra.mxu0 0.0
    %952 = vmatprep.subr.mxu0 0.0
    %953 = vmatpush1.xpose.msra.mxu0 0.0
    %954 = vmatprep.subr.mxu0 0.0
    %955 = vmatpush1.xpose.msra.mxu0 0.0
    %956 = vmatprep.subr.mxu0 0.0
    %957 = vmatpush1.xpose.msra.mxu0 0.0
    %958 = vmatprep.subr.mxu0 0.0
    %959 = vmatpush1.xpose.msra.mxu0 0.0
    %960 = vmatprep.subr.mxu0 0.0
    %961 = vmatpush1.xpose.msra.mxu0 0.0
    %962 = vmatprep.subr.mxu0 0.0
    %963 = vmatpush1.xpose.msra.mxu0 0.0
    %964 = vmatprep.mubr.f32.mxu0 0.0
    %965 = vmatmul.mubr.f32.gmra.mrb[0].mxu0 %v896
    %v966 = vpop.f32.mrb[0].mxu0
    %v967 = vadd.f32 0.0, %v966
    %v968 = vpop.f32.mrb[0].mxu0
    %969 = vdwg.mxu0
    %v970 = vmul.f32 %v967, 0.35355338
    %v971 = vlaneseq
    %v972 = vshrl.u32 %v971, 7
    %v973 = vsub.s32 1, %v972
    %v974 = vrot.slane %v63, %v973
    %v975 = vadd.f32 %v970, %v974
    %v976 = vsel %vm207, %v975, -inf
    %977 = vmax.xlane.f32.xlu0 %v976
    %v978 = vpop.xlane.xlu0 %977
    %v979 = vsub.f32 %v975, %v978
    %v980 = vmul.f32 %v979, 1.442695
    %v981 = vpow.pop %v980
    %v982 = vsel %vm207, %v981, 0.0
    %983 = vadd.xlane.f32.xlu0 %v982
    %v984 = vpop.xlane.xlu0 %983
    %v985 = vrcp.pop %v984
    %v986 = vmul.f32 %v981, %v985
    %987 = vrot.lane.b32.xlu0 %v201, 64
    %v988 = vpop.permute.xlu0 %987
    %v991 = vsel %vm207, %v986, 0
    %993 = vmatprep.subr.mxu0 0.0
    %994 = vmatpush1.msra.mxu0 %v988
    %995 = vmatprep.subr.mxu0 0.0
    %996 = vmatpush1.msra.mxu0 0.0
    %997 = vmatprep.subr.mxu0 0.0
    %998 = vmatpush1.msra.mxu0 0.0
    %999 = vmatprep.subr.mxu0 0.0
    %1000 = vmatpush1.msra.mxu0 0.0
    %1001 = vmatprep.subr.mxu0 0.0
    %1002 = vmatpush1.msra.mxu0 0.0
    %1003 = vmatprep.subr.mxu0 0.0
    %1004 = vmatpush1.msra.mxu0 0.0
    %1005 = vmatprep.subr.mxu0 0.0
    %1006 = vmatpush1.msra.mxu0 0.0
    %1007 = vmatprep.subr.mxu0 0.0
    %1008 = vmatpush1.msra.mxu0 0.0
    %1009 = vmatprep.subr.mxu0 0.0
    %1010 = vmatpush1.msra.mxu0 0.0
    %1011 = vmatprep.subr.mxu0 0.0
    %1012 = vmatpush1.msra.mxu0 0.0
    %1013 = vmatprep.subr.mxu0 0.0
    %1014 = vmatpush1.msra.mxu0 0.0
    %1015 = vmatprep.subr.mxu0 0.0
    %1016 = vmatpush1.msra.mxu0 0.0
    %1017 = vmatprep.subr.mxu0 0.0
    %1018 = vmatpush1.msra.mxu0 0.0
    %1019 = vmatprep.subr.mxu0 0.0
    %1020 = vmatpush1.msra.mxu0 0.0
    %1021 = vmatprep.subr.mxu0 0.0
    %1022 = vmatpush1.msra.mxu0 0.0
    %1023 = vmatprep.subr.mxu0 0.0
    %1024 = vmatpush1.msra.mxu0 0.0
    %1025 = vmatprep.subr.mxu0 0.0
    %1026 = vmatpush1.msra.mxu0 0.0
    %1027 = vmatprep.subr.mxu0 0.0
    %1028 = vmatpush1.msra.mxu0 0.0
    %1029 = vmatprep.subr.mxu0 0.0
    %1030 = vmatpush1.msra.mxu0 0.0
    %1031 = vmatprep.subr.mxu0 0.0
    %1032 = vmatpush1.msra.mxu0 0.0
    %1033 = vmatprep.subr.mxu0 0.0
    %1034 = vmatpush1.msra.mxu0 0.0
    %1035 = vmatprep.subr.mxu0 0.0
    %1036 = vmatpush1.msra.mxu0 0.0
    %1037 = vmatprep.subr.mxu0 0.0
    %1038 = vmatpush1.msra.mxu0 0.0
    %1039 = vmatprep.subr.mxu0 0.0
    %1040 = vmatpush1.msra.mxu0 0.0
    %1041 = vmatprep.subr.mxu0 0.0
    %1042 = vmatpush1.msra.mxu0 0.0
    %1043 = vmatprep.subr.mxu0 0.0
    %1044 = vmatpush1.msra.mxu0 0.0
    %1045 = vmatprep.subr.mxu0 0.0
    %1046 = vmatpush1.msra.mxu0 0.0
    %1047 = vmatprep.subr.mxu0 0.0
    %1048 = vmatpush1.msra.mxu0 0.0
    %1049 = vmatprep.subr.mxu0 0.0
    %1050 = vmatpush1.msra.mxu0 0.0
    %1051 = vmatprep.subr.mxu0 0.0
    %1052 = vmatpush1.msra.mxu0 0.0
    %1053 = vmatprep.subr.mxu0 0.0
    %1054 = vmatpush1.msra.mxu0 0.0
    %1055 = vmatprep.subr.mxu0 0.0
    %1056 = vmatpush1.msra.mxu0 0.0
    %1057 = vmatprep.mubr.f32.mxu0 0.0
    %1058 = vmatmul.mubr.f32.gmra.mrb[0].mxu0 %v991
    %v1059 = vpop.f32.mrb[0].mxu0
    %v1060 = vadd.f32 0.0, %v1059
    %v1061 = vpop.f32.mrb[0].mxu0
    %1062 = vdwg.mxu0
    %1063 = vrot.lane.b32.xlu0 %v201, 120
    %v1064 = vpop.permute.xlu0 %1063
    %1065 = vrot.lane.b32.xlu0 %v201, 88
    %v1066 = vpop.permute.xlu0 %1065
    %v1067 = vsel %vm207, %v1064, 0
    %v1069 = vsel %vm207, %v1066, 0
    %1071 = vmatprep.subr.mxu0 0.0
    %1072 = vmatpush1.xpose.msra.mxu0 %v1069
    %1073 = vmatprep.subr.mxu0 0.0
    %1074 = vmatpush1.xpose.msra.mxu0 0.0
    %1075 = vmatprep.subr.mxu0 0.0
    %1076 = vmatpush1.xpose.msra.mxu0 0.0
    %1077 = vmatprep.subr.mxu0 0.0
    %1078 = vmatpush1.xpose.msra.mxu0 0.0
    %1079 = vmatprep.subr.mxu0 0.0
    %1080 = vmatpush1.xpose.msra.mxu0 0.0
    %1081 = vmatprep.subr.mxu0 0.0
    %1082 = vmatpush1.xpose.msra.mxu0 0.0
    %1083 = vmatprep.subr.mxu0 0.0
    %1084 = vmatpush1.xpose.msra.mxu0 0.0
    %1085 = vmatprep.subr.mxu0 0.0
    %1086 = vmatpush1.xpose.msra.mxu0 0.0
    %1087 = vmatprep.subr.mxu0 0.0
    %1088 = vmatpush1.xpose.msra.mxu0 0.0
    %1089 = vmatprep.subr.mxu0 0.0
    %1090 = vmatpush1.xpose.msra.mxu0 0.0
    %1091 = vmatprep.subr.mxu0 0.0
    %1092 = vmatpush1.xpose.msra.mxu0 0.0
    %1093 = vmatprep.subr.mxu0 0.0
    %1094 = vmatpush1.xpose.msra.mxu0 0.0
    %1095 = vmatprep.subr.mxu0 0.0
    %1096 = vmatpush1.xpose.msra.mxu0 0.0
    %1097 = vmatprep.subr.mxu0 0.0
    %1098 = vmatpush1.xpose.msra.mxu0 0.0
    %1099 = vmatprep.subr.mxu0 0.0
    %1100 = vmatpush1.xpose.msra.mxu0 0.0
    %1101 = vmatprep.subr.mxu0 0.0
    %1102 = vmatpush1.xpose.msra.mxu0 0.0
    %1103 = vmatprep.subr.mxu0 0.0
    %1104 = vmatpush1.xpose.msra.mxu0 0.0
    %1105 = vmatprep.subr.mxu0 0.0
    %1106 = vmatpush1.xpose.msra.mxu0 0.0
    %1107 = vmatprep.subr.mxu0 0.0
    %1108 = vmatpush1.xpose.msra.mxu0 0.0
    %1109 = vmatprep.subr.mxu0 0.0
    %1110 = vmatpush1.xpose.msra.mxu0 0.0
    %1111 = vmatprep.subr.mxu0 0.0
    %1112 = vmatpush1.xpose.msra.mxu0 0.0
    %1113 = vmatprep.subr.mxu0 0.0
    %1114 = vmatpush1.xpose.msra.mxu0 0.0
    %1115 = vmatprep.subr.mxu0 0.0
    %1116 = vmatpush1.xpose.msra.mxu0 0.0
    %1117 = vmatprep.subr.mxu0 0.0
    %1118 = vmatpush1.xpose.msra.mxu0 0.0
    %1119 = vmatprep.subr.mxu0 0.0
    %1120 = vmatpush1.xpose.msra.mxu0 0.0
    %1121 = vmatprep.subr.mxu0 0.0
    %1122 = vmatpush1.xpose.msra.mxu0 0.0
    %1123 = vmatprep.subr.mxu0 0.0
    %1124 = vmatpush1.xpose.msra.mxu0 0.0
    %1125 = vmatprep.subr.mxu0 0.0
    %1126 = vmatpush1.xpose.msra.mxu0 0.0
    %1127 = vmatprep.subr.mxu0 0.0
    %1128 = vmatpush1.xpose.msra.mxu0 0.0
    %1129 = vmatprep.subr.mxu0 0.0
    %1130 = vmatpush1.xpose.msra.mxu0 0.0
    %1131 = vmatprep.subr.mxu0 0.0
    %1132 = vmatpush1.xpose.msra.mxu0 0.0
    %1133 = vmatprep.subr.mxu0 0.0
    %1134 = vmatpush1.xpose.msra.mxu0 0.0
    %1135 = vmatprep.mubr.f32.mxu0 0.0
    %1136 = vmatmul.mubr.f32.gmra.mrb[0].mxu0 %v1067
    %v1137 = vpop.f32.mrb[0].mxu0
    %v1138 = vadd.f32 0.0, %v1137
    %v1139 = vpop.f32.mrb[0].mxu0
    %1140 = vdwg.mxu0
    %v1141 = vmul.f32 %v1138, 0.35355338
    %v1142 = vadd.f32 %v1141, %v974
    %v1143 = vsel %vm207, %v1142, -inf
    %1144 = vmax.xlane.f32.xlu0 %v1143
    %v1145 = vpop.xlane.xlu0 %1144
    %v1146 = vsub.f32 %v1142, %v1145
    %v1147 = vmul.f32 %v1146, 1.442695
    %v1148 = vpow.pop %v1147
    %v1149 = vsel %vm207, %v1148, 0.0
    %1150 = vadd.xlane.f32.xlu0 %v1149
    %v1151 = vpop.xlane.xlu0 %1150
    %v1152 = vrcp.pop %v1151
    %v1153 = vmul.f32 %v1148, %v1152
    %1154 = vrot.lane.b32.xlu0 %v201, 56
    %v1155 = vpop.permute.xlu0 %1154
    %v1158 = vsel %vm207, %v1153, 0
    %1160 = vmatprep.subr.mxu0 0.0
    %1161 = vmatpush1.msra.mxu0 %v1155
    %1162 = vmatprep.subr.mxu0 0.0
    %1163 = vmatpush1.msra.mxu0 0.0
    %1164 = vmatprep.subr.mxu0 0.0
    %1165 = vmatpush1.msra.mxu0 0.0
    %1166 = vmatprep.subr.mxu0 0.0
    %1167 = vmatpush1.msra.mxu0 0.0
    %1168 = vmatprep.subr.mxu0 0.0
    %1169 = vmatpush1.msra.mxu0 0.0
    %1170 = vmatprep.subr.mxu0 0.0
    %1171 = vmatpush1.msra.mxu0 0.0
    %1172 = vmatprep.subr.mxu0 0.0
    %1173 = vmatpush1.msra.mxu0 0.0
    %1174 = vmatprep.subr.mxu0 0.0
    %1175 = vmatpush1.msra.mxu0 0.0
    %1176 = vmatprep.subr.mxu0 0.0
    %1177 = vmatpush1.msra.mxu0 0.0
    %1178 = vmatprep.subr.mxu0 0.0
    %1179 = vmatpush1.msra.mxu0 0.0
    %1180 = vmatprep.subr.mxu0 0.0
    %1181 = vmatpush1.msra.mxu0 0.0
    %1182 = vmatprep.subr.mxu0 0.0
    %1183 = vmatpush1.msra.mxu0 0.0
    %1184 = vmatprep.subr.mxu0 0.0
    %1185 = vmatpush1.msra.mxu0 0.0
    %1186 = vmatprep.subr.mxu0 0.0
    %1187 = vmatpush1.msra.mxu0 0.0
    %1188 = vmatprep.subr.mxu0 0.0
    %1189 = vmatpush1.msra.mxu0 0.0
    %1190 = vmatprep.subr.mxu0 0.0
    %1191 = vmatpush1.msra.mxu0 0.0
    %1192 = vmatprep.subr.mxu0 0.0
    %1193 = vmatpush1.msra.mxu0 0.0
    %1194 = vmatprep.subr.mxu0 0.0
    %1195 = vmatpush1.msra.mxu0 0.0
    %1196 = vmatprep.subr.mxu0 0.0
    %1197 = vmatpush1.msra.mxu0 0.0
    %1198 = vmatprep.subr.mxu0 0.0
    %1199 = vmatpush1.msra.mxu0 0.0
    %1200 = vmatprep.subr.mxu0 0.0
    %1201 = vmatpush1.msra.mxu0 0.0
    %1202 = vmatprep.subr.mxu0 0.0
    %1203 = vmatpush1.msra.mxu0 0.0
    %1204 = vmatprep.subr.mxu0 0.0
    %1205 = vmatpush1.msra.mxu0 0.0
    %1206 = vmatprep.subr.mxu0 0.0
    %1207 = vmatpush1.msra.mxu0 0.0
    %1208 = vmatprep.subr.mxu0 0.0
    %1209 = vmatpush1.msra.mxu0 0.0
    %1210 = vmatprep.subr.mxu0 0.0
    %1211 = vmatpush1.msra.mxu0 0.0
    %1212 = vmatprep.subr.mxu0 0.0
    %1213 = vmatpush1.msra.mxu0 0.0
    %1214 = vmatprep.subr.mxu0 0.0
    %1215 = vmatpush1.msra.mxu0 0.0
    %1216 = vmatprep.subr.mxu0 0.0
    %1217 = vmatpush1.msra.mxu0 0.0
    %1218 = vmatprep.subr.mxu0 0.0
    %1219 = vmatpush1.msra.mxu0 0.0
    %1220 = vmatprep.subr.mxu0 0.0
    %1221 = vmatpush1.msra.mxu0 0.0
    %1222 = vmatprep.subr.mxu0 0.0
    %1223 = vmatpush1.msra.mxu0 0.0
    %1224 = vmatprep.mubr.f32.mxu0 0.0
    %1225 = vmatmul.mubr.f32.gmra.mrb[0].mxu0 %v1158
    %v1226 = vpop.f32.mrb[0].mxu0
    %v1227 = vadd.f32 0.0, %v1226
    %v1228 = vpop.f32.mrb[0].mxu0
    %1229 = vdwg.mxu0
    %1230 = vrot.lane.b32.xlu0 %v201, 112
    %v1231 = vpop.permute.xlu0 %1230
    %1232 = vrot.lane.b32.xlu0 %v201, 80
    %v1233 = vpop.permute.xlu0 %1232
    %v1234 = vsel %vm207, %v1231, 0
    %v1236 = vsel %vm207, %v1233, 0
    %1238 = vmatprep.subr.mxu0 0.0
    %1239 = vmatpush1.xpose.msra.mxu0 %v1236
    %1240 = vmatprep.subr.mxu0 0.0
    %1241 = vmatpush1.xpose.msra.mxu0 0.0
    %1242 = vmatprep.subr.mxu0 0.0
    %1243 = vmatpush1.xpose.msra.mxu0 0.0
    %1244 = vmatprep.subr.mxu0 0.0
    %1245 = vmatpush1.xpose.msra.mxu0 0.0
    %1246 = vmatprep.subr.mxu0 0.0
    %1247 = vmatpush1.xpose.msra.mxu0 0.0
    %1248 = vmatprep.subr.mxu0 0.0
    %1249 = vmatpush1.xpose.msra.mxu0 0.0
    %1250 = vmatprep.subr.mxu0 0.0
    %1251 = vmatpush1.xpose.msra.mxu0 0.0
    %1252 = vmatprep.subr.mxu0 0.0
    %1253 = vmatpush1.xpose.msra.mxu0 0.0
    %1254 = vmatprep.subr.mxu0 0.0
    %1255 = vmatpush1.xpose.msra.mxu0 0.0
    %1256 = vmatprep.subr.mxu0 0.0
    %1257 = vmatpush1.xpose.msra.mxu0 0.0
    %1258 = vmatprep.subr.mxu0 0.0
    %1259 = vmatpush1.xpose.msra.mxu0 0.0
    %1260 = vmatprep.subr.mxu0 0.0
    %1261 = vmatpush1.xpose.msra.mxu0 0.0
    %1262 = vmatprep.subr.mxu0 0.0
    %1263 = vmatpush1.xpose.msra.mxu0 0.0
    %1264 = vmatprep.subr.mxu0 0.0
    %1265 = vmatpush1.xpose.msra.mxu0 0.0
    %1266 = vmatprep.subr.mxu0 0.0
    %1267 = vmatpush1.xpose.msra.mxu0 0.0
    %1268 = vmatprep.subr.mxu0 0.0
    %1269 = vmatpush1.xpose.msra.mxu0 0.0
    %1270 = vmatprep.subr.mxu0 0.0
    %1271 = vmatpush1.xpose.msra.mxu0 0.0
    %1272 = vmatprep.subr.mxu0 0.0
    %1273 = vmatpush1.xpose.msra.mxu0 0.0
    %1274 = vmatprep.subr.mxu0 0.0
    %1275 = vmatpush1.xpose.msra.mxu0 0.0
    %1276 = vmatprep.subr.mxu0 0.0
    %1277 = vmatpush1.xpose.msra.mxu0 0.0
    %1278 = vmatprep.subr.mxu0 0.0
    %1279 = vmatpush1.xpose.msra.mxu0 0.0
    %1280 = vmatprep.subr.mxu0 0.0
    %1281 = vmatpush1.xpose.msra.mxu0 0.0
    %1282 = vmatprep.subr.mxu0 0.0
    %1283 = vmatpush1.xpose.msra.mxu0 0.0
    %1284 = vmatprep.subr.mxu0 0.0
    %1285 = vmatpush1.xpose.msra.mxu0 0.0
    %1286 = vmatprep.subr.mxu0 0.0
    %1287 = vmatpush1.xpose.msra.mxu0 0.0
    %1288 = vmatprep.subr.mxu0 0.0
    %1289 = vmatpush1.xpose.msra.mxu0 0.0
    %1290 = vmatprep.subr.mxu0 0.0
    %1291 = vmatpush1.xpose.msra.mxu0 0.0
    %1292 = vmatprep.subr.mxu0 0.0
    %1293 = vmatpush1.xpose.msra.mxu0 0.0
    %1294 = vmatprep.subr.mxu0 0.0
    %1295 = vmatpush1.xpose.msra.mxu0 0.0
    %1296 = vmatprep.subr.mxu0 0.0
    %1297 = vmatpush1.xpose.msra.mxu0 0.0
    %1298 = vmatprep.subr.mxu0 0.0
    %1299 = vmatpush1.xpose.msra.mxu0 0.0
    %1300 = vmatprep.subr.mxu0 0.0
    %1301 = vmatpush1.xpose.msra.mxu0 0.0
    %1302 = vmatprep.mubr.f32.mxu0 0.0
    %1303 = vmatmul.mubr.f32.gmra.mrb[0].mxu0 %v1234
    %v1304 = vpop.f32.mrb[0].mxu0
    %v1305 = vadd.f32 0.0, %v1304
    %v1306 = vpop.f32.mrb[0].mxu0
    %1307 = vdwg.mxu0
    %v1308 = vmul.f32 %v1305, 0.35355338
    %v1309 = vadd.f32 %v1308, %v974
    %v1310 = vsel %vm207, %v1309, -inf
    %1311 = vmax.xlane.f32.xlu0 %v1310
    %v1312 = vpop.xlane.xlu0 %1311
    %v1313 = vsub.f32 %v1309, %v1312
    %v1314 = vmul.f32 %v1313, 1.442695
    %v1315 = vpow.pop %v1314
    %v1316 = vsel %vm207, %v1315, 0.0
    %1317 = vadd.xlane.f32.xlu0 %v1316
    %v1318 = vpop.xlane.xlu0 %1317
    %v1319 = vrcp.pop %v1318
    %v1320 = vmul.f32 %v1315, %v1319
    %1321 = vrot.lane.b32.xlu0 %v201, 48
    %v1322 = vpop.permute.xlu0 %1321
    %v1325 = vsel %vm207, %v1320, 0
    %1327 = vmatprep.subr.mxu0 0.0
    %1328 = vmatpush1.msra.mxu0 %v1322
    %1329 = vmatprep.subr.mxu0 0.0
    %1330 = vmatpush1.msra.mxu0 0.0
    %1331 = vmatprep.subr.mxu0 0.0
    %1332 = vmatpush1.msra.mxu0 0.0
    %1333 = vmatprep.subr.mxu0 0.0
    %1334 = vmatpush1.msra.mxu0 0.0
    %1335 = vmatprep.subr.mxu0 0.0
    %1336 = vmatpush1.msra.mxu0 0.0
    %1337 = vmatprep.subr.mxu0 0.0
    %1338 = vmatpush1.msra.mxu0 0.0
    %1339 = vmatprep.subr.mxu0 0.0
    %1340 = vmatpush1.msra.mxu0 0.0
    %1341 = vmatprep.subr.mxu0 0.0
    %1342 = vmatpush1.msra.mxu0 0.0
    %1343 = vmatprep.subr.mxu0 0.0
    %1344 = vmatpush1.msra.mxu0 0.0
    %1345 = vmatprep.subr.mxu0 0.0
    %1346 = vmatpush1.msra.mxu0 0.0
    %1347 = vmatprep.subr.mxu0 0.0
    %1348 = vmatpush1.msra.mxu0 0.0
    %1349 = vmatprep.subr.mxu0 0.0
    %1350 = vmatpush1.msra.mxu0 0.0
    %1351 = vmatprep.subr.mxu0 0.0
    %1352 = vmatpush1.msra.mxu0 0.0
    %1353 = vmatprep.subr.mxu0 0.0
    %1354 = vmatpush1.msra.mxu0 0.0
    %1355 = vmatprep.subr.mxu0 0.0
    %1356 = vmatpush1.msra.mxu0 0.0
    %1357 = vmatprep.subr.mxu0 0.0
    %1358 = vmatpush1.msra.mxu0 0.0
    %1359 = vmatprep.subr.mxu0 0.0
    %1360 = vmatpush1.msra.mxu0 0.0
    %1361 = vmatprep.subr.mxu0 0.0
    %1362 = vmatpush1.msra.mxu0 0.0
    %1363 = vmatprep.subr.mxu0 0.0
    %1364 = vmatpush1.msra.mxu0 0.0
    %1365 = vmatprep.subr.mxu0 0.0
    %1366 = vmatpush1.msra.mxu0 0.0
    %1367 = vmatprep.subr.mxu0 0.0
    %1368 = vmatpush1.msra.mxu0 0.0
    %1369 = vmatprep.subr.mxu0 0.0
    %1370 = vmatpush1.msra.mxu0 0.0
    %1371 = vmatprep.subr.mxu0 0.0
    %1372 = vmatpush1.msra.mxu0 0.0
    %1373 = vmatprep.subr.mxu0 0.0
    %1374 = vmatpush1.msra.mxu0 0.0
    %1375 = vmatprep.subr.mxu0 0.0
    %1376 = vmatpush1.msra.mxu0 0.0
    %1377 = vmatprep.subr.mxu0 0.0
    %1378 = vmatpush1.msra.mxu0 0.0
    %1379 = vmatprep.subr.mxu0 0.0
    %1380 = vmatpush1.msra.mxu0 0.0
    %1381 = vmatprep.subr.mxu0 0.0
    %1382 = vmatpush1.msra.mxu0 0.0
    %1383 = vmatprep.subr.mxu0 0.0
    %1384 = vmatpush1.msra.mxu0 0.0
    %1385 = vmatprep.subr.mxu0 0.0
    %1386 = vmatpush1.msra.mxu0 0.0
    %1387 = vmatprep.subr.mxu0 0.0
    %1388 = vmatpush1.msra.mxu0 0.0
    %1389 = vmatprep.subr.mxu0 0.0
    %1390 = vmatpush1.msra.mxu0 0.0
    %1391 = vmatprep.mubr.f32.mxu0 0.0
    %1392 = vmatmul.mubr.f32.gmra.mrb[0].mxu0 %v1325
    %v1393 = vpop.f32.mrb[0].mxu0
    %v1394 = vadd.f32 0.0, %v1393
    %v1395 = vpop.f32.mrb[0].mxu0
    %1396 = vdwg.mxu0
    %1397 = vrot.lane.b32.xlu0 %v201, 104
    %v1398 = vpop.permute.xlu0 %1397
    %1399 = vrot.lane.b32.xlu0 %v201, 72
    %v1400 = vpop.permute.xlu0 %1399
    %v1401 = vsel %vm207, %v1398, 0
    %v1403 = vsel %vm207, %v1400, 0
    %1405 = vmatprep.subr.mxu0 0.0
    %1406 = vmatpush1.xpose.msra.mxu0 %v1403
    %1407 = vmatprep.subr.mxu0 0.0
    %1408 = vmatpush1.xpose.msra.mxu0 0.0
    %1409 = vmatprep.subr.mxu0 0.0
    %1410 = vmatpush1.xpose.msra.mxu0 0.0
    %1411 = vmatprep.subr.mxu0 0.0
    %1412 = vmatpush1.xpose.msra.mxu0 0.0
    %1413 = vmatprep.subr.mxu0 0.0
    %1414 = vmatpush1.xpose.msra.mxu0 0.0
    %1415 = vmatprep.subr.mxu0 0.0
    %1416 = vmatpush1.xpose.msra.mxu0 0.0
    %1417 = vmatprep.subr.mxu0 0.0
    %1418 = vmatpush1.xpose.msra.mxu0 0.0
    %1419 = vmatprep.subr.mxu0 0.0
    %1420 = vmatpush1.xpose.msra.mxu0 0.0
    %1421 = vmatprep.subr.mxu0 0.0
    %1422 = vmatpush1.xpose.msra.mxu0 0.0
    %1423 = vmatprep.subr.mxu0 0.0
    %1424 = vmatpush1.xpose.msra.mxu0 0.0
    %1425 = vmatprep.subr.mxu0 0.0
    %1426 = vmatpush1.xpose.msra.mxu0 0.0
    %1427 = vmatprep.subr.mxu0 0.0
    %1428 = vmatpush1.xpose.msra.mxu0 0.0
    %1429 = vmatprep.subr.mxu0 0.0
    %1430 = vmatpush1.xpose.msra.mxu0 0.0
    %1431 = vmatprep.subr.mxu0 0.0
    %1432 = vmatpush1.xpose.msra.mxu0 0.0
    %1433 = vmatprep.subr.mxu0 0.0
    %1434 = vmatpush1.xpose.msra.mxu0 0.0
    %1435 = vmatprep.subr.mxu0 0.0
    %1436 = vmatpush1.xpose.msra.mxu0 0.0
    %1437 = vmatprep.subr.mxu0 0.0
    %1438 = vmatpush1.xpose.msra.mxu0 0.0
    %1439 = vmatprep.subr.mxu0 0.0
    %1440 = vmatpush1.xpose.msra.mxu0 0.0
    %1441 = vmatprep.subr.mxu0 0.0
    %1442 = vmatpush1.xpose.msra.mxu0 0.0
    %1443 = vmatprep.subr.mxu0 0.0
    %1444 = vmatpush1.xpose.msra.mxu0 0.0
    %1445 = vmatprep.subr.mxu0 0.0
    %1446 = vmatpush1.xpose.msra.mxu0 0.0
    %1447 = vmatprep.subr.mxu0 0.0
    %1448 = vmatpush1.xpose.msra.mxu0 0.0
    %1449 = vmatprep.subr.mxu0 0.0
    %1450 = vmatpush1.xpose.msra.mxu0 0.0
    %1451 = vmatprep.subr.mxu0 0.0
    %1452 = vmatpush1.xpose.msra.mxu0 0.0
    %1453 = vmatprep.subr.mxu0 0.0
    %1454 = vmatpush1.xpose.msra.mxu0 0.0
    %1455 = vmatprep.subr.mxu0 0.0
    %1456 = vmatpush1.xpose.msra.mxu0 0.0
    %1457 = vmatprep.subr.mxu0 0.0
    %1458 = vmatpush1.xpose.msra.mxu0 0.0
    %1459 = vmatprep.subr.mxu0 0.0
    %1460 = vmatpush1.xpose.msra.mxu0 0.0
    %1461 = vmatprep.subr.mxu0 0.0
    %1462 = vmatpush1.xpose.msra.mxu0 0.0
    %1463 = vmatprep.subr.mxu0 0.0
    %1464 = vmatpush1.xpose.msra.mxu0 0.0
    %1465 = vmatprep.subr.mxu0 0.0
    %1466 = vmatpush1.xpose.msra.mxu0 0.0
    %1467 = vmatprep.subr.mxu0 0.0
    %1468 = vmatpush1.xpose.msra.mxu0 0.0
    %1469 = vmatprep.mubr.f32.mxu0 0.0
    %1470 = vmatmul.mubr.f32.gmra.mrb[0].mxu0 %v1401
    %v1471 = vpop.f32.mrb[0].mxu0
    %v1472 = vadd.f32 0.0, %v1471
    %v1473 = vpop.f32.mrb[0].mxu0
    %1474 = vdwg.mxu0
    %v1475 = vmul.f32 %v1472, 0.35355338
    %v1476 = vadd.f32 %v1475, %v974
    %v1477 = vsel %vm207, %v1476, -inf
    %1478 = vmax.xlane.f32.xlu0 %v1477
    %v1479 = vpop.xlane.xlu0 %1478
    %v1480 = vsub.f32 %v1476, %v1479
    %v1481 = vmul.f32 %v1480, 1.442695
    %v1482 = vpow.pop %v1481
    %v1483 = vsel %vm207, %v1482, 0.0
    %1484 = vadd.xlane.f32.xlu0 %v1483
    %v1485 = vpop.xlane.xlu0 %1484
    %v1486 = vrcp.pop %v1485
    %v1487 = vmul.f32 %v1482, %v1486
    %1488 = vrot.lane.b32.xlu0 %v201, 40
    %v1489 = vpop.permute.xlu0 %1488
    %v1492 = vsel %vm207, %v1487, 0
    %1494 = vmatprep.subr.mxu0 0.0
    %1495 = vmatpush1.msra.mxu0 %v1489
    %1496 = vmatprep.subr.mxu0 0.0
    %1497 = vmatpush1.msra.mxu0 0.0
    %1498 = vmatprep.subr.mxu0 0.0
    %1499 = vmatpush1.msra.mxu0 0.0
    %1500 = vmatprep.subr.mxu0 0.0
    %1501 = vmatpush1.msra.mxu0 0.0
    %1502 = vmatprep.subr.mxu0 0.0
    %1503 = vmatpush1.msra.mxu0 0.0
    %1504 = vmatprep.subr.mxu0 0.0
    %1505 = vmatpush1.msra.mxu0 0.0
    %1506 = vmatprep.subr.mxu0 0.0
    %1507 = vmatpush1.msra.mxu0 0.0
    %1508 = vmatprep.subr.mxu0 0.0
    %1509 = vmatpush1.msra.mxu0 0.0
    %1510 = vmatprep.subr.mxu0 0.0
    %1511 = vmatpush1.msra.mxu0 0.0
    %1512 = vmatprep.subr.mxu0 0.0
    %1513 = vmatpush1.msra.mxu0 0.0
    %1514 = vmatprep.subr.mxu0 0.0
    %1515 = vmatpush1.msra.mxu0 0.0
    %1516 = vmatprep.subr.mxu0 0.0
    %1517 = vmatpush1.msra.mxu0 0.0
    %1518 = vmatprep.subr.mxu0 0.0
    %1519 = vmatpush1.msra.mxu0 0.0
    %1520 = vmatprep.subr.mxu0 0.0
    %1521 = vmatpush1.msra.mxu0 0.0
    %1522 = vmatprep.subr.mxu0 0.0
    %1523 = vmatpush1.msra.mxu0 0.0
    %1524 = vmatprep.subr.mxu0 0.0
    %1525 = vmatpush1.msra.mxu0 0.0
    %1526 = vmatprep.subr.mxu0 0.0
    %1527 = vmatpush1.msra.mxu0 0.0
    %1528 = vmatprep.subr.mxu0 0.0
    %1529 = vmatpush1.msra.mxu0 0.0
    %1530 = vmatprep.subr.mxu0 0.0
    %1531 = vmatpush1.msra.mxu0 0.0
    %1532 = vmatprep.subr.mxu0 0.0
    %1533 = vmatpush1.msra.mxu0 0.0
    %1534 = vmatprep.subr.mxu0 0.0
    %1535 = vmatpush1.msra.mxu0 0.0
    %1536 = vmatprep.subr.mxu0 0.0
    %1537 = vmatpush1.msra.mxu0 0.0
    %1538 = vmatprep.subr.mxu0 0.0
    %1539 = vmatpush1.msra.mxu0 0.0
    %1540 = vmatprep.subr.mxu0 0.0
    %1541 = vmatpush1.msra.mxu0 0.0
    %1542 = vmatprep.subr.mxu0 0.0
    %1543 = vmatpush1.msra.mxu0 0.0
    %1544 = vmatprep.subr.mxu0 0.0
    %1545 = vmatpush1.msra.mxu0 0.0
    %1546 = vmatprep.subr.mxu0 0.0
    %1547 = vmatpush1.msra.mxu0 0.0
    %1548 = vmatprep.subr.mxu0 0.0
    %1549 = vmatpush1.msra.mxu0 0.0
    %1550 = vmatprep.subr.mxu0 0.0
    %1551 = vmatpush1.msra.mxu0 0.0
    %1552 = vmatprep.subr.mxu0 0.0
    %1553 = vmatpush1.msra.mxu0 0.0
    %1554 = vmatprep.subr.mxu0 0.0
    %1555 = vmatpush1.msra.mxu0 0.0
    %1556 = vmatprep.subr.mxu0 0.0
    %1557 = vmatpush1.msra.mxu0 0.0
    %1558 = vmatprep.mubr.f32.mxu0 0.0
    %1559 = vmatmul.mubr.f32.gmra.mrb[0].mxu0 %v1492
    %v1560 = vpop.f32.mrb[0].mxu0
    %v1561 = vadd.f32 0.0, %v1560
    %v1562 = vpop.f32.mrb[0].mxu0
    %1563 = vdwg.mxu0
    %1565 = vrot.lane.b32.xlu0 %v1227, 8
    %v1566 = vpop.permute.xlu0 %1565
    %1569 = vrot.lane.b32.xlu0 %v1394, 16
    %v1570 = vpop.permute.xlu0 %1569
    %1573 = vrot.lane.b32.xlu0 %v1561, 24
    %v1574 = vpop.permute.xlu0 %1573
    %v1576 = vsel %vm207, %v1060, %v1566
    %v1577 = vsel %vm889, %v1576, %v1570
    %v1578 = vsel %vm891, %v1577, %v1574
    %v1579 = vld [vmem:[%s6] sm:$0xff]
    %v1580 = vld [vmem:[%s6 + $0x8] sm:$0xff]
    %v1581 = vld [vmem:[%s6 + $0x10] sm:$0xff]
    %v1582 = vld [vmem:[%s6 + $0x18] sm:$0xff]
    %v1583 = vld [vmem:[%s7] sm:$0x1]
    %v1585 = vlaneseq
    %v1586 = vshrl.u32 %v1585, 7
    %v1587 = vsub.s32 0, %v1586
    %v1588 = vrot.slane %v1583, %v1587
    %v1591 = vsel %vm68, %v892, 0
    %v1594 = vsel %vm68, %v1578, 0
    %1596 = vmatprep.subr.mxu0 0.0
    %1597 = vmatpush1.msra.mxu0 %v1579
    %1598 = vmatprep.subr.mxu0 0.0
    %1599 = vmatpush1.msra.mxu0 %v1580
    %1600 = vmatprep.subr.mxu0 0.0
    %1601 = vmatpush1.msra.mxu0 %v1581
    %1602 = vmatprep.subr.mxu0 0.0
    %1603 = vmatpush1.msra.mxu0 %v1582
    %1604 = vmatprep.subr.mxu0 0.0
    %1605 = vmatpush1.msra.mxu0 0.0
    %1606 = vmatprep.subr.mxu0 0.0
    %1607 = vmatpush1.msra.mxu0 0.0
    %1608 = vmatprep.subr.mxu0 0.0
    %1609 = vmatpush1.msra.mxu0 0.0
    %1610 = vmatprep.subr.mxu0 0.0
    %1611 = vmatpush1.msra.mxu0 0.0
    %1612 = vmatprep.subr.mxu0 0.0
    %1613 = vmatpush1.msra.mxu0 0.0
    %1614 = vmatprep.subr.mxu0 0.0
    %1615 = vmatpush1.msra.mxu0 0.0
    %1616 = vmatprep.subr.mxu0 0.0
    %1617 = vmatpush1.msra.mxu0 0.0
    %1618 = vmatprep.subr.mxu0 0.0
    %1619 = vmatpush1.msra.mxu0 0.0
    %1620 = vmatprep.subr.mxu0 0.0
    %1621 = vmatpush1.msra.mxu0 0.0
    %1622 = vmatprep.subr.mxu0 0.0
    %1623 = vmatpush1.msra.mxu0 0.0
    %1624 = vmatprep.subr.mxu0 0.0
    %1625 = vmatpush1.msra.mxu0 0.0
    %1626 = vmatprep.subr.mxu0 0.0
    %1627 = vmatpush1.msra.mxu0 0.0
    %1628 = vmatprep.subr.mxu0 0.0
    %1629 = vmatpush1.msra.mxu0 0.0
    %1630 = vmatprep.subr.mxu0 0.0
    %1631 = vmatpush1.msra.mxu0 0.0
    %1632 = vmatprep.subr.mxu0 0.0
    %1633 = vmatpush1.msra.mxu0 0.0
    %1634 = vmatprep.subr.mxu0 0.0
    %1635 = vmatpush1.msra.mxu0 0.0
    %1636 = vmatprep.subr.mxu0 0.0
    %1637 = vmatpush1.msra.mxu0 0.0
    %1638 = vmatprep.subr.mxu0 0.0
    %1639 = vmatpush1.msra.mxu0 0.0
    %1640 = vmatprep.subr.mxu0 0.0
    %1641 = vmatpush1.msra.mxu0 0.0
    %1642 = vmatprep.subr.mxu0 0.0
    %1643 = vmatpush1.msra.mxu0 0.0
    %1644 = vmatprep.subr.mxu0 0.0
    %1645 = vmatpush1.msra.mxu0 0.0
    %1646 = vmatprep.subr.mxu0 0.0
    %1647 = vmatpush1.msra.mxu0 0.0
    %1648 = vmatprep.subr.mxu0 0.0
    %1649 = vmatpush1.msra.mxu0 0.0
    %1650 = vmatprep.subr.mxu0 0.0
    %1651 = vmatpush1.msra.mxu0 0.0
    %1652 = vmatprep.subr.mxu0 0.0
    %1653 = vmatpush1.msra.mxu0 0.0
    %1654 = vmatprep.subr.mxu0 0.0
    %1655 = vmatpush1.msra.mxu0 0.0
    %1656 = vmatprep.subr.mxu0 0.0
    %1657 = vmatpush1.msra.mxu0 0.0
    %1658 = vmatprep.subr.mxu0 0.0
    %1659 = vmatpush1.msra.mxu0 0.0
    %1660 = vmatprep.mubr.f32.mxu0 0.0
    %1661 = vmatmul.mubr.f32.gmra.mrb[0].mxu0 %v1591
    %v1662 = vpop.f32.mrb[0].mxu0
    %v1663 = vadd.f32 %v1588, %v1662
    %v1664 = vpop.f32.mrb[0].mxu0
    %1665 = vmatprep.mubr.f32.mxu0 0.0
    %1666 = vmatmul.mubr.f32.gmra.mrb[0].mxu0 %v1594
    %v1667 = vpop.f32.mrb[0].mxu0
    %v1668 = vadd.f32 %v1588, %v1667
    %v1669 = vpop.f32.mrb[0].mxu0
    %1670 = vdwg.mxu0
    %v1671 = vadd.f32 %v1663, %v110
    %v1672 = vadd.f32 %v1668, %v111
    %v1673 = vld [vmem:[%s8] sm:$0x1]
    %v1674 = vld [vmem:[%s9] sm:$0x1]
    %v1675 = vsel %vm68, %v1671, 0.0
    %1676 = vadd.xlane.f32.xlu0 %v1675
    %v1677 = vpop.xlane.xlu0 %1676
    %v1678 = vsel %vm68, %v1672, 0.0
    %1679 = vadd.xlane.f32.xlu0 %v1678
    %v1680 = vpop.xlane.xlu0 %1679
    %v1681 = vmul.f32 %v1677, %v75
    %v1682 = vmul.f32 %v1680, %v75
    %v1683 = vsub.f32 %v1671, %v1681
    %v1684 = vsub.f32 %v1672, %v1682
    %v1685 = vmul.f32 %v1683, %v1683
    %v1686 = vmul.f32 %v1684, %v1684
    %v1687 = vsel %vm68, %v1685, 0.0
    %1688 = vadd.xlane.f32.xlu0 %v1687
    %v1689 = vpop.xlane.xlu0 %1688
    %v1690 = vsel %vm68, %v1686, 0.0
    %1691 = vadd.xlane.f32.xlu0 %v1690
    %v1692 = vpop.xlane.xlu0 %1691
    %v1693 = vmul.f32 %v1689, %v75
    %v1694 = vmul.f32 %v1692, %v75
    %v1695 = vadd.f32 %v1693, 1e-12
    %v1696 = vadd.f32 %v1694, 1e-12
    %v1697 = vrsqrt.pop %v1695
    %v1698 = vrsqrt.pop %v1696
    %v1699 = vmul.f32 %v1683, %v1697
    %v1700 = vmul.f32 %v1684, %v1698
    %v1702 = vlaneseq
    %v1703 = vshrl.u32 %v1702, 7
    %v1704 = vsub.s32 0, %v1703
    %v1705 = vrot.slane %v1673, %v1704
    %v1707 = vmul.f32 %v1699, %v1705
    %v1708 = vmul.f32 %v1700, %v1705
    %v1710 = vlaneseq
    %v1711 = vshrl.u32 %v1710, 7
    %v1712 = vsub.s32 0, %v1711
    %v1713 = vrot.slane %v1674, %v1712
    %v1715 = vadd.f32 %v1707, %v1713
    %v1716 = vadd.f32 %v1708, %v1713
    %v1717 = vld [vmem:[%s10] sm:$0xff]
    %v1718 = vld [vmem:[%s10 + $0x8] sm:$0xff]
    %v1719 = vld [vmem:[%s10 + $0x10] sm:$0xff]
    %v1720 = vld [vmem:[%s10 + $0x18] sm:$0xff]
    %v1721 = vld [vmem:[%s11] sm:$0x1]
    %v1723 = vlaneseq
    %v1724 = vshrl.u32 %v1723, 7
    %v1725 = vsub.s32 0, %v1724
    %v1726 = vrot.slane %v1721, %v1725
    %v1729 = vsel %vm68, %v1715, 0
    %v1732 = vsel %vm68, %v1716, 0
    %1734 = vmatprep.subr.mxu0 0.0
    %1735 = vmatpush1.msra.mxu0 %v1717
    %1736 = vmatprep.subr.mxu0 0.0
    %1737 = vmatpush1.msra.mxu0 %v1718
    %1738 = vmatprep.subr.mxu0 0.0
    %1739 = vmatpush1.msra.mxu0 %v1719
    %1740 = vmatprep.subr.mxu0 0.0
    %1741 = vmatpush1.msra.mxu0 %v1720
    %1742 = vmatprep.subr.mxu0 0.0
    %1743 = vmatpush1.msra.mxu0 0.0
    %1744 = vmatprep.subr.mxu0 0.0
    %1745 = vmatpush1.msra.mxu0 0.0
    %1746 = vmatprep.subr.mxu0 0.0
    %1747 = vmatpush1.msra.mxu0 0.0
    %1748 = vmatprep.subr.mxu0 0.0
    %1749 = vmatpush1.msra.mxu0 0.0
    %1750 = vmatprep.subr.mxu0 0.0
    %1751 = vmatpush1.msra.mxu0 0.0
    %1752 = vmatprep.subr.mxu0 0.0
    %1753 = vmatpush1.msra.mxu0 0.0
    %1754 = vmatprep.subr.mxu0 0.0
    %1755 = vmatpush1.msra.mxu0 0.0
    %1756 = vmatprep.subr.mxu0 0.0
    %1757 = vmatpush1.msra.mxu0 0.0
    %1758 = vmatprep.subr.mxu0 0.0
    %1759 = vmatpush1.msra.mxu0 0.0
    %1760 = vmatprep.subr.mxu0 0.0
    %1761 = vmatpush1.msra.mxu0 0.0
    %1762 = vmatprep.subr.mxu0 0.0
    %1763 = vmatpush1.msra.mxu0 0.0
    %1764 = vmatprep.subr.mxu0 0.0
    %1765 = vmatpush1.msra.mxu0 0.0
    %1766 = vmatprep.subr.mxu0 0.0
    %1767 = vmatpush1.msra.mxu0 0.0
    %1768 = vmatprep.subr.mxu0 0.0
    %1769 = vmatpush1.msra.mxu0 0.0
    %1770 = vmatprep.subr.mxu0 0.0
    %1771 = vmatpush1.msra.mxu0 0.0
    %1772 = vmatprep.subr.mxu0 0.0
    %1773 = vmatpush1.msra.mxu0 0.0
    %1774 = vmatprep.subr.mxu0 0.0
    %1775 = vmatpush1.msra.mxu0 0.0
    %1776 = vmatprep.subr.mxu0 0.0
    %1777 = vmatpush1.msra.mxu0 0.0
    %1778 = vmatprep.subr.mxu0 0.0
    %1779 = vmatpush1.msra.mxu0 0.0
    %1780 = vmatprep.subr.mxu0 0.0
    %1781 = vmatpush1.msra.mxu0 0.0
    %1782 = vmatprep.subr.mxu0 0.0
    %1783 = vmatpush1.msra.mxu0 0.0
    %1784 = vmatprep.subr.mxu0 0.0
    %1785 = vmatpush1.msra.mxu0 0.0
    %1786 = vmatprep.subr.mxu0 0.0
    %1787 = vmatpush1.msra.mxu0 0.0
    %1788 = vmatprep.subr.mxu0 0.0
    %1789 = vmatpush1.msra.mxu0 0.0
    %1790 = vmatprep.subr.mxu0 0.0
    %1791 = vmatpush1.msra.mxu0 0.0
    %1792 = vmatprep.subr.mxu0 0.0
    %1793 = vmatpush1.msra.mxu0 0.0
    %1794 = vmatprep.subr.mxu0 0.0
    %1795 = vmatpush1.msra.mxu0 0.0
    %1796 = vmatprep.subr.mxu0 0.0
    %1797 = vmatpush1.msra.mxu0 0.0
    %1798 = vmatprep.mubr.f32.mxu0 0.0
    %1799 = vmatmul.mubr.f32.gmra.mrb[0].mxu0 %v1729
    %v1800 = vpop.f32.mrb[0].mxu0
    %v1801 = vadd.f32 %v1726, %v1800
    %v1802 = vpop.f32.mrb[0].mxu0
    %1803 = vmatprep.mubr.f32.mxu0 0.0
    %1804 = vmatmul.mubr.f32.gmra.mrb[0].mxu0 %v1732
    %v1805 = vpop.f32.mrb[0].mxu0
    %v1806 = vadd.f32 %v1726, %v1805
    %v1807 = vpop.f32.mrb[0].mxu0
    %1808 = vdwg.mxu0
    %v1809 = vmul.f32 %v1801, 0.5
    %v1810 = vmul.f32 %v1806, 0.5
    %v1811 = vmul.f32 %v1801, 0.044715
    %v1812 = vmul.f32 %v1806, 0.044715
    %v1813 = vmul.f32 %v1811, %v1801
    %v1814 = vmul.f32 %v1812, %v1806
    %v1815 = vmul.f32 %v1813, %v1801
    %v1816 = vmul.f32 %v1814, %v1806
    %v1817 = vadd.f32 %v1801, %v1815
    %v1818 = vadd.f32 %v1806, %v1816
    %v1819 = vmul.f32 %v1817, 0.7978846
    %v1820 = vmul.f32 %v1818, 0.7978846
    %v1821 = vtanh.pop %v1819
    %v1822 = vtanh.pop %v1820
    %v1823 = vadd.f32 %v1821, 1.0
    %v1824 = vadd.f32 %v1822, 1.0
    %v1825 = vmul.f32 %v1809, %v1823
    %v1826 = vmul.f32 %v1810, %v1824
    %v1827 = vld [vmem:[%s12] sm:$0xff]
    %v1828 = vld [vmem:[%s12 + $0x8] sm:$0xff]
    %v1829 = vld [vmem:[%s12 + $0x10] sm:$0xff]
    %v1830 = vld [vmem:[%s12 + $0x18] sm:$0xff]
    %v1831 = vld [vmem:[%s12 + $0x20] sm:$0xff]
    %v1832 = vld [vmem:[%s12 + $0x28] sm:$0xff]
    %v1833 = vld [vmem:[%s12 + $0x30] sm:$0xff]
    %v1834 = vld [vmem:[%s12 + $0x38] sm:$0xff]
    %v1835 = vld [vmem:[%s13] sm:$0x1]
    %v1837 = vlaneseq
    %v1838 = vshrl.u32 %v1837, 7
    %v1839 = vsub.s32 0, %v1838
    %v1840 = vrot.slane %v1835, %v1839
    %vm1842 = vcmask 523264
    %v1844 = vsel %vm1842, %v1825, 0
    %v1847 = vsel %vm1842, %v1826, 0
    %1849 = vmatprep.subr.mxu0 0.0
    %1850 = vmatpush1.msra.mxu0 %v1827
    %1851 = vmatprep.subr.mxu0 0.0
    %1852 = vmatpush1.msra.mxu0 %v1828
    %1853 = vmatprep.subr.mxu0 0.0
    %1854 = vmatpush1.msra.mxu0 %v1829
    %1855 = vmatprep.subr.mxu0 0.0
    %1856 = vmatpush1.msra.mxu0 %v1830
    %1857 = vmatprep.subr.mxu0 0.0
    %1858 = vmatpush1.msra.mxu0 %v1831
    %1859 = vmatprep.subr.mxu0 0.0
    %1860 = vmatpush1.msra.mxu0 %v1832
    %1861 = vmatprep.subr.mxu0 0.0
    %1862 = vmatpush1.msra.mxu0 %v1833
    %1863 = vmatprep.subr.mxu0 0.0
    %1864 = vmatpush1.msra.mxu0 %v1834
    %1865 = vmatprep.subr.mxu0 0.0
    %1866 = vmatpush1.msra.mxu0 0.0
    %1867 = vmatprep.subr.mxu0 0.0
    %1868 = vmatpush1.msra.mxu0 0.0
    %1869 = vmatprep.subr.mxu0 0.0
    %1870 = vmatpush1.msra.mxu0 0.0
    %1871 = vmatprep.subr.mxu0 0.0
    %1872 = vmatpush1.msra.mxu0 0.0
    %1873 = vmatprep.subr.mxu0 0.0
    %1874 = vmatpush1.msra.mxu0 0.0
    %1875 = vmatprep.subr.mxu0 0.0
    %1876 = vmatpush1.msra.mxu0 0.0
    %1877 = vmatprep.subr.mxu0 0.0
    %1878 = vmatpush1.msra.mxu0 0.0
    %1879 = vmatprep.subr.mxu0 0.0
    %1880 = vmatpush1.msra.mxu0 0.0
    %1881 = vmatprep.subr.mxu0 0.0
    %1882 = vmatpush1.msra.mxu0 0.0
    %1883 = vmatprep.subr.mxu0 0.0
    %1884 = vmatpush1.msra.mxu0 0.0
    %1885 = vmatprep.subr.mxu0 0.0
    %1886 = vmatpush1.msra.mxu0 0.0
    %1887 = vmatprep.subr.mxu0 0.0
    %1888 = vmatpush1.msra.mxu0 0.0
    %1889 = vmatprep.subr.mxu0 0.0
    %1890 = vmatpush1.msra.mxu0 0.0
    %1891 = vmatprep.subr.mxu0 0.0
    %1892 = vmatpush1.msra.mxu0 0.0
    %1893 = vmatprep.subr.mxu0 0.0
    %1894 = vmatpush1.msra.mxu0 0.0
    %1895 = vmatprep.subr.mxu0 0.0
    %1896 = vmatpush1.msra.mxu0 0.0
    %1897 = vmatprep.subr.mxu0 0.0
    %1898 = vmatpush1.msra.mxu0 0.0
    %1899 = vmatprep.subr.mxu0 0.0
    %1900 = vmatpush1.msra.mxu0 0.0
    %1901 = vmatprep.subr.mxu0 0.0
    %1902 = vmatpush1.msra.mxu0 0.0
    %1903 = vmatprep.subr.mxu0 0.0
    %1904 = vmatpush1.msra.mxu0 0.0
    %1905 = vmatprep.subr.mxu0 0.0
    %1906 = vmatpush1.msra.mxu0 0.0
    %1907 = vmatprep.subr.mxu0 0.0
    %1908 = vmatpush1.msra.mxu0 0.0
    %1909 = vmatprep.subr.mxu0 0.0
    %1910 = vmatpush1.msra.mxu0 0.0
    %1911 = vmatprep.subr.mxu0 0.0
    %1912 = vmatpush1.msra.mxu0 0.0
    %1913 = vmatprep.mubr.f32.mxu0 0.0
    %1914 = vmatmul.mubr.f32.gmra.mrb[0].mxu0 %v1844
    %v1915 = vpop.f32.mrb[0].mxu0
    %v1916 = vadd.f32 %v1840, %v1915
    %v1917 = vpop.f32.mrb[0].mxu0
    %1918 = vmatprep.mubr.f32.mxu0 0.0
    %1919 = vmatmul.mubr.f32.gmra.mrb[0].mxu0 %v1847
    %v1920 = vpop.f32.mrb[0].mxu0
    %v1921 = vadd.f32 %v1840, %v1920
    %v1922 = vpop.f32.mrb[0].mxu0
    %1923 = vdwg.mxu0
    %v1924 = vadd.f32 %v1916, %v1715
    %v1925 = vadd.f32 %v1921, %v1716
    %v1926 = vld [vmem:[%s14] sm:$0x1]
    %v1927 = vld [vmem:[%s15] sm:$0x1]
    %v1928 = vsel %vm68, %v1924, 0.0
    %1929 = vadd.xlane.f32.xlu0 %v1928
    %v1930 = vpop.xlane.xlu0 %1929
    %v1931 = vsel %vm68, %v1925, 0.0
    %1932 = vadd.xlane.f32.xlu0 %v1931
    %v1933 = vpop.xlane.xlu0 %1932
    %v1934 = vmul.f32 %v1930, %v75
    %v1935 = vmul.f32 %v1933, %v75
    %v1936 = vsub.f32 %v1924, %v1934
    %v1937 = vsub.f32 %v1925, %v1935
    %v1938 = vmul.f32 %v1936, %v1936
    %v1939 = vmul.f32 %v1937, %v1937
    %v1940 = vsel %vm68, %v1938, 0.0
    %1941 = vadd.xlane.f32.xlu0 %v1940
    %v1942 = vpop.xlane.xlu0 %1941
    %v1943 = vsel %vm68, %v1939, 0.0
    %1944 = vadd.xlane.f32.xlu0 %v1943
    %v1945 = vpop.xlane.xlu0 %1944
    %v1946 = vmul.f32 %v1942, %v75
    %v1947 = vmul.f32 %v1945, %v75
    %v1948 = vadd.f32 %v1946, 1e-12
    %v1949 = vadd.f32 %v1947, 1e-12
    %v1950 = vrsqrt.pop %v1948
    %v1951 = vrsqrt.pop %v1949
    %v1952 = vmul.f32 %v1936, %v1950
    %v1953 = vmul.f32 %v1937, %v1951
    %v1955 = vlaneseq
    %v1956 = vshrl.u32 %v1955, 7
    %v1957 = vsub.s32 0, %v1956
    %v1958 = vrot.slane %v1926, %v1957
    %v1960 = vmul.f32 %v1952, %v1958
    %v1961 = vmul.f32 %v1953, %v1958
    %v1963 = vlaneseq
    %v1964 = vshrl.u32 %v1963, 7
    %v1965 = vsub.s32 0, %v1964
    %v1966 = vrot.slane %v1927, %v1965
    %v1968 = vadd.f32 %v1960, %v1966
    %v1969 = vadd.f32 %v1961, %v1966
    %s1970 = scalar_lea.vmem %s4, 32
    %v1971 = vld [vmem:[%s1970] sm:$0xff]
    %v1972 = vld [vmem:[%s1970 + $0x8] sm:$0xff]
    %v1973 = vld [vmem:[%s1970 + $0x10] sm:$0xff]
    %v1974 = vld [vmem:[%s1970 + $0x18] sm:$0xff]
    %s1975 = scalar_lea.vmem %s5, 1
    %v1976 = vld [vmem:[%s1975] sm:$0x1]
    %v1978 = vlaneseq
    %v1979 = vshrl.u32 %v1978, 7
    %v1980 = vsub.s32 0, %v1979
    %v1981 = vrot.slane %v1976, %v1980
    %v1984 = vsel %vm68, %v1968, 0
    %v1987 = vsel %vm68, %v1969, 0
    %1989 = vmatprep.subr.mxu0 0.0
    %1990 = vmatpush1.msra.mxu0 %v1971
    %1991 = vmatprep.subr.mxu0 0.0
    %1992 = vmatpush1.msra.mxu0 %v1972
    %1993 = vmatprep.subr.mxu0 0.0
    %1994 = vmatpush1.msra.mxu0 %v1973
    %1995 = vmatprep.subr.mxu0 0.0
    %1996 = vmatpush1.msra.mxu0 %v1974
    %1997 = vmatprep.subr.mxu0 0.0
    %1998 = vmatpush1.msra.mxu0 0.0
    %1999 = vmatprep.subr.mxu0 0.0
    %2000 = vmatpush1.msra.mxu0 0.0
    %2001 = vmatprep.subr.mxu0 0.0
    %2002 = vmatpush1.msra.mxu0 0.0
    %2003 = vmatprep.subr.mxu0 0.0
    %2004 = vmatpush1.msra.mxu0 0.0
    %2005 = vmatprep.subr.mxu0 0.0
    %2006 = vmatpush1.msra.mxu0 0.0
    %2007 = vmatprep.subr.mxu0 0.0
    %2008 = vmatpush1.msra.mxu0 0.0
    %2009 = vmatprep.subr.mxu0 0.0
    %2010 = vmatpush1.msra.mxu0 0.0
    %2011 = vmatprep.subr.mxu0 0.0
    %2012 = vmatpush1.msra.mxu0 0.0
    %2013 = vmatprep.subr.mxu0 0.0
    %2014 = vmatpush1.msra.mxu0 0.0
    %2015 = vmatprep.subr.mxu0 0.0
    %2016 = vmatpush1.msra.mxu0 0.0
    %2017 = vmatprep.subr.mxu0 0.0
    %2018 = vmatpush1.msra.mxu0 0.0
    %2019 = vmatprep.subr.mxu0 0.0
    %2020 = vmatpush1.msra.mxu0 0.0
    %2021 = vmatprep.subr.mxu0 0.0
    %2022 = vmatpush1.msra.mxu0 0.0
    %2023 = vmatprep.subr.mxu0 0.0
    %2024 = vmatpush1.msra.mxu0 0.0
    %2025 = vmatprep.subr.mxu0 0.0
    %2026 = vmatpush1.msra.mxu0 0.0
    %2027 = vmatprep.subr.mxu0 0.0
    %2028 = vmatpush1.msra.mxu0 0.0
    %2029 = vmatprep.subr.mxu0 0.0
    %2030 = vmatpush1.msra.mxu0 0.0
    %2031 = vmatprep.subr.mxu0 0.0
    %2032 = vmatpush1.msra.mxu0 0.0
    %2033 = vmatprep.subr.mxu0 0.0
    %2034 = vmatpush1.msra.mxu0 0.0
    %2035 = vmatprep.subr.mxu0 0.0
    %2036 = vmatpush1.msra.mxu0 0.0
    %2037 = vmatprep.subr.mxu0 0.0
    %2038 = vmatpush1.msra.mxu0 0.0
    %2039 = vmatprep.subr.mxu0 0.0
    %2040 = vmatpush1.msra.mxu0 0.0
    %2041 = vmatprep.subr.mxu0 0.0
    %2042 = vmatpush1.msra.mxu0 0.0
    %2043 = vmatprep.subr.mxu0 0.0
    %2044 = vmatpush1.msra.mxu0 0.0
    %2045 = vmatprep.subr.mxu0 0.0
    %2046 = vmatpush1.msra.mxu0 0.0
    %2047 = vmatprep.subr.mxu0 0.0
    %2048 = vmatpush1.msra.mxu0 0.0
    %2049 = vmatprep.subr.mxu0 0.0
    %2050 = vmatpush1.msra.mxu0 0.0
    %2051 = vmatprep.subr.mxu0 0.0
    %2052 = vmatpush1.msra.mxu0 0.0
    %2053 = vmatprep.mubr.f32.mxu0 0.0
    %2054 = vmatmul.mubr.f32.gmra.mrb[0].mxu0 %v1984
    %v2055 = vpop.f32.mrb[0].mxu0
    %v2056 = vadd.f32 %v1981, %v2055
    %v2057 = vpop.f32.mrb[0].mxu0
    %2058 = vmatprep.mubr.f32.mxu0 0.0
    %2059 = vmatmul.mubr.f32.gmra.mrb[0].mxu0 %v1987
    %v2060 = vpop.f32.mrb[0].mxu0
    %v2061 = vadd.f32 %v1981, %v2060
    %v2062 = vpop.f32.mrb[0].mxu0
    %2063 = vdwg.mxu0
    %2065 = vrot.lane.b32.xlu0 %v2056, 96
    %v2066 = vpop.permute.xlu0 %2065
    %v2067 = vsel %vm207, %v2056, 0
    %v2069 = vsel %vm207, %v2066, 0
    %2071 = vmatprep.subr.mxu0 0.0
    %2072 = vmatpush1.xpose.msra.mxu0 %v2069
    %2073 = vmatprep.subr.mxu0 0.0
    %2074 = vmatpush1.xpose.msra.mxu0 0.0
    %2075 = vmatprep.subr.mxu0 0.0
    %2076 = vmatpush1.xpose.msra.mxu0 0.0
    %2077 = vmatprep.subr.mxu0 0.0
    %2078 = vmatpush1.xpose.msra.mxu0 0.0
    %2079 = vmatprep.subr.mxu0 0.0
    %2080 = vmatpush1.xpose.msra.mxu0 0.0
    %2081 = vmatprep.subr.mxu0 0.0
    %2082 = vmatpush1.xpose.msra.mxu0 0.0
    %2083 = vmatprep.subr.mxu0 0.0
    %2084 = vmatpush1.xpose.msra.mxu0 0.0
    %2085 = vmatprep.subr.mxu0 0.0
    %2086 = vmatpush1.xpose.msra.mxu0 0.0
    %2087 = vmatprep.subr.mxu0 0.0
    %2088 = vmatpush1.xpose.msra.mxu0 0.0
    %2089 = vmatprep.subr.mxu0 0.0
    %2090 = vmatpush1.xpose.msra.mxu0 0.0
    %2091 = vmatprep.subr.mxu0 0.0
    %2092 = vmatpush1.xpose.msra.mxu0 0.0
    %2093 = vmatprep.subr.mxu0 0.0
    %2094 = vmatpush1.xpose.msra.mxu0 0.0
    %2095 = vmatprep.subr.mxu0 0.0
    %2096 = vmatpush1.xpose.msra.mxu0 0.0
    %2097 = vmatprep.subr.mxu0 0.0
    %2098 = vmatpush1.xpose.msra.mxu0 0.0
    %2099 = vmatprep.subr.mxu0 0.0
    %2100 = vmatpush1.xpose.msra.mxu0 0.0
    %2101 = vmatprep.subr.mxu0 0.0
    %2102 = vmatpush1.xpose.msra.mxu0 0.0
    %2103 = vmatprep.subr.mxu0 0.0
    %2104 = vmatpush1.xpose.msra.mxu0 0.0
    %2105 = vmatprep.subr.mxu0 0.0
    %2106 = vmatpush1.xpose.msra.mxu0 0.0
    %2107 = vmatprep.subr.mxu0 0.0
    %2108 = vmatpush1.xpose.msra.mxu0 0.0
    %2109 = vmatprep.subr.mxu0 0.0
    %2110 = vmatpush1.xpose.msra.mxu0 0.0
    %2111 = vmatprep.subr.mxu0 0.0
    %2112 = vmatpush1.xpose.msra.mxu0 0.0
    %2113 = vmatprep.subr.mxu0 0.0
    %2114 = vmatpush1.xpose.msra.mxu0 0.0
    %2115 = vmatprep.subr.mxu0 0.0
    %2116 = vmatpush1.xpose.msra.mxu0 0.0
    %2117 = vmatprep.subr.mxu0 0.0
    %2118 = vmatpush1.xpose.msra.mxu0 0.0
    %2119 = vmatprep.subr.mxu0 0.0
    %2120 = vmatpush1.xpose.msra.mxu0 0.0
    %2121 = vmatprep.subr.mxu0 0.0
    %2122 = vmatpush1.xpose.msra.mxu0 0.0
    %2123 = vmatprep.subr.mxu0 0.0
    %2124 = vmatpush1.xpose.msra.mxu0 0.0
    %2125 = vmatprep.subr.mxu0 0.0
    %2126 = vmatpush1.xpose.msra.mxu0 0.0
    %2127 = vmatprep.subr.mxu0 0.0
    %2128 = vmatpush1.xpose.msra.mxu0 0.0
    %2129 = vmatprep.subr.mxu0 0.0
    %2130 = vmatpush1.xpose.msra.mxu0 0.0
    %2131 = vmatprep.subr.mxu0 0.0
    %2132 = vmatpush1.xpose.msra.mxu0 0.0
    %2133 = vmatprep.subr.mxu0 0.0
    %2134 = vmatpush1.xpose.msra.mxu0 0.0
    %2135 = vmatprep.mubr.f32.mxu0 0.0
    %2136 = vmatmul.mubr.f32.gmra.mrb[0].mxu0 %v2067
    %v2137 = vpop.f32.mrb[0].mxu0
    %v2138 = vadd.f32 0.0, %v2137
    %v2139 = vpop.f32.mrb[0].mxu0
    %2140 = vdwg.mxu0
    %v2141 = vmul.f32 %v2138, 0.35355338
    %v2142 = vadd.f32 %v2141, %v286
    %v2143 = vsel %vm207, %v2142, -inf
    %2144 = vmax.xlane.f32.xlu0 %v2143
    %v2145 = vpop.xlane.xlu0 %2144
    %v2146 = vsub.f32 %v2142, %v2145
    %v2147 = vmul.f32 %v2146, 1.442695
    %v2148 = vpow.pop %v2147
    %v2149 = vsel %vm207, %v2148, 0.0
    %2150 = vadd.xlane.f32.xlu0 %v2149
    %v2151 = vpop.xlane.xlu0 %2150
    %v2152 = vrcp.pop %v2151
    %v2153 = vmul.f32 %v2148, %v2152
    %2154 = vrot.lane.b32.xlu0 %v2056, 64
    %v2155 = vpop.permute.xlu0 %2154
    %v2158 = vsel %vm207, %v2153, 0
    %2160 = vmatprep.subr.mxu0 0.0
    %2161 = vmatpush1.msra.mxu0 %v2155
    %2162 = vmatprep.subr.mxu0 0.0
    %2163 = vmatpush1.msra.mxu0 0.0
    %2164 = vmatprep.subr.mxu0 0.0
    %2165 = vmatpush1.msra.mxu0 0.0
    %2166 = vmatprep.subr.mxu0 0.0
    %2167 = vmatpush1.msra.mxu0 0.0
    %2168 = vmatprep.subr.mxu0 0.0
    %2169 = vmatpush1.msra.mxu0 0.0
    %2170 = vmatprep.subr.mxu0 0.0
    %2171 = vmatpush1.msra.mxu0 0.0
    %2172 = vmatprep.subr.mxu0 0.0
    %2173 = vmatpush1.msra.mxu0 0.0
    %2174 = vmatprep.subr.mxu0 0.0
    %2175 = vmatpush1.msra.mxu0 0.0
    %2176 = vmatprep.subr.mxu0 0.0
    %2177 = vmatpush1.msra.mxu0 0.0
    %2178 = vmatprep.subr.mxu0 0.0
    %2179 = vmatpush1.msra.mxu0 0.0
    %2180 = vmatprep.subr.mxu0 0.0
    %2181 = vmatpush1.msra.mxu0 0.0
    %2182 = vmatprep.subr.mxu0 0.0
    %2183 = vmatpush1.msra.mxu0 0.0
    %2184 = vmatprep.subr.mxu0 0.0
    %2185 = vmatpush1.msra.mxu0 0.0
    %2186 = vmatprep.subr.mxu0 0.0
    %2187 = vmatpush1.msra.mxu0 0.0
    %2188 = vmatprep.subr.mxu0 0.0
    %2189 = vmatpush1.msra.mxu0 0.0
    %2190 = vmatprep.subr.mxu0 0.0
    %2191 = vmatpush1.msra.mxu0 0.0
    %2192 = vmatprep.subr.mxu0 0.0
    %2193 = vmatpush1.msra.mxu0 0.0
    %2194 = vmatprep.subr.mxu0 0.0
    %2195 = vmatpush1.msra.mxu0 0.0
    %2196 = vmatprep.subr.mxu0 0.0
    %2197 = vmatpush1.msra.mxu0 0.0
    %2198 = vmatprep.subr.mxu0 0.0
    %2199 = vmatpush1.msra.mxu0 0.0
    %2200 = vmatprep.subr.mxu0 0.0
    %2201 = vmatpush1.msra.mxu0 0.0
    %2202 = vmatprep.subr.mxu0 0.0
    %2203 = vmatpush1.msra.mxu0 0.0
    %2204 = vmatprep.subr.mxu0 0.0
    %2205 = vmatpush1.msra.mxu0 0.0
    %2206 = vmatprep.subr.mxu0 0.0
    %2207 = vmatpush1.msra.mxu0 0.0
    %2208 = vmatprep.subr.mxu0 0.0
    %2209 = vmatpush1.msra.mxu0 0.0
    %2210 = vmatprep.subr.mxu0 0.0
    %2211 = vmatpush1.msra.mxu0 0.0
    %2212 = vmatprep.subr.mxu0 0.0
    %2213 = vmatpush1.msra.mxu0 0.0
    %2214 = vmatprep.subr.mxu0 0.0
    %2215 = vmatpush1.msra.mxu0 0.0
    %2216 = vmatprep.subr.mxu0 0.0
    %2217 = vmatpush1.msra.mxu0 0.0
    %2218 = vmatprep.subr.mxu0 0.0
    %2219 = vmatpush1.msra.mxu0 0.0
    %2220 = vmatprep.subr.mxu0 0.0
    %2221 = vmatpush1.msra.mxu0 0.0
    %2222 = vmatprep.subr.mxu0 0.0
    %2223 = vmatpush1.msra.mxu0 0.0
    %2224 = vmatprep.mubr.f32.mxu0 0.0
    %2225 = vmatmul.mubr.f32.gmra.mrb[0].mxu0 %v2158
    %v2226 = vpop.f32.mrb[0].mxu0
    %v2227 = vadd.f32 0.0, %v2226
    %v2228 = vpop.f32.mrb[0].mxu0
    %2229 = vdwg.mxu0
    %2230 = vrot.lane.b32.xlu0 %v2056, 120
    %v2231 = vpop.permute.xlu0 %2230
    %2232 = vrot.lane.b32.xlu0 %v2056, 88
    %v2233 = vpop.permute.xlu0 %2232
    %v2234 = vsel %vm207, %v2231, 0
    %v2236 = vsel %vm207, %v2233, 0
    %2238 = vmatprep.subr.mxu0 0.0
    %2239 = vmatpush1.xpose.msra.mxu0 %v2236
    %2240 = vmatprep.subr.mxu0 0.0
    %2241 = vmatpush1.xpose.msra.mxu0 0.0
    %2242 = vmatprep.subr.mxu0 0.0
    %2243 = vmatpush1.xpose.msra.mxu0 0.0
    %2244 = vmatprep.subr.mxu0 0.0
    %2245 = vmatpush1.xpose.msra.mxu0 0.0
    %2246 = vmatprep.subr.mxu0 0.0
    %2247 = vmatpush1.xpose.msra.mxu0 0.0
    %2248 = vmatprep.subr.mxu0 0.0
    %2249 = vmatpush1.xpose.msra.mxu0 0.0
    %2250 = vmatprep.subr.mxu0 0.0
    %2251 = vmatpush1.xpose.msra.mxu0 0.0
    %2252 = vmatprep.subr.mxu0 0.0
    %2253 = vmatpush1.xpose.msra.mxu0 0.0
    %2254 = vmatprep.subr.mxu0 0.0
    %2255 = vmatpush1.xpose.msra.mxu0 0.0
    %2256 = vmatprep.subr.mxu0 0.0
    %2257 = vmatpush1.xpose.msra.mxu0 0.0
    %2258 = vmatprep.subr.mxu0 0.0
    %2259 = vmatpush1.xpose.msra.mxu0 0.0
    %2260 = vmatprep.subr.mxu0 0.0
    %2261 = vmatpush1.xpose.msra.mxu0 0.0
    %2262 = vmatprep.subr.mxu0 0.0
    %2263 = vmatpush1.xpose.msra.mxu0 0.0
    %2264 = vmatprep.subr.mxu0 0.0
    %2265 = vmatpush1.xpose.msra.mxu0 0.0
    %2266 = vmatprep.subr.mxu0 0.0
    %2267 = vmatpush1.xpose.msra.mxu0 0.0
    %2268 = vmatprep.subr.mxu0 0.0
    %2269 = vmatpush1.xpose.msra.mxu0 0.0
    %2270 = vmatprep.subr.mxu0 0.0
    %2271 = vmatpush1.xpose.msra.mxu0 0.0
    %2272 = vmatprep.subr.mxu0 0.0
    %2273 = vmatpush1.xpose.msra.mxu0 0.0
    %2274 = vmatprep.subr.mxu0 0.0
    %2275 = vmatpush1.xpose.msra.mxu0 0.0
    %2276 = vmatprep.subr.mxu0 0.0
    %2277 = vmatpush1.xpose.msra.mxu0 0.0
    %2278 = vmatprep.subr.mxu0 0.0
    %2279 = vmatpush1.xpose.msra.mxu0 0.0
    %2280 = vmatprep.subr.mxu0 0.0
    %2281 = vmatpush1.xpose.msra.mxu0 0.0
    %2282 = vmatprep.subr.mxu0 0.0
    %2283 = vmatpush1.xpose.msra.mxu0 0.0
    %2284 = vmatprep.subr.mxu0 0.0
    %2285 = vmatpush1.xpose.msra.mxu0 0.0
    %2286 = vmatprep.subr.mxu0 0.0
    %2287 = vmatpush1.xpose.msra.mxu0 0.0
    %2288 = vmatprep.subr.mxu0 0.0
    %2289 = vmatpush1.xpose.msra.mxu0 0.0
    %2290 = vmatprep.subr.mxu0 0.0
    %2291 = vmatpush1.xpose.msra.mxu0 0.0
    %2292 = vmatprep.subr.mxu0 0.0
    %2293 = vmatpush1.xpose.msra.mxu0 0.0
    %2294 = vmatprep.subr.mxu0 0.0
    %2295 = vmatpush1.xpose.msra.mxu0 0.0
    %2296 = vmatprep.subr.mxu0 0.0
    %2297 = vmatpush1.xpose.msra.mxu0 0.0
    %2298 = vmatprep.subr.mxu0 0.0
    %2299 = vmatpush1.xpose.msra.mxu0 0.0
    %2300 = vmatprep.subr.mxu0 0.0
    %2301 = vmatpush1.xpose.msra.mxu0 0.0
    %2302 = vmatprep.mubr.f32.mxu0 0.0
    %2303 = vmatmul.mubr.f32.gmra.mrb[0].mxu0 %v2234
    %v2304 = vpop.f32.mrb[0].mxu0
    %v2305 = vadd.f32 0.0, %v2304
    %v2306 = vpop.f32.mrb[0].mxu0
    %2307 = vdwg.mxu0
    %v2308 = vmul.f32 %v2305, 0.35355338
    %v2309 = vadd.f32 %v2308, %v286
    %v2310 = vsel %vm207, %v2309, -inf
    %2311 = vmax.xlane.f32.xlu0 %v2310
    %v2312 = vpop.xlane.xlu0 %2311
    %v2313 = vsub.f32 %v2309, %v2312
    %v2314 = vmul.f32 %v2313, 1.442695
    %v2315 = vpow.pop %v2314
    %v2316 = vsel %vm207, %v2315, 0.0
    %2317 = vadd.xlane.f32.xlu0 %v2316
    %v2318 = vpop.xlane.xlu0 %2317
    %v2319 = vrcp.pop %v2318
    %v2320 = vmul.f32 %v2315, %v2319
    %2321 = vrot.lane.b32.xlu0 %v2056, 56
    %v2322 = vpop.permute.xlu0 %2321
    %v2325 = vsel %vm207, %v2320, 0
    %2327 = vmatprep.subr.mxu0 0.0
    %2328 = vmatpush1.msra.mxu0 %v2322
    %2329 = vmatprep.subr.mxu0 0.0
    %2330 = vmatpush1.msra.mxu0 0.0
    %2331 = vmatprep.subr.mxu0 0.0
    %2332 = vmatpush1.msra.mxu0 0.0
    %2333 = vmatprep.subr.mxu0 0.0
    %2334 = vmatpush1.msra.mxu0 0.0
    %2335 = vmatprep.subr.mxu0 0.0
    %2336 = vmatpush1.msra.mxu0 0.0
    %2337 = vmatprep.subr.mxu0 0.0
    %2338 = vmatpush1.msra.mxu0 0.0
    %2339 = vmatprep.subr.mxu0 0.0
    %2340 = vmatpush1.msra.mxu0 0.0
    %2341 = vmatprep.subr.mxu0 0.0
    %2342 = vmatpush1.msra.mxu0 0.0
    %2343 = vmatprep.subr.mxu0 0.0
    %2344 = vmatpush1.msra.mxu0 0.0
    %2345 = vmatprep.subr.mxu0 0.0
    %2346 = vmatpush1.msra.mxu0 0.0
    %2347 = vmatprep.subr.mxu0 0.0
    %2348 = vmatpush1.msra.mxu0 0.0
    %2349 = vmatprep.subr.mxu0 0.0
    %2350 = vmatpush1.msra.mxu0 0.0
    %2351 = vmatprep.subr.mxu0 0.0
    %2352 = vmatpush1.msra.mxu0 0.0
    %2353 = vmatprep.subr.mxu0 0.0
    %2354 = vmatpush1.msra.mxu0 0.0
    %2355 = vmatprep.subr.mxu0 0.0
    %2356 = vmatpush1.msra.mxu0 0.0
    %2357 = vmatprep.subr.mxu0 0.0
    %2358 = vmatpush1.msra.mxu0 0.0
    %2359 = vmatprep.subr.mxu0 0.0
    %2360 = vmatpush1.msra.mxu0 0.0
    %2361 = vmatprep.subr.mxu0 0.0
    %2362 = vmatpush1.msra.mxu0 0.0
    %2363 = vmatprep.subr.mxu0 0.0
    %2364 = vmatpush1.msra.mxu0 0.0
    %2365 = vmatprep.subr.mxu0 0.0
    %2366 = vmatpush1.msra.mxu0 0.0
    %2367 = vmatprep.subr.mxu0 0.0
    %2368 = vmatpush1.msra.mxu0 0.0
    %2369 = vmatprep.subr.mxu0 0.0
    %2370 = vmatpush1.msra.mxu0 0.0
    %2371 = vmatprep.subr.mxu0 0.0
    %2372 = vmatpush1.msra.mxu0 0.0
    %2373 = vmatprep.subr.mxu0 0.0
    %2374 = vmatpush1.msra.mxu0 0.0
    %2375 = vmatprep.subr.mxu0 0.0
    %2376 = vmatpush1.msra.mxu0 0.0
    %2377 = vmatprep.subr.mxu0 0.0
    %2378 = vmatpush1.msra.mxu0 0.0
    %2379 = vmatprep.subr.mxu0 0.0
    %2380 = vmatpush1.msra.mxu0 0.0
    %2381 = vmatprep.subr.mxu0 0.0
    %2382 = vmatpush1.msra.mxu0 0.0
    %2383 = vmatprep.subr.mxu0 0.0
    %2384 = vmatpush1.msra.mxu0 0.0
    %2385 = vmatprep.subr.mxu0 0.0
    %2386 = vmatpush1.msra.mxu0 0.0
    %2387 = vmatprep.subr.mxu0 0.0
    %2388 = vmatpush1.msra.mxu0 0.0
    %2389 = vmatprep.subr.mxu0 0.0
    %2390 = vmatpush1.msra.mxu0 0.0
    %2391 = vmatprep.mubr.f32.mxu0 0.0
    %2392 = vmatmul.mubr.f32.gmra.mrb[0].mxu0 %v2325
    %v2393 = vpop.f32.mrb[0].mxu0
    %v2394 = vadd.f32 0.0, %v2393
    %v2395 = vpop.f32.mrb[0].mxu0
    %2396 = vdwg.mxu0
    %2397 = vrot.lane.b32.xlu0 %v2056, 112
    %v2398 = vpop.permute.xlu0 %2397
    %2399 = vrot.lane.b32.xlu0 %v2056, 80
    %v2400 = vpop.permute.xlu0 %2399
    %v2401 = vsel %vm207, %v2398, 0
    %v2403 = vsel %vm207, %v2400, 0
    %2405 = vmatprep.subr.mxu0 0.0
    %2406 = vmatpush1.xpose.msra.mxu0 %v2403
    %2407 = vmatprep.subr.mxu0 0.0
    %2408 = vmatpush1.xpose.msra.mxu0 0.0
    %2409 = vmatprep.subr.mxu0 0.0
    %2410 = vmatpush1.xpose.msra.mxu0 0.0
    %2411 = vmatprep.subr.mxu0 0.0
    %2412 = vmatpush1.xpose.msra.mxu0 0.0
    %2413 = vmatprep.subr.mxu0 0.0
    %2414 = vmatpush1.xpose.msra.mxu0 0.0
    %2415 = vmatprep.subr.mxu0 0.0
    %2416 = vmatpush1.xpose.msra.mxu0 0.0
    %2417 = vmatprep.subr.mxu0 0.0
    %2418 = vmatpush1.xpose.msra.mxu0 0.0
    %2419 = vmatprep.subr.mxu0 0.0
    %2420 = vmatpush1.xpose.msra.mxu0 0.0
    %2421 = vmatprep.subr.mxu0 0.0
    %2422 = vmatpush1.xpose.msra.mxu0 0.0
    %2423 = vmatprep.subr.mxu0 0.0
    %2424 = vmatpush1.xpose.msra.mxu0 0.0
    %2425 = vmatprep.subr.mxu0 0.0
    %2426 = vmatpush1.xpose.msra.mxu0 0.0
    %2427 = vmatprep.subr.mxu0 0.0
    %2428 = vmatpush1.xpose.msra.mxu0 0.0
    %2429 = vmatprep.subr.mxu0 0.0
    %2430 = vmatpush1.xpose.msra.mxu0 0.0
    %2431 = vmatprep.subr.mxu0 0.0
    %2432 = vmatpush1.xpose.msra.mxu0 0.0
    %2433 = vmatprep.subr.mxu0 0.0
    %2434 = vmatpush1.xpose.msra.mxu0 0.0
    %2435 = vmatprep.subr.mxu0 0.0
    %2436 = vmatpush1.xpose.msra.mxu0 0.0
    %2437 = vmatprep.subr.mxu0 0.0
    %2438 = vmatpush1.xpose.msra.mxu0 0.0
    %2439 = vmatprep.subr.mxu0 0.0
    %2440 = vmatpush1.xpose.msra.mxu0 0.0
    %2441 = vmatprep.subr.mxu0 0.0
    %2442 = vmatpush1.xpose.msra.mxu0 0.0
    %2443 = vmatprep.subr.mxu0 0.0
    %2444 = vmatpush1.xpose.msra.mxu0 0.0
    %2445 = vmatprep.subr.mxu0 0.0
    %2446 = vmatpush1.xpose.msra.mxu0 0.0
    %2447 = vmatprep.subr.mxu0 0.0
    %2448 = vmatpush1.xpose.msra.mxu0 0.0
    %2449 = vmatprep.subr.mxu0 0.0
    %2450 = vmatpush1.xpose.msra.mxu0 0.0
    %2451 = vmatprep.subr.mxu0 0.0
    %2452 = vmatpush1.xpose.msra.mxu0 0.0
    %2453 = vmatprep.subr.mxu0 0.0
    %2454 = vmatpush1.xpose.msra.mxu0 0.0
    %2455 = vmatprep.subr.mxu0 0.0
    %2456 = vmatpush1.xpose.msra.mxu0 0.0
    %2457 = vmatprep.subr.mxu0 0.0
    %2458 = vmatpush1.xpose.msra.mxu0 0.0
    %2459 = vmatprep.subr.mxu0 0.0
    %2460 = vmatpush1.xpose.msra.mxu0 0.0
    %2461 = vmatprep.subr.mxu0 0.0
    %2462 = vmatpush1.xpose.msra.mxu0 0.0
    %2463 = vmatprep.subr.mxu0 0.0
    %2464 = vmatpush1.xpose.msra.mxu0 0.0
    %2465 = vmatprep.subr.mxu0 0.0
    %2466 = vmatpush1.xpose.msra.mxu0 0.0
    %2467 = vmatprep.subr.mxu0 0.0
    %2468 = vmatpush1.xpose.msra.mxu0 0.0
    %2469 = vmatprep.mubr.f32.mxu0 0.0
    %2470 = vmatmul.mubr.f32.gmra.mrb[0].mxu0 %v2401
    %v2471 = vpop.f32.mrb[0].mxu0
    %v2472 = vadd.f32 0.0, %v2471
    %v2473 = vpop.f32.mrb[0].mxu0
    %2474 = vdwg.mxu0
    %v2475 = vmul.f32 %v2472, 0.35355338
    %v2476 = vadd.f32 %v2475, %v286
    %v2477 = vsel %vm207, %v2476, -inf
    %2478 = vmax.xlane.f32.xlu0 %v2477
    %v2479 = vpop.xlane.xlu0 %2478
    %v2480 = vsub.f32 %v2476, %v2479
    %v2481 = vmul.f32 %v2480, 1.442695
    %v2482 = vpow.pop %v2481
    %v2483 = vsel %vm207, %v2482, 0.0
    %2484 = vadd.xlane.f32.xlu0 %v2483
    %v2485 = vpop.xlane.xlu0 %2484
    %v2486 = vrcp.pop %v2485
    %v2487 = vmul.f32 %v2482, %v2486
    %2488 = vrot.lane.b32.xlu0 %v2056, 48
    %v2489 = vpop.permute.xlu0 %2488
    %v2492 = vsel %vm207, %v2487, 0
    %2494 = vmatprep.subr.mxu0 0.0
    %2495 = vmatpush1.msra.mxu0 %v2489
    %2496 = vmatprep.subr.mxu0 0.0
    %2497 = vmatpush1.msra.mxu0 0.0
    %2498 = vmatprep.subr.mxu0 0.0
    %2499 = vmatpush1.msra.mxu0 0.0
    %2500 = vmatprep.subr.mxu0 0.0
    %2501 = vmatpush1.msra.mxu0 0.0
    %2502 = vmatprep.subr.mxu0 0.0
    %2503 = vmatpush1.msra.mxu0 0.0
    %2504 = vmatprep.subr.mxu0 0.0
    %2505 = vmatpush1.msra.mxu0 0.0
    %2506 = vmatprep.subr.mxu0 0.0
    %2507 = vmatpush1.msra.mxu0 0.0
    %2508 = vmatprep.subr.mxu0 0.0
    %2509 = vmatpush1.msra.mxu0 0.0
    %2510 = vmatprep.subr.mxu0 0.0
    %2511 = vmatpush1.msra.mxu0 0.0
    %2512 = vmatprep.subr.mxu0 0.0
    %2513 = vmatpush1.msra.mxu0 0.0
    %2514 = vmatprep.subr.mxu0 0.0
    %2515 = vmatpush1.msra.mxu0 0.0
    %2516 = vmatprep.subr.mxu0 0.0
    %2517 = vmatpush1.msra.mxu0 0.0
    %2518 = vmatprep.subr.mxu0 0.0
    %2519 = vmatpush1.msra.mxu0 0.0
    %2520 = vmatprep.subr.mxu0 0.0
    %2521 = vmatpush1.msra.mxu0 0.0
    %2522 = vmatprep.subr.mxu0 0.0
    %2523 = vmatpush1.msra.mxu0 0.0
    %2524 = vmatprep.subr.mxu0 0.0
    %2525 = vmatpush1.msra.mxu0 0.0
    %2526 = vmatprep.subr.mxu0 0.0
    %2527 = vmatpush1.msra.mxu0 0.0
    %2528 = vmatprep.subr.mxu0 0.0
    %2529 = vmatpush1.msra.mxu0 0.0
    %2530 = vmatprep.subr.mxu0 0.0
    %2531 = vmatpush1.msra.mxu0 0.0
    %2532 = vmatprep.subr.mxu0 0.0
    %2533 = vmatpush1.msra.mxu0 0.0
    %2534 = vmatprep.subr.mxu0 0.0
    %2535 = vmatpush1.msra.mxu0 0.0
    %2536 = vmatprep.subr.mxu0 0.0
    %2537 = vmatpush1.msra.mxu0 0.0
    %2538 = vmatprep.subr.mxu0 0.0
    %2539 = vmatpush1.msra.mxu0 0.0
    %2540 = vmatprep.subr.mxu0 0.0
    %2541 = vmatpush1.msra.mxu0 0.0
    %2542 = vmatprep.subr.mxu0 0.0
    %2543 = vmatpush1.msra.mxu0 0.0
    %2544 = vmatprep.subr.mxu0 0.0
    %2545 = vmatpush1.msra.mxu0 0.0
    %2546 = vmatprep.subr.mxu0 0.0
    %2547 = vmatpush1.msra.mxu0 0.0
    %2548 = vmatprep.subr.mxu0 0.0
    %2549 = vmatpush1.msra.mxu0 0.0
    %2550 = vmatprep.subr.mxu0 0.0
    %2551 = vmatpush1.msra.mxu0 0.0
    %2552 = vmatprep.subr.mxu0 0.0
    %2553 = vmatpush1.msra.mxu0 0.0
    %2554 = vmatprep.subr.mxu0 0.0
    %2555 = vmatpush1.msra.mxu0 0.0
    %2556 = vmatprep.subr.mxu0 0.0
    %2557 = vmatpush1.msra.mxu0 0.0
    %2558 = vmatprep.mubr.f32.mxu0 0.0
    %2559 = vmatmul.mubr.f32.gmra.mrb[0].mxu0 %v2492
    %v2560 = vpop.f32.mrb[0].mxu0
    %v2561 = vadd.f32 0.0, %v2560
    %v2562 = vpop.f32.mrb[0].mxu0
    %2563 = vdwg.mxu0
    %2564 = vrot.lane.b32.xlu0 %v2056, 104
    %v2565 = vpop.permute.xlu0 %2564
    %2566 = vrot.lane.b32.xlu0 %v2056, 72
    %v2567 = vpop.permute.xlu0 %2566
    %v2568 = vsel %vm207, %v2565, 0
    %v2570 = vsel %vm207, %v2567, 0
    %2572 = vmatprep.subr.mxu0 0.0
    %2573 = vmatpush1.xpose.msra.mxu0 %v2570
    %2574 = vmatprep.subr.mxu0 0.0
    %2575 = vmatpush1.xpose.msra.mxu0 0.0
    %2576 = vmatprep.subr.mxu0 0.0
    %2577 = vmatpush1.xpose.msra.mxu0 0.0
    %2578 = vmatprep.subr.mxu0 0.0
    %2579 = vmatpush1.xpose.msra.mxu0 0.0
    %2580 = vmatprep.subr.mxu0 0.0
    %2581 = vmatpush1.xpose.msra.mxu0 0.0
    %2582 = vmatprep.subr.mxu0 0.0
    %2583 = vmatpush1.xpose.msra.mxu0 0.0
    %2584 = vmatprep.subr.mxu0 0.0
    %2585 = vmatpush1.xpose.msra.mxu0 0.0
    %2586 = vmatprep.subr.mxu0 0.0
    %2587 = vmatpush1.xpose.msra.mxu0 0.0
    %2588 = vmatprep.subr.mxu0 0.0
    %2589 = vmatpush1.xpose.msra.mxu0 0.0
    %2590 = vmatprep.subr.mxu0 0.0
    %2591 = vmatpush1.xpose.msra.mxu0 0.0
    %2592 = vmatprep.subr.mxu0 0.0
    %2593 = vmatpush1.xpose.msra.mxu0 0.0
    %2594 = vmatprep.subr.mxu0 0.0
    %2595 = vmatpush1.xpose.msra.mxu0 0.0
    %2596 = vmatprep.subr.mxu0 0.0
    %2597 = vmatpush1.xpose.msra.mxu0 0.0
    %2598 = vmatprep.subr.mxu0 0.0
    %2599 = vmatpush1.xpose.msra.mxu0 0.0
    %2600 = vmatprep.subr.mxu0 0.0
    %2601 = vmatpush1.xpose.msra.mxu0 0.0
    %2602 = vmatprep.subr.mxu0 0.0
    %2603 = vmatpush1.xpose.msra.mxu0 0.0
    %2604 = vmatprep.subr.mxu0 0.0
    %2605 = vmatpush1.xpose.msra.mxu0 0.0
    %2606 = vmatprep.subr.mxu0 0.0
    %2607 = vmatpush1.xpose.msra.mxu0 0.0
    %2608 = vmatprep.subr.mxu0 0.0
    %2609 = vmatpush1.xpose.msra.mxu0 0.0
    %2610 = vmatprep.subr.mxu0 0.0
    %2611 = vmatpush1.xpose.msra.mxu0 0.0
    %2612 = vmatprep.subr.mxu0 0.0
    %2613 = vmatpush1.xpose.msra.mxu0 0.0
    %2614 = vmatprep.subr.mxu0 0.0
    %2615 = vmatpush1.xpose.msra.mxu0 0.0
    %2616 = vmatprep.subr.mxu0 0.0
    %2617 = vmatpush1.xpose.msra.mxu0 0.0
    %2618 = vmatprep.subr.mxu0 0.0
    %2619 = vmatpush1.xpose.msra.mxu0 0.0
    %2620 = vmatprep.subr.mxu0 0.0
    %2621 = vmatpush1.xpose.msra.mxu0 0.0
    %2622 = vmatprep.subr.mxu0 0.0
    %2623 = vmatpush1.xpose.msra.mxu0 0.0
    %2624 = vmatprep.subr.mxu0 0.0
    %2625 = vmatpush1.xpose.msra.mxu0 0.0
    %2626 = vmatprep.subr.mxu0 0.0
    %2627 = vmatpush1.xpose.msra.mxu0 0.0
    %2628 = vmatprep.subr.mxu0 0.0
    %2629 = vmatpush1.xpose.msra.mxu0 0.0
    %2630 = vmatprep.subr.mxu0 0.0
    %2631 = vmatpush1.xpose.msra.mxu0 0.0
    %2632 = vmatprep.subr.mxu0 0.0
    %2633 = vmatpush1.xpose.msra.mxu0 0.0
    %2634 = vmatprep.subr.mxu0 0.0
    %2635 = vmatpush1.xpose.msra.mxu0 0.0
    %2636 = vmatprep.mubr.f32.mxu0 0.0
    %2637 = vmatmul.mubr.f32.gmra.mrb[0].mxu0 %v2568
    %v2638 = vpop.f32.mrb[0].mxu0
    %v2639 = vadd.f32 0.0, %v2638
    %v2640 = vpop.f32.mrb[0].mxu0
    %2641 = vdwg.mxu0
    %v2642 = vmul.f32 %v2639, 0.35355338
    %v2643 = vadd.f32 %v2642, %v286
    %v2644 = vsel %vm207, %v2643, -inf
    %2645 = vmax.xlane.f32.xlu0 %v2644
    %v2646 = vpop.xlane.xlu0 %2645
    %v2647 = vsub.f32 %v2643, %v2646
    %v2648 = vmul.f32 %v2647, 1.442695
    %v2649 = vpow.pop %v2648
    %v2650 = vsel %vm207, %v2649, 0.0
    %2651 = vadd.xlane.f32.xlu0 %v2650
    %v2652 = vpop.xlane.xlu0 %2651
    %v2653 = vrcp.pop %v2652
    %v2654 = vmul.f32 %v2649, %v2653
    %2655 = vrot.lane.b32.xlu0 %v2056, 40
    %v2656 = vpop.permute.xlu0 %2655
    %v2659 = vsel %vm207, %v2654, 0
    %2661 = vmatprep.subr.mxu0 0.0
    %2662 = vmatpush1.msra.mxu0 %v2656
    %2663 = vmatprep.subr.mxu0 0.0
    %2664 = vmatpush1.msra.mxu0 0.0
    %2665 = vmatprep.subr.mxu0 0.0
    %2666 = vmatpush1.msra.mxu0 0.0
    %2667 = vmatprep.subr.mxu0 0.0
    %2668 = vmatpush1.msra.mxu0 0.0
    %2669 = vmatprep.subr.mxu0 0.0
    %2670 = vmatpush1.msra.mxu0 0.0
    %2671 = vmatprep.subr.mxu0 0.0
    %2672 = vmatpush1.msra.mxu0 0.0
    %2673 = vmatprep.subr.mxu0 0.0
    %2674 = vmatpush1.msra.mxu0 0.0
    %2675 = vmatprep.subr.mxu0 0.0
    %2676 = vmatpush1.msra.mxu0 0.0
    %2677 = vmatprep.subr.mxu0 0.0
    %2678 = vmatpush1.msra.mxu0 0.0
    %2679 = vmatprep.subr.mxu0 0.0
    %2680 = vmatpush1.msra.mxu0 0.0
    %2681 = vmatprep.subr.mxu0 0.0
    %2682 = vmatpush1.msra.mxu0 0.0
    %2683 = vmatprep.subr.mxu0 0.0
    %2684 = vmatpush1.msra.mxu0 0.0
    %2685 = vmatprep.subr.mxu0 0.0
    %2686 = vmatpush1.msra.mxu0 0.0
    %2687 = vmatprep.subr.mxu0 0.0
    %2688 = vmatpush1.msra.mxu0 0.0
    %2689 = vmatprep.subr.mxu0 0.0
    %2690 = vmatpush1.msra.mxu0 0.0
    %2691 = vmatprep.subr.mxu0 0.0
    %2692 = vmatpush1.msra.mxu0 0.0
    %2693 = vmatprep.subr.mxu0 0.0
    %2694 = vmatpush1.msra.mxu0 0.0
    %2695 = vmatprep.subr.mxu0 0.0
    %2696 = vmatpush1.msra.mxu0 0.0
    %2697 = vmatprep.subr.mxu0 0.0
    %2698 = vmatpush1.msra.mxu0 0.0
    %2699 = vmatprep.subr.mxu0 0.0
    %2700 = vmatpush1.msra.mxu0 0.0
    %2701 = vmatprep.subr.mxu0 0.0
    %2702 = vmatpush1.msra.mxu0 0.0
    %2703 = vmatprep.subr.mxu0 0.0
    %2704 = vmatpush1.msra.mxu0 0.0
    %2705 = vmatprep.subr.mxu0 0.0
    %2706 = vmatpush1.msra.mxu0 0.0
    %2707 = vmatprep.subr.mxu0 0.0
    %2708 = vmatpush1.msra.mxu0 0.0
    %2709 = vmatprep.subr.mxu0 0.0
    %2710 = vmatpush1.msra.mxu0 0.0
    %2711 = vmatprep.subr.mxu0 0.0
    %2712 = vmatpush1.msra.mxu0 0.0
    %2713 = vmatprep.subr.mxu0 0.0
    %2714 = vmatpush1.msra.mxu0 0.0
    %2715 = vmatprep.subr.mxu0 0.0
    %2716 = vmatpush1.msra.mxu0 0.0
    %2717 = vmatprep.subr.mxu0 0.0
    %2718 = vmatpush1.msra.mxu0 0.0
    %2719 = vmatprep.subr.mxu0 0.0
    %2720 = vmatpush1.msra.mxu0 0.0
    %2721 = vmatprep.subr.mxu0 0.0
    %2722 = vmatpush1.msra.mxu0 0.0
    %2723 = vmatprep.subr.mxu0 0.0
    %2724 = vmatpush1.msra.mxu0 0.0
    %2725 = vmatprep.mubr.f32.mxu0 0.0
    %2726 = vmatmul.mubr.f32.gmra.mrb[0].mxu0 %v2659
    %v2727 = vpop.f32.mrb[0].mxu0
    %v2728 = vadd.f32 0.0, %v2727
    %v2729 = vpop.f32.mrb[0].mxu0
    %2730 = vdwg.mxu0
    %2732 = vrot.lane.b32.xlu0 %v2394, 8
    %v2733 = vpop.permute.xlu0 %2732
    %2736 = vrot.lane.b32.xlu0 %v2561, 16
    %v2737 = vpop.permute.xlu0 %2736
    %2740 = vrot.lane.b32.xlu0 %v2728, 24
    %v2741 = vpop.permute.xlu0 %2740
    %v2743 = vsel %vm207, %v2227, %v2733
    %v2744 = vsel %vm889, %v2743, %v2737
    %v2745 = vsel %vm891, %v2744, %v2741
    %2747 = vrot.lane.b32.xlu0 %v2061, 96
    %v2748 = vpop.permute.xlu0 %2747
    %v2749 = vsel %vm207, %v2061, 0
    %v2751 = vsel %vm207, %v2748, 0
    %2753 = vmatprep.subr.mxu0 0.0
    %2754 = vmatpush1.xpose.msra.mxu0 %v2751
    %2755 = vmatprep.subr.mxu0 0.0
    %2756 = vmatpush1.xpose.msra.mxu0 0.0
    %2757 = vmatprep.subr.mxu0 0.0
    %2758 = vmatpush1.xpose.msra.mxu0 0.0
    %2759 = vmatprep.subr.mxu0 0.0
    %2760 = vmatpush1.xpose.msra.mxu0 0.0
    %2761 = vmatprep.subr.mxu0 0.0
    %2762 = vmatpush1.xpose.msra.mxu0 0.0
    %2763 = vmatprep.subr.mxu0 0.0
    %2764 = vmatpush1.xpose.msra.mxu0 0.0
    %2765 = vmatprep.subr.mxu0 0.0
    %2766 = vmatpush1.xpose.msra.mxu0 0.0
    %2767 = vmatprep.subr.mxu0 0.0
    %2768 = vmatpush1.xpose.msra.mxu0 0.0
    %2769 = vmatprep.subr.mxu0 0.0
    %2770 = vmatpush1.xpose.msra.mxu0 0.0
    %2771 = vmatprep.subr.mxu0 0.0
    %2772 = vmatpush1.xpose.msra.mxu0 0.0
    %2773 = vmatprep.subr.mxu0 0.0
    %2774 = vmatpush1.xpose.msra.mxu0 0.0
    %2775 = vmatprep.subr.mxu0 0.0
    %2776 = vmatpush1.xpose.msra.mxu0 0.0
    %2777 = vmatprep.subr.mxu0 0.0
    %2778 = vmatpush1.xpose.msra.mxu0 0.0
    %2779 = vmatprep.subr.mxu0 0.0
    %2780 = vmatpush1.xpose.msra.mxu0 0.0
    %2781 = vmatprep.subr.mxu0 0.0
    %2782 = vmatpush1.xpose.msra.mxu0 0.0
    %2783 = vmatprep.subr.mxu0 0.0
    %2784 = vmatpush1.xpose.msra.mxu0 0.0
    %2785 = vmatprep.subr.mxu0 0.0
    %2786 = vmatpush1.xpose.msra.mxu0 0.0
    %2787 = vmatprep.subr.mxu0 0.0
    %2788 = vmatpush1.xpose.msra.mxu0 0.0
    %2789 = vmatprep.subr.mxu0 0.0
    %2790 = vmatpush1.xpose.msra.mxu0 0.0
    %2791 = vmatprep.subr.mxu0 0.0
    %2792 = vmatpush1.xpose.msra.mxu0 0.0
    %2793 = vmatprep.subr.mxu0 0.0
    %2794 = vmatpush1.xpose.msra.mxu0 0.0
    %2795 = vmatprep.subr.mxu0 0.0
    %2796 = vmatpush1.xpose.msra.mxu0 0.0
    %2797 = vmatprep.subr.mxu0 0.0
    %2798 = vmatpush1.xpose.msra.mxu0 0.0
    %2799 = vmatprep.subr.mxu0 0.0
    %2800 = vmatpush1.xpose.msra.mxu0 0.0
    %2801 = vmatprep.subr.mxu0 0.0
    %2802 = vmatpush1.xpose.msra.mxu0 0.0
    %2803 = vmatprep.subr.mxu0 0.0
    %2804 = vmatpush1.xpose.msra.mxu0 0.0
    %2805 = vmatprep.subr.mxu0 0.0
    %2806 = vmatpush1.xpose.msra.mxu0 0.0
    %2807 = vmatprep.subr.mxu0 0.0
    %2808 = vmatpush1.xpose.msra.mxu0 0.0
    %2809 = vmatprep.subr.mxu0 0.0
    %2810 = vmatpush1.xpose.msra.mxu0 0.0
    %2811 = vmatprep.subr.mxu0 0.0
    %2812 = vmatpush1.xpose.msra.mxu0 0.0
    %2813 = vmatprep.subr.mxu0 0.0
    %2814 = vmatpush1.xpose.msra.mxu0 0.0
    %2815 = vmatprep.subr.mxu0 0.0
    %2816 = vmatpush1.xpose.msra.mxu0 0.0
    %2817 = vmatprep.mubr.f32.mxu0 0.0
    %2818 = vmatmul.mubr.f32.gmra.mrb[0].mxu0 %v2749
    %v2819 = vpop.f32.mrb[0].mxu0
    %v2820 = vadd.f32 0.0, %v2819
    %v2821 = vpop.f32.mrb[0].mxu0
    %2822 = vdwg.mxu0
    %v2823 = vmul.f32 %v2820, 0.35355338
    %v2824 = vadd.f32 %v2823, %v974
    %v2825 = vsel %vm207, %v2824, -inf
    %2826 = vmax.xlane.f32.xlu0 %v2825
    %v2827 = vpop.xlane.xlu0 %2826
    %v2828 = vsub.f32 %v2824, %v2827
    %v2829 = vmul.f32 %v2828, 1.442695
    %v2830 = vpow.pop %v2829
    %v2831 = vsel %vm207, %v2830, 0.0
    %2832 = vadd.xlane.f32.xlu0 %v2831
    %v2833 = vpop.xlane.xlu0 %2832
    %v2834 = vrcp.pop %v2833
    %v2835 = vmul.f32 %v2830, %v2834
    %2836 = vrot.lane.b32.xlu0 %v2061, 64
    %v2837 = vpop.permute.xlu0 %2836
    %v2840 = vsel %vm207, %v2835, 0
    %2842 = vmatprep.subr.mxu0 0.0
    %2843 = vmatpush1.msra.mxu0 %v2837
    %2844 = vmatprep.subr.mxu0 0.0
    %2845 = vmatpush1.msra.mxu0 0.0
    %2846 = vmatprep.subr.mxu0 0.0
    %2847 = vmatpush1.msra.mxu0 0.0
    %2848 = vmatprep.subr.mxu0 0.0
    %2849 = vmatpush1.msra.mxu0 0.0
    %2850 = vmatprep.subr.mxu0 0.0
    %2851 = vmatpush1.msra.mxu0 0.0
    %2852 = vmatprep.subr.mxu0 0.0
    %2853 = vmatpush1.msra.mxu0 0.0
    %2854 = vmatprep.subr.mxu0 0.0
    %2855 = vmatpush1.msra.mxu0 0.0
    %2856 = vmatprep.subr.mxu0 0.0
    %2857 = vmatpush1.msra.mxu0 0.0
    %2858 = vmatprep.subr.mxu0 0.0
    %2859 = vmatpush1.msra.mxu0 0.0
    %2860 = vmatprep.subr.mxu0 0.0
    %2861 = vmatpush1.msra.mxu0 0.0
    %2862 = vmatprep.subr.mxu0 0.0
    %2863 = vmatpush1.msra.mxu0 0.0
    %2864 = vmatprep.subr.mxu0 0.0
    %2865 = vmatpush1.msra.mxu0 0.0
    %2866 = vmatprep.subr.mxu0 0.0
    %2867 = vmatpush1.msra.mxu0 0.0
    %2868 = vmatprep.subr.mxu0 0.0
    %2869 = vmatpush1.msra.mxu0 0.0
    %2870 = vmatprep.subr.mxu0 0.0
    %2871 = vmatpush1.msra.mxu0 0.0
    %2872 = vmatprep.subr.mxu0 0.0
    %2873 = vmatpush1.msra.mxu0 0.0
    %2874 = vmatprep.subr.mxu0 0.0
    %2875 = vmatpush1.msra.mxu0 0.0
    %2876 = vmatprep.subr.mxu0 0.0
    %2877 = vmatpush1.msra.mxu0 0.0
    %2878 = vmatprep.subr.mxu0 0.0
    %2879 = vmatpush1.msra.mxu0 0.0
    %2880 = vmatprep.subr.mxu0 0.0
    %2881 = vmatpush1.msra.mxu0 0.0
    %2882 = vmatprep.subr.mxu0 0.0
    %2883 = vmatpush1.msra.mxu0 0.0
    %2884 = vmatprep.subr.mxu0 0.0
    %2885 = vmatpush1.msra.mxu0 0.0
    %2886 = vmatprep.subr.mxu0 0.0
    %2887 = vmatpush1.msra.mxu0 0.0
    %2888 = vmatprep.subr.mxu0 0.0
    %2889 = vmatpush1.msra.mxu0 0.0
    %2890 = vmatprep.subr.mxu0 0.0
    %2891 = vmatpush1.msra.mxu0 0.0
    %2892 = vmatprep.subr.mxu0 0.0
    %2893 = vmatpush1.msra.mxu0 0.0
    %2894 = vmatprep.subr.mxu0 0.0
    %2895 = vmatpush1.msra.mxu0 0.0
    %2896 = vmatprep.subr.mxu0 0.0
    %2897 = vmatpush1.msra.mxu0 0.0
    %2898 = vmatprep.subr.mxu0 0.0
    %2899 = vmatpush1.msra.mxu0 0.0
    %2900 = vmatprep.subr.mxu0 0.0
    %2901 = vmatpush1.msra.mxu0 0.0
    %2902 = vmatprep.subr.mxu0 0.0
    %2903 = vmatpush1.msra.mxu0 0.0
    %2904 = vmatprep.subr.mxu0 0.0
    %2905 = vmatpush1.msra.mxu0 0.0
    %2906 = vmatprep.mubr.f32.mxu0 0.0
    %2907 = vmatmul.mubr.f32.gmra.mrb[0].mxu0 %v2840
    %v2908 = vpop.f32.mrb[0].mxu0
    %v2909 = vadd.f32 0.0, %v2908
    %v2910 = vpop.f32.mrb[0].mxu0
    %2911 = vdwg.mxu0
    %2912 = vrot.lane.b32.xlu0 %v2061, 120
    %v2913 = vpop.permute.xlu0 %2912
    %2914 = vrot.lane.b32.xlu0 %v2061, 88
    %v2915 = vpop.permute.xlu0 %2914
    %v2916 = vsel %vm207, %v2913, 0
    %v2918 = vsel %vm207, %v2915, 0
    %2920 = vmatprep.subr.mxu0 0.0
    %2921 = vmatpush1.xpose.msra.mxu0 %v2918
    %2922 = vmatprep.subr.mxu0 0.0
    %2923 = vmatpush1.xpose.msra.mxu0 0.0
    %2924 = vmatprep.subr.mxu0 0.0
    %2925 = vmatpush1.xpose.msra.mxu0 0.0
    %2926 = vmatprep.subr.mxu0 0.0
    %2927 = vmatpush1.xpose.msra.mxu0 0.0
    %2928 = vmatprep.subr.mxu0 0.0
    %2929 = vmatpush1.xpose.msra.mxu0 0.0
    %2930 = vmatprep.subr.mxu0 0.0
    %2931 = vmatpush1.xpose.msra.mxu0 0.0
    %2932 = vmatprep.subr.mxu0 0.0
    %2933 = vmatpush1.xpose.msra.mxu0 0.0
    %2934 = vmatprep.subr.mxu0 0.0
    %2935 = vmatpush1.xpose.msra.mxu0 0.0
    %2936 = vmatprep.subr.mxu0 0.0
    %2937 = vmatpush1.xpose.msra.mxu0 0.0
    %2938 = vmatprep.subr.mxu0 0.0
    %2939 = vmatpush1.xpose.msra.mxu0 0.0
    %2940 = vmatprep.subr.mxu0 0.0
    %2941 = vmatpush1.xpose.msra.mxu0 0.0
    %2942 = vmatprep.subr.mxu0 0.0
    %2943 = vmatpush1.xpose.msra.mxu0 0.0
    %2944 = vmatprep.subr.mxu0 0.0
    %2945 = vmatpush1.xpose.msra.mxu0 0.0
    %2946 = vmatprep.subr.mxu0 0.0
    %2947 = vmatpush1.xpose.msra.mxu0 0.0
    %2948 = vmatprep.subr.mxu0 0.0
    %2949 = vmatpush1.xpose.msra.mxu0 0.0
    %2950 = vmatprep.subr.mxu0 0.0
    %2951 = vmatpush1.xpose.msra.mxu0 0.0
    %2952 = vmatprep.subr.mxu0 0.0
    %2953 = vmatpush1.xpose.msra.mxu0 0.0
    %2954 = vmatprep.subr.mxu0 0.0
    %2955 = vmatpush1.xpose.msra.mxu0 0.0
    %2956 = vmatprep.subr.mxu0 0.0
    %2957 = vmatpush1.xpose.msra.mxu0 0.0
    %2958 = vmatprep.subr.mxu0 0.0
    %2959 = vmatpush1.xpose.msra.mxu0 0.0
    %2960 = vmatprep.subr.mxu0 0.0
    %2961 = vmatpush1.xpose.msra.mxu0 0.0
    %2962 = vmatprep.subr.mxu0 0.0
    %2963 = vmatpush1.xpose.msra.mxu0 0.0
    %2964 = vmatprep.subr.mxu0 0.0
    %2965 = vmatpush1.xpose.msra.mxu0 0.0
    %2966 = vmatprep.subr.mxu0 0.0
    %2967 = vmatpush1.xpose.msra.mxu0 0.0
    %2968 = vmatprep.subr.mxu0 0.0
    %2969 = vmatpush1.xpose.msra.mxu0 0.0
    %2970 = vmatprep.subr.mxu0 0.0
    %2971 = vmatpush1.xpose.msra.mxu0 0.0
    %2972 = vmatprep.subr.mxu0 0.0
    %2973 = vmatpush1.xpose.msra.mxu0 0.0
    %2974 = vmatprep.subr.mxu0 0.0
    %2975 = vmatpush1.xpose.msra.mxu0 0.0
    %2976 = vmatprep.subr.mxu0 0.0
    %2977 = vmatpush1.xpose.msra.mxu0 0.0
    %2978 = vmatprep.subr.mxu0 0.0
    %2979 = vmatpush1.xpose.msra.mxu0 0.0
    %2980 = vmatprep.subr.mxu0 0.0
    %2981 = vmatpush1.xpose.msra.mxu0 0.0
    %2982 = vmatprep.subr.mxu0 0.0
    %2983 = vmatpush1.xpose.msra.mxu0 0.0
    %2984 = vmatprep.mubr.f32.mxu0 0.0
    %2985 = vmatmul.mubr.f32.gmra.mrb[0].mxu0 %v2916
    %v2986 = vpop.f32.mrb[0].mxu0
    %v2987 = vadd.f32 0.0, %v2986
    %v2988 = vpop.f32.mrb[0].mxu0
    %2989 = vdwg.mxu0
    %v2990 = vmul.f32 %v2987, 0.35355338
    %v2991 = vadd.f32 %v2990, %v974
    %v2992 = vsel %vm207, %v2991, -inf
    %2993 = vmax.xlane.f32.xlu0 %v2992
    %v2994 = vpop.xlane.xlu0 %2993
    %v2995 = vsub.f32 %v2991, %v2994
    %v2996 = vmul.f32 %v2995, 1.442695
    %v2997 = vpow.pop %v2996
    %v2998 = vsel %vm207, %v2997, 0.0
    %2999 = vadd.xlane.f32.xlu0 %v2998
    %v3000 = vpop.xlane.xlu0 %2999
    %v3001 = vrcp.pop %v3000
    %v3002 = vmul.f32 %v2997, %v3001
    %3003 = vrot.lane.b32.xlu0 %v2061, 56
    %v3004 = vpop.permute.xlu0 %3003
    %v3007 = vsel %vm207, %v3002, 0
    %3009 = vmatprep.subr.mxu0 0.0
    %3010 = vmatpush1.msra.mxu0 %v3004
    %3011 = vmatprep.subr.mxu0 0.0
    %3012 = vmatpush1.msra.mxu0 0.0
    %3013 = vmatprep.subr.mxu0 0.0
    %3014 = vmatpush1.msra.mxu0 0.0
    %3015 = vmatprep.subr.mxu0 0.0
    %3016 = vmatpush1.msra.mxu0 0.0
    %3017 = vmatprep.subr.mxu0 0.0
    %3018 = vmatpush1.msra.mxu0 0.0
    %3019 = vmatprep.subr.mxu0 0.0
    %3020 = vmatpush1.msra.mxu0 0.0
    %3021 = vmatprep.subr.mxu0 0.0
    %3022 = vmatpush1.msra.mxu0 0.0
    %3023 = vmatprep.subr.mxu0 0.0
    %3024 = vmatpush1.msra.mxu0 0.0
    %3025 = vmatprep.subr.mxu0 0.0
    %3026 = vmatpush1.msra.mxu0 0.0
    %3027 = vmatprep.subr.mxu0 0.0
    %3028 = vmatpush1.msra.mxu0 0.0
    %3029 = vmatprep.subr.mxu0 0.0
    %3030 = vmatpush1.msra.mxu0 0.0
    %3031 = vmatprep.subr.mxu0 0.0
    %3032 = vmatpush1.msra.mxu0 0.0
    %3033 = vmatprep.subr.mxu0 0.0
    %3034 = vmatpush1.msra.mxu0 0.0
    %3035 = vmatprep.subr.mxu0 0.0
    %3036 = vmatpush1.msra.mxu0 0.0
    %3037 = vmatprep.subr.mxu0 0.0
    %3038 = vmatpush1.msra.mxu0 0.0
    %3039 = vmatprep.subr.mxu0 0.0
    %3040 = vmatpush1.msra.mxu0 0.0
    %3041 = vmatprep.subr.mxu0 0.0
    %3042 = vmatpush1.msra.mxu0 0.0
    %3043 = vmatprep.subr.mxu0 0.0
    %3044 = vmatpush1.msra.mxu0 0.0
    %3045 = vmatprep.subr.mxu0 0.0
    %3046 = vmatpush1.msra.mxu0 0.0
    %3047 = vmatprep.subr.mxu0 0.0
    %3048 = vmatpush1.msra.mxu0 0.0
    %3049 = vmatprep.subr.mxu0 0.0
    %3050 = vmatpush1.msra.mxu0 0.0
    %3051 = vmatprep.subr.mxu0 0.0
    %3052 = vmatpush1.msra.mxu0 0.0
    %3053 = vmatprep.subr.mxu0 0.0
    %3054 = vmatpush1.msra.mxu0 0.0
    %3055 = vmatprep.subr.mxu0 0.0
    %3056 = vmatpush1.msra.mxu0 0.0
    %3057 = vmatprep.subr.mxu0 0.0
    %3058 = vmatpush1.msra.mxu0 0.0
    %3059 = vmatprep.subr.mxu0 0.0
    %3060 = vmatpush1.msra.mxu0 0.0
    %3061 = vmatprep.subr.mxu0 0.0
    %3062 = vmatpush1.msra.mxu0 0.0
    %3063 = vmatprep.subr.mxu0 0.0
    %3064 = vmatpush1.msra.mxu0 0.0
    %3065 = vmatprep.subr.mxu0 0.0
    %3066 = vmatpush1.msra.mxu0 0.0
    %3067 = vmatprep.subr.mxu0 0.0
    %3068 = vmatpush1.msra.mxu0 0.0
    %3069 = vmatprep.subr.mxu0 0.0
    %3070 = vmatpush1.msra.mxu0 0.0
    %3071 = vmatprep.subr.mxu0 0.0
    %3072 = vmatpush1.msra.mxu0 0.0
    %3073 = vmatprep.mubr.f32.mxu0 0.0
    %3074 = vmatmul.mubr.f32.gmra.mrb[0].mxu0 %v3007
    %v3075 = vpop.f32.mrb[0].mxu0
    %v3076 = vadd.f32 0.0, %v3075
    %v3077 = vpop.f32.mrb[0].mxu0
    %3078 = vdwg.mxu0
    %3079 = vrot.lane.b32.xlu0 %v2061, 112
    %v3080 = vpop.permute.xlu0 %3079
    %3081 = vrot.lane.b32.xlu0 %v2061, 80
    %v3082 = vpop.permute.xlu0 %3081
    %v3083 = vsel %vm207, %v3080, 0
    %v3085 = vsel %vm207, %v3082, 0
    %3087 = vmatprep.subr.mxu0 0.0
    %3088 = vmatpush1.xpose.msra.mxu0 %v3085
    %3089 = vmatprep.subr.mxu0 0.0
    %3090 = vmatpush1.xpose.msra.mxu0 0.0
    %3091 = vmatprep.subr.mxu0 0.0
    %3092 = vmatpush1.xpose.msra.mxu0 0.0
    %3093 = vmatprep.subr.mxu0 0.0
    %3094 = vmatpush1.xpose.msra.mxu0 0.0
    %3095 = vmatprep.subr.mxu0 0.0
    %3096 = vmatpush1.xpose.msra.mxu0 0.0
    %3097 = vmatprep.subr.mxu0 0.0
    %3098 = vmatpush1.xpose.msra.mxu0 0.0
    %3099 = vmatprep.subr.mxu0 0.0
    %3100 = vmatpush1.xpose.msra.mxu0 0.0
    %3101 = vmatprep.subr.mxu0 0.0
    %3102 = vmatpush1.xpose.msra.mxu0 0.0
    %3103 = vmatprep.subr.mxu0 0.0
    %3104 = vmatpush1.xpose.msra.mxu0 0.0
    %3105 = vmatprep.subr.mxu0 0.0
    %3106 = vmatpush1.xpose.msra.mxu0 0.0
    %3107 = vmatprep.subr.mxu0 0.0
    %3108 = vmatpush1.xpose.msra.mxu0 0.0
    %3109 = vmatprep.subr.mxu0 0.0
    %3110 = vmatpush1.xpose.msra.mxu0 0.0
    %3111 = vmatprep.subr.mxu0 0.0
    %3112 = vmatpush1.xpose.msra.mxu0 0.0
    %3113 = vmatprep.subr.mxu0 0.0
    %3114 = vmatpush1.xpose.msra.mxu0 0.0
    %3115 = vmatprep.subr.mxu0 0.0
    %3116 = vmatpush1.xpose.msra.mxu0 0.0
    %3117 = vmatprep.subr.mxu0 0.0
    %3118 = vmatpush1.xpose.msra.mxu0 0.0
    %3119 = vmatprep.subr.mxu0 0.0
    %3120 = vmatpush1.xpose.msra.mxu0 0.0
    %3121 = vmatprep.subr.mxu0 0.0
    %3122 = vmatpush1.xpose.msra.mxu0 0.0
    %3123 = vmatprep.subr.mxu0 0.0
    %3124 = vmatpush1.xpose.msra.mxu0 0.0
    %3125 = vmatprep.subr.mxu0 0.0
    %3126 = vmatpush1.xpose.msra.mxu0 0.0
    %3127 = vmatprep.subr.mxu0 0.0
    %3128 = vmatpush1.xpose.msra.mxu0 0.0
    %3129 = vmatprep.subr.mxu0 0.0
    %3130 = vmatpush1.xpose.msra.mxu0 0.0
    %3131 = vmatprep.subr.mxu0 0.0
    %3132 = vmatpush1.xpose.msra.mxu0 0.0
    %3133 = vmatprep.subr.mxu0 0.0
    %3134 = vmatpush1.xpose.msra.mxu0 0.0
    %3135 = vmatprep.subr.mxu0 0.0
    %3136 = vmatpush1.xpose.msra.mxu0 0.0
    %3137 = vmatprep.subr.mxu0 0.0
    %3138 = vmatpush1.xpose.msra.mxu0 0.0
    %3139 = vmatprep.subr.mxu0 0.0
    %3140 = vmatpush1.xpose.msra.mxu0 0.0
    %3141 = vmatprep.subr.mxu0 0.0
    %3142 = vmatpush1.xpose.msra.mxu0 0.0
    %3143 = vmatprep.subr.mxu0 0.0
    %3144 = vmatpush1.xpose.msra.mxu0 0.0
    %3145 = vmatprep.subr.mxu0 0.0
    %3146 = vmatpush1.xpose.msra.mxu0 0.0
    %3147 = vmatprep.subr.mxu0 0.0
    %3148 = vmatpush1.xpose.msra.mxu0 0.0
    %3149 = vmatprep.subr.mxu0 0.0
    %3150 = vmatpush1.xpose.msra.mxu0 0.0
    %3151 = vmatprep.mubr.f32.mxu0 0.0
    %3152 = vmatmul.mubr.f32.gmra.mrb[0].mxu0 %v3083
    %v3153 = vpop.f32.mrb[0].mxu0
    %v3154 = vadd.f32 0.0, %v3153
    %v3155 = vpop.f32.mrb[0].mxu0
    %3156 = vdwg.mxu0
    %v3157 = vmul.f32 %v3154, 0.35355338
    %v3158 = vadd.f32 %v3157, %v974
    %v3159 = vsel %vm207, %v3158, -inf
    %3160 = vmax.xlane.f32.xlu0 %v3159
    %v3161 = vpop.xlane.xlu0 %3160
    %v3162 = vsub.f32 %v3158, %v3161
    %v3163 = vmul.f32 %v3162, 1.442695
    %v3164 = vpow.pop %v3163
    %v3165 = vsel %vm207, %v3164, 0.0
    %3166 = vadd.xlane.f32.xlu0 %v3165
    %v3167 = vpop.xlane.xlu0 %3166
    %v3168 = vrcp.pop %v3167
    %v3169 = vmul.f32 %v3164, %v3168
    %3170 = vrot.lane.b32.xlu0 %v2061, 48
    %v3171 = vpop.permute.xlu0 %3170
    %v3174 = vsel %vm207, %v3169, 0
    %3176 = vmatprep.subr.mxu0 0.0
    %3177 = vmatpush1.msra.mxu0 %v3171
    %3178 = vmatprep.subr.mxu0 0.0
    %3179 = vmatpush1.msra.mxu0 0.0
    %3180 = vmatprep.subr.mxu0 0.0
    %3181 = vmatpush1.msra.mxu0 0.0
    %3182 = vmatprep.subr.mxu0 0.0
    %3183 = vmatpush1.msra.mxu0 0.0
    %3184 = vmatprep.subr.mxu0 0.0
    %3185 = vmatpush1.msra.mxu0 0.0
    %3186 = vmatprep.subr.mxu0 0.0
    %3187 = vmatpush1.msra.mxu0 0.0
    %3188 = vmatprep.subr.mxu0 0.0
    %3189 = vmatpush1.msra.mxu0 0.0
    %3190 = vmatprep.subr.mxu0 0.0
    %3191 = vmatpush1.msra.mxu0 0.0
    %3192 = vmatprep.subr.mxu0 0.0
    %3193 = vmatpush1.msra.mxu0 0.0
    %3194 = vmatprep.subr.mxu0 0.0
    %3195 = vmatpush1.msra.mxu0 0.0
    %3196 = vmatprep.subr.mxu0 0.0
    %3197 = vmatpush1.msra.mxu0 0.0
    %3198 = vmatprep.subr.mxu0 0.0
    %3199 = vmatpush1.msra.mxu0 0.0
    %3200 = vmatprep.subr.mxu0 0.0
    %3201 = vmatpush1.msra.mxu0 0.0
    %3202 = vmatprep.subr.mxu0 0.0
    %3203 = vmatpush1.msra.mxu0 0.0
    %3204 = vmatprep.subr.mxu0 0.0
    %3205 = vmatpush1.msra.mxu0 0.0
    %3206 = vmatprep.subr.mxu0 0.0
    %3207 = vmatpush1.msra.mxu0 0.0
    %3208 = vmatprep.subr.mxu0 0.0
    %3209 = vmatpush1.msra.mxu0 0.0
    %3210 = vmatprep.subr.mxu0 0.0
    %3211 = vmatpush1.msra.mxu0 0.0
    %3212 = vmatprep.subr.mxu0 0.0
    %3213 = vmatpush1.msra.mxu0 0.0
    %3214 = vmatprep.subr.mxu0 0.0
    %3215 = vmatpush1.msra.mxu0 0.0
    %3216 = vmatprep.subr.mxu0 0.0
    %3217 = vmatpush1.msra.mxu0 0.0
    %3218 = vmatprep.subr.mxu0 0.0
    %3219 = vmatpush1.msra.mxu0 0.0
    %3220 = vmatprep.subr.mxu0 0.0
    %3221 = vmatpush1.msra.mxu0 0.0
    %3222 = vmatprep.subr.mxu0 0.0
    %3223 = vmatpush1.msra.mxu0 0.0
    %3224 = vmatprep.subr.mxu0 0.0
    %3225 = vmatpush1.msra.mxu0 0.0
    %3226 = vmatprep.subr.mxu0 0.0
    %3227 = vmatpush1.msra.mxu0 0.0
    %3228 = vmatprep.subr.mxu0 0.0
    %3229 = vmatpush1.msra.mxu0 0.0
    %3230 = vmatprep.subr.mxu0 0.0
    %3231 = vmatpush1.msra.mxu0 0.0
    %3232 = vmatprep.subr.mxu0 0.0
    %3233 = vmatpush1.msra.mxu0 0.0
    %3234 = vmatprep.subr.mxu0 0.0
    %3235 = vmatpush1.msra.mxu0 0.0
    %3236 = vmatprep.subr.mxu0 0.0
    %3237 = vmatpush1.msra.mxu0 0.0
    %3238 = vmatprep.subr.mxu0 0.0
    %3239 = vmatpush1.msra.mxu0 0.0
    %3240 = vmatprep.mubr.f32.mxu0 0.0
    %3241 = vmatmul.mubr.f32.gmra.mrb[0].mxu0 %v3174
    %v3242 = vpop.f32.mrb[0].mxu0
    %v3243 = vadd.f32 0.0, %v3242
    %v3244 = vpop.f32.mrb[0].mxu0
    %3245 = vdwg.mxu0
    %3246 = vrot.lane.b32.xlu0 %v2061, 104
    %v3247 = vpop.permute.xlu0 %3246
    %3248 = vrot.lane.b32.xlu0 %v2061, 72
    %v3249 = vpop.permute.xlu0 %3248
    %v3250 = vsel %vm207, %v3247, 0
    %v3252 = vsel %vm207, %v3249, 0
    %3254 = vmatprep.subr.mxu0 0.0
    %3255 = vmatpush1.xpose.msra.mxu0 %v3252
    %3256 = vmatprep.subr.mxu0 0.0
    %3257 = vmatpush1.xpose.msra.mxu0 0.0
    %3258 = vmatprep.subr.mxu0 0.0
    %3259 = vmatpush1.xpose.msra.mxu0 0.0
    %3260 = vmatprep.subr.mxu0 0.0
    %3261 = vmatpush1.xpose.msra.mxu0 0.0
    %3262 = vmatprep.subr.mxu0 0.0
    %3263 = vmatpush1.xpose.msra.mxu0 0.0
    %3264 = vmatprep.subr.mxu0 0.0
    %3265 = vmatpush1.xpose.msra.mxu0 0.0
    %3266 = vmatprep.subr.mxu0 0.0
    %3267 = vmatpush1.xpose.msra.mxu0 0.0
    %3268 = vmatprep.subr.mxu0 0.0
    %3269 = vmatpush1.xpose.msra.mxu0 0.0
    %3270 = vmatprep.subr.mxu0 0.0
    %3271 = vmatpush1.xpose.msra.mxu0 0.0
    %3272 = vmatprep.subr.mxu0 0.0
    %3273 = vmatpush1.xpose.msra.mxu0 0.0
    %3274 = vmatprep.subr.mxu0 0.0
    %3275 = vmatpush1.xpose.msra.mxu0 0.0
    %3276 = vmatprep.subr.mxu0 0.0
    %3277 = vmatpush1.xpose.msra.mxu0 0.0
    %3278 = vmatprep.subr.mxu0 0.0
    %3279 = vmatpush1.xpose.msra.mxu0 0.0
    %3280 = vmatprep.subr.mxu0 0.0
    %3281 = vmatpush1.xpose.msra.mxu0 0.0
    %3282 = vmatprep.subr.mxu0 0.0
    %3283 = vmatpush1.xpose.msra.mxu0 0.0
    %3284 = vmatprep.subr.mxu0 0.0
    %3285 = vmatpush1.xpose.msra.mxu0 0.0
    %3286 = vmatprep.subr.mxu0 0.0
    %3287 = vmatpush1.xpose.msra.mxu0 0.0
    %3288 = vmatprep.subr.mxu0 0.0
    %3289 = vmatpush1.xpose.msra.mxu0 0.0
    %3290 = vmatprep.subr.mxu0 0.0
    %3291 = vmatpush1.xpose.msra.mxu0 0.0
    %3292 = vmatprep.subr.mxu0 0.0
    %3293 = vmatpush1.xpose.msra.mxu0 0.0
    %3294 = vmatprep.subr.mxu0 0.0
    %3295 = vmatpush1.xpose.msra.mxu0 0.0
    %3296 = vmatprep.subr.mxu0 0.0
    %3297 = vmatpush1.xpose.msra.mxu0 0.0
    %3298 = vmatprep.subr.mxu0 0.0
    %3299 = vmatpush1.xpose.msra.mxu0 0.0
    %3300 = vmatprep.subr.mxu0 0.0
    %3301 = vmatpush1.xpose.msra.mxu0 0.0
    %3302 = vmatprep.subr.mxu0 0.0
    %3303 = vmatpush1.xpose.msra.mxu0 0.0
    %3304 = vmatprep.subr.mxu0 0.0
    %3305 = vmatpush1.xpose.msra.mxu0 0.0
    %3306 = vmatprep.subr.mxu0 0.0
    %3307 = vmatpush1.xpose.msra.mxu0 0.0
    %3308 = vmatprep.subr.mxu0 0.0
    %3309 = vmatpush1.xpose.msra.mxu0 0.0
    %3310 = vmatprep.subr.mxu0 0.0
    %3311 = vmatpush1.xpose.msra.mxu0 0.0
    %3312 = vmatprep.subr.mxu0 0.0
    %3313 = vmatpush1.xpose.msra.mxu0 0.0
    %3314 = vmatprep.subr.mxu0 0.0
    %3315 = vmatpush1.xpose.msra.mxu0 0.0
    %3316 = vmatprep.subr.mxu0 0.0
    %3317 = vmatpush1.xpose.msra.mxu0 0.0
    %3318 = vmatprep.mubr.f32.mxu0 0.0
    %3319 = vmatmul.mubr.f32.gmra.mrb[0].mxu0 %v3250
    %v3320 = vpop.f32.mrb[0].mxu0
    %v3321 = vadd.f32 0.0, %v3320
    %v3322 = vpop.f32.mrb[0].mxu0
    %3323 = vdwg.mxu0
    %v3324 = vmul.f32 %v3321, 0.35355338
    %v3325 = vadd.f32 %v3324, %v974
    %v3326 = vsel %vm207, %v3325, -inf
    %3327 = vmax.xlane.f32.xlu0 %v3326
    %v3328 = vpop.xlane.xlu0 %3327
    %v3329 = vsub.f32 %v3325, %v3328
    %v3330 = vmul.f32 %v3329, 1.442695
    %v3331 = vpow.pop %v3330
    %v3332 = vsel %vm207, %v3331, 0.0
    %3333 = vadd.xlane.f32.xlu0 %v3332
    %v3334 = vpop.xlane.xlu0 %3333
    %v3335 = vrcp.pop %v3334
    %v3336 = vmul.f32 %v3331, %v3335
    %3337 = vrot.lane.b32.xlu0 %v2061, 40
    %v3338 = vpop.permute.xlu0 %3337
    %v3341 = vsel %vm207, %v3336, 0
    %3343 = vmatprep.subr.mxu0 0.0
    %3344 = vmatpush1.msra.mxu0 %v3338
    %3345 = vmatprep.subr.mxu0 0.0
    %3346 = vmatpush1.msra.mxu0 0.0
    %3347 = vmatprep.subr.mxu0 0.0
    %3348 = vmatpush1.msra.mxu0 0.0
    %3349 = vmatprep.subr.mxu0 0.0
    %3350 = vmatpush1.msra.mxu0 0.0
    %3351 = vmatprep.subr.mxu0 0.0
    %3352 = vmatpush1.msra.mxu0 0.0
    %3353 = vmatprep.subr.mxu0 0.0
    %3354 = vmatpush1.msra.mxu0 0.0
    %3355 = vmatprep.subr.mxu0 0.0
    %3356 = vmatpush1.msra.mxu0 0.0
    %3357 = vmatprep.subr.mxu0 0.0
    %3358 = vmatpush1.msra.mxu0 0.0
    %3359 = vmatprep.subr.mxu0 0.0
    %3360 = vmatpush1.msra.mxu0 0.0
    %3361 = vmatprep.subr.mxu0 0.0
    %3362 = vmatpush1.msra.mxu0 0.0
    %3363 = vmatprep.subr.mxu0 0.0
    %3364 = vmatpush1.msra.mxu0 0.0
    %3365 = vmatprep.subr.mxu0 0.0
    %3366 = vmatpush1.msra.mxu0 0.0
    %3367 = vmatprep.subr.mxu0 0.0
    %3368 = vmatpush1.msra.mxu0 0.0
    %3369 = vmatprep.subr.mxu0 0.0
    %3370 = vmatpush1.msra.mxu0 0.0
    %3371 = vmatprep.subr.mxu0 0.0
    %3372 = vmatpush1.msra.mxu0 0.0
    %3373 = vmatprep.subr.mxu0 0.0
    %3374 = vmatpush1.msra.mxu0 0.0
    %3375 = vmatprep.subr.mxu0 0.0
    %3376 = vmatpush1.msra.mxu0 0.0
    %3377 = vmatprep.subr.mxu0 0.0
    %3378 = vmatpush1.msra.mxu0 0.0
    %3379 = vmatprep.subr.mxu0 0.0
    %3380 = vmatpush1.msra.mxu0 0.0
    %3381 = vmatprep.subr.mxu0 0.0
    %3382 = vmatpush1.msra.mxu0 0.0
    %3383 = vmatprep.subr.mxu0 0.0
    %3384 = vmatpush1.msra.mxu0 0.0
    %3385 = vmatprep.subr.mxu0 0.0
    %3386 = vmatpush1.msra.mxu0 0.0
    %3387 = vmatprep.subr.mxu0 0.0
    %3388 = vmatpush1.msra.mxu0 0.0
    %3389 = vmatprep.subr.mxu0 0.0
    %3390 = vmatpush1.msra.mxu0 0.0
    %3391 = vmatprep.subr.mxu0 0.0
    %3392 = vmatpush1.msra.mxu0 0.0
    %3393 = vmatprep.subr.mxu0 0.0
    %3394 = vmatpush1.msra.mxu0 0.0
    %3395 = vmatprep.subr.mxu0 0.0
    %3396 = vmatpush1.msra.mxu0 0.0
    %3397 = vmatprep.subr.mxu0 0.0
    %3398 = vmatpush1.msra.mxu0 0.0
    %3399 = vmatprep.subr.mxu0 0.0
    %3400 = vmatpush1.msra.mxu0 0.0
    %3401 = vmatprep.subr.mxu0 0.0
    %3402 = vmatpush1.msra.mxu0 0.0
    %3403 = vmatprep.subr.mxu0 0.0
    %3404 = vmatpush1.msra.mxu0 0.0
    %3405 = vmatprep.subr.mxu0 0.0
    %3406 = vmatpush1.msra.mxu0 0.0
    %3407 = vmatprep.mubr.f32.mxu0 0.0
    %3408 = vmatmul.mubr.f32.gmra.mrb[0].mxu0 %v3341
    %v3409 = vpop.f32.mrb[0].mxu0
    %v3410 = vadd.f32 0.0, %v3409
    %v3411 = vpop.f32.mrb[0].mxu0
    %3412 = vdwg.mxu0
    %3414 = vrot.lane.b32.xlu0 %v3076, 8
    %v3415 = vpop.permute.xlu0 %3414
    %3418 = vrot.lane.b32.xlu0 %v3243, 16
    %v3419 = vpop.permute.xlu0 %3418
    %3422 = vrot.lane.b32.xlu0 %v3410, 24
    %v3423 = vpop.permute.xlu0 %3422
    %v3425 = vsel %vm207, %v2909, %v3415
    %v3426 = vsel %vm889, %v3425, %v3419
    %v3427 = vsel %vm891, %v3426, %v3423
    %s3428 = scalar_lea.vmem %s6, 32
    %v3429 = vld [vmem:[%s3428] sm:$0xff]
    %v3430 = vld [vmem:[%s3428 + $0x8] sm:$0xff]
    %v3431 = vld [vmem:[%s3428 + $0x10] sm:$0xff]
    %v3432 = vld [vmem:[%s3428 + $0x18] sm:$0xff]
    %s3433 = scalar_lea.vmem %s7, 1
    %v3434 = vld [vmem:[%s3433] sm:$0x1]
    %v3436 = vlaneseq
    %v3437 = vshrl.u32 %v3436, 7
    %v3438 = vsub.s32 0, %v3437
    %v3439 = vrot.slane %v3434, %v3438
    %v3442 = vsel %vm68, %v2745, 0
    %v3445 = vsel %vm68, %v3427, 0
    %3447 = vmatprep.subr.mxu0 0.0
    %3448 = vmatpush1.msra.mxu0 %v3429
    %3449 = vmatprep.subr.mxu0 0.0
    %3450 = vmatpush1.msra.mxu0 %v3430
    %3451 = vmatprep.subr.mxu0 0.0
    %3452 = vmatpush1.msra.mxu0 %v3431
    %3453 = vmatprep.subr.mxu0 0.0
    %3454 = vmatpush1.msra.mxu0 %v3432
    %3455 = vmatprep.subr.mxu0 0.0
    %3456 = vmatpush1.msra.mxu0 0.0
    %3457 = vmatprep.subr.mxu0 0.0
    %3458 = vmatpush1.msra.mxu0 0.0
    %3459 = vmatprep.subr.mxu0 0.0
    %3460 = vmatpush1.msra.mxu0 0.0
    %3461 = vmatprep.subr.mxu0 0.0
    %3462 = vmatpush1.msra.mxu0 0.0
    %3463 = vmatprep.subr.mxu0 0.0
    %3464 = vmatpush1.msra.mxu0 0.0
    %3465 = vmatprep.subr.mxu0 0.0
    %3466 = vmatpush1.msra.mxu0 0.0
    %3467 = vmatprep.subr.mxu0 0.0
    %3468 = vmatpush1.msra.mxu0 0.0
    %3469 = vmatprep.subr.mxu0 0.0
    %3470 = vmatpush1.msra.mxu0 0.0
    %3471 = vmatprep.subr.mxu0 0.0
    %3472 = vmatpush1.msra.mxu0 0.0
    %3473 = vmatprep.subr.mxu0 0.0
    %3474 = vmatpush1.msra.mxu0 0.0
    %3475 = vmatprep.subr.mxu0 0.0
    %3476 = vmatpush1.msra.mxu0 0.0
    %3477 = vmatprep.subr.mxu0 0.0
    %3478 = vmatpush1.msra.mxu0 0.0
    %3479 = vmatprep.subr.mxu0 0.0
    %3480 = vmatpush1.msra.mxu0 0.0
    %3481 = vmatprep.subr.mxu0 0.0
    %3482 = vmatpush1.msra.mxu0 0.0
    %3483 = vmatprep.subr.mxu0 0.0
    %3484 = vmatpush1.msra.mxu0 0.0
    %3485 = vmatprep.subr.mxu0 0.0
    %3486 = vmatpush1.msra.mxu0 0.0
    %3487 = vmatprep.subr.mxu0 0.0
    %3488 = vmatpush1.msra.mxu0 0.0
    %3489 = vmatprep.subr.mxu0 0.0
    %3490 = vmatpush1.msra.mxu0 0.0
    %3491 = vmatprep.subr.mxu0 0.0
    %3492 = vmatpush1.msra.mxu0 0.0
    %3493 = vmatprep.subr.mxu0 0.0
    %3494 = vmatpush1.msra.mxu0 0.0
    %3495 = vmatprep.subr.mxu0 0.0
    %3496 = vmatpush1.msra.mxu0 0.0
    %3497 = vmatprep.subr.mxu0 0.0
    %3498 = vmatpush1.msra.mxu0 0.0
    %3499 = vmatprep.subr.mxu0 0.0
    %3500 = vmatpush1.msra.mxu0 0.0
    %3501 = vmatprep.subr.mxu0 0.0
    %3502 = vmatpush1.msra.mxu0 0.0
    %3503 = vmatprep.subr.mxu0 0.0
    %3504 = vmatpush1.msra.mxu0 0.0
    %3505 = vmatprep.subr.mxu0 0.0
    %3506 = vmatpush1.msra.mxu0 0.0
    %3507 = vmatprep.subr.mxu0 0.0
    %3508 = vmatpush1.msra.mxu0 0.0
    %3509 = vmatprep.subr.mxu0 0.0
    %3510 = vmatpush1.msra.mxu0 0.0
    %3511 = vmatprep.mubr.f32.mxu0 0.0
    %3512 = vmatmul.mubr.f32.gmra.mrb[0].mxu0 %v3442
    %v3513 = vpop.f32.mrb[0].mxu0
    %v3514 = vadd.f32 %v3439, %v3513
    %v3515 = vpop.f32.mrb[0].mxu0
    %3516 = vmatprep.mubr.f32.mxu0 0.0
    %3517 = vmatmul.mubr.f32.gmra.mrb[0].mxu0 %v3445
    %v3518 = vpop.f32.mrb[0].mxu0
    %v3519 = vadd.f32 %v3439, %v3518
    %v3520 = vpop.f32.mrb[0].mxu0
    %3521 = vdwg.mxu0
    %v3522 = vadd.f32 %v3514, %v1968
    %v3523 = vadd.f32 %v3519, %v1969
    %s3524 = scalar_lea.vmem %s8, 1
    %v3525 = vld [vmem:[%s3524] sm:$0x1]
    %s3526 = scalar_lea.vmem %s9, 1
    %v3527 = vld [vmem:[%s3526] sm:$0x1]
    %v3528 = vsel %vm68, %v3522, 0.0
    %3529 = vadd.xlane.f32.xlu0 %v3528
    %v3530 = vpop.xlane.xlu0 %3529
    %v3531 = vsel %vm68, %v3523, 0.0
    %3532 = vadd.xlane.f32.xlu0 %v3531
    %v3533 = vpop.xlane.xlu0 %3532
    %v3534 = vmul.f32 %v3530, %v75
    %v3535 = vmul.f32 %v3533, %v75
    %v3536 = vsub.f32 %v3522, %v3534
    %v3537 = vsub.f32 %v3523, %v3535
    %v3538 = vmul.f32 %v3536, %v3536
    %v3539 = vmul.f32 %v3537, %v3537
    %v3540 = vsel %vm68, %v3538, 0.0
    %3541 = vadd.xlane.f32.xlu0 %v3540
    %v3542 = vpop.xlane.xlu0 %3541
    %v3543 = vsel %vm68, %v3539, 0.0
    %3544 = vadd.xlane.f32.xlu0 %v3543
    %v3545 = vpop.xlane.xlu0 %3544
    %v3546 = vmul.f32 %v3542, %v75
    %v3547 = vmul.f32 %v3545, %v75
    %v3548 = vadd.f32 %v3546, 1e-12
    %v3549 = vadd.f32 %v3547, 1e-12
    %v3550 = vrsqrt.pop %v3548
    %v3551 = vrsqrt.pop %v3549
    %v3552 = vmul.f32 %v3536, %v3550
    %v3553 = vmul.f32 %v3537, %v3551
    %v3555 = vlaneseq
    %v3556 = vshrl.u32 %v3555, 7
    %v3557 = vsub.s32 0, %v3556
    %v3558 = vrot.slane %v3525, %v3557
    %v3560 = vmul.f32 %v3552, %v3558
    %v3561 = vmul.f32 %v3553, %v3558
    %v3563 = vlaneseq
    %v3564 = vshrl.u32 %v3563, 7
    %v3565 = vsub.s32 0, %v3564
    %v3566 = vrot.slane %v3527, %v3565
    %v3568 = vadd.f32 %v3560, %v3566
    %v3569 = vadd.f32 %v3561, %v3566
    %s3570 = scalar_lea.vmem %s10, 32
    %v3571 = vld [vmem:[%s3570] sm:$0xff]
    %v3572 = vld [vmem:[%s3570 + $0x8] sm:$0xff]
    %v3573 = vld [vmem:[%s3570 + $0x10] sm:$0xff]
    %v3574 = vld [vmem:[%s3570 + $0x18] sm:$0xff]
    %s3575 = scalar_lea.vmem %s11, 1
    %v3576 = vld [vmem:[%s3575] sm:$0x1]
    %v3578 = vlaneseq
    %v3579 = vshrl.u32 %v3578, 7
    %v3580 = vsub.s32 0, %v3579
    %v3581 = vrot.slane %v3576, %v3580
    %v3584 = vsel %vm68, %v3568, 0
    %v3587 = vsel %vm68, %v3569, 0
    %3589 = vmatprep.subr.mxu0 0.0
    %3590 = vmatpush1.msra.mxu0 %v3571
    %3591 = vmatprep.subr.mxu0 0.0
    %3592 = vmatpush1.msra.mxu0 %v3572
    %3593 = vmatprep.subr.mxu0 0.0
    %3594 = vmatpush1.msra.mxu0 %v3573
    %3595 = vmatprep.subr.mxu0 0.0
    %3596 = vmatpush1.msra.mxu0 %v3574
    %3597 = vmatprep.subr.mxu0 0.0
    %3598 = vmatpush1.msra.mxu0 0.0
    %3599 = vmatprep.subr.mxu0 0.0
    %3600 = vmatpush1.msra.mxu0 0.0
    %3601 = vmatprep.subr.mxu0 0.0
    %3602 = vmatpush1.msra.mxu0 0.0
    %3603 = vmatprep.subr.mxu0 0.0
    %3604 = vmatpush1.msra.mxu0 0.0
    %3605 = vmatprep.subr.mxu0 0.0
    %3606 = vmatpush1.msra.mxu0 0.0
    %3607 = vmatprep.subr.mxu0 0.0
    %3608 = vmatpush1.msra.mxu0 0.0
    %3609 = vmatprep.subr.mxu0 0.0
    %3610 = vmatpush1.msra.mxu0 0.0
    %3611 = vmatprep.subr.mxu0 0.0
    %3612 = vmatpush1.msra.mxu0 0.0
    %3613 = vmatprep.subr.mxu0 0.0
    %3614 = vmatpush1.msra.mxu0 0.0
    %3615 = vmatprep.subr.mxu0 0.0
    %3616 = vmatpush1.msra.mxu0 0.0
    %3617 = vmatprep.subr.mxu0 0.0
    %3618 = vmatpush1.msra.mxu0 0.0
    %3619 = vmatprep.subr.mxu0 0.0
    %3620 = vmatpush1.msra.mxu0 0.0
    %3621 = vmatprep.subr.mxu0 0.0
    %3622 = vmatpush1.msra.mxu0 0.0
    %3623 = vmatprep.subr.mxu0 0.0
    %3624 = vmatpush1.msra.mxu0 0.0
    %3625 = vmatprep.subr.mxu0 0.0
    %3626 = vmatpush1.msra.mxu0 0.0
    %3627 = vmatprep.subr.mxu0 0.0
    %3628 = vmatpush1.msra.mxu0 0.0
    %3629 = vmatprep.subr.mxu0 0.0
    %3630 = vmatpush1.msra.mxu0 0.0
    %3631 = vmatprep.subr.mxu0 0.0
    %3632 = vmatpush1.msra.mxu0 0.0
    %3633 = vmatprep.subr.mxu0 0.0
    %3634 = vmatpush1.msra.mxu0 0.0
    %3635 = vmatprep.subr.mxu0 0.0
    %3636 = vmatpush1.msra.mxu0 0.0
    %3637 = vmatprep.subr.mxu0 0.0
    %3638 = vmatpush1.msra.mxu0 0.0
    %3639 = vmatprep.subr.mxu0 0.0
    %3640 = vmatpush1.msra.mxu0 0.0
    %3641 = vmatprep.subr.mxu0 0.0
    %3642 = vmatpush1.msra.mxu0 0.0
    %3643 = vmatprep.subr.mxu0 0.0
    %3644 = vmatpush1.msra.mxu0 0.0
    %3645 = vmatprep.subr.mxu0 0.0
    %3646 = vmatpush1.msra.mxu0 0.0
    %3647 = vmatprep.subr.mxu0 0.0
    %3648 = vmatpush1.msra.mxu0 0.0
    %3649 = vmatprep.subr.mxu0 0.0
    %3650 = vmatpush1.msra.mxu0 0.0
    %3651 = vmatprep.subr.mxu0 0.0
    %3652 = vmatpush1.msra.mxu0 0.0
    %3653 = vmatprep.mubr.f32.mxu0 0.0
    %3654 = vmatmul.mubr.f32.gmra.mrb[0].mxu0 %v3584
    %v3655 = vpop.f32.mrb[0].mxu0
    %v3656 = vadd.f32 %v3581, %v3655
    %v3657 = vpop.f32.mrb[0].mxu0
    %3658 = vmatprep.mubr.f32.mxu0 0.0
    %3659 = vmatmul.mubr.f32.gmra.mrb[0].mxu0 %v3587
    %v3660 = vpop.f32.mrb[0].mxu0
    %v3661 = vadd.f32 %v3581, %v3660
    %v3662 = vpop.f32.mrb[0].mxu0
    %3663 = vdwg.mxu0
    %v3664 = vmul.f32 %v3656, 0.5
    %v3665 = vmul.f32 %v3661, 0.5
    %v3666 = vmul.f32 %v3656, 0.044715
    %v3667 = vmul.f32 %v3661, 0.044715
    %v3668 = vmul.f32 %v3666, %v3656
    %v3669 = vmul.f32 %v3667, %v3661
    %v3670 = vmul.f32 %v3668, %v3656
    %v3671 = vmul.f32 %v3669, %v3661
    %v3672 = vadd.f32 %v3656, %v3670
    %v3673 = vadd.f32 %v3661, %v3671
    %v3674 = vmul.f32 %v3672, 0.7978846
    %v3675 = vmul.f32 %v3673, 0.7978846
    %v3676 = vtanh.pop %v3674
    %v3677 = vtanh.pop %v3675
    %v3678 = vadd.f32 %v3676, 1.0
    %v3679 = vadd.f32 %v3677, 1.0
    %v3680 = vmul.f32 %v3664, %v3678
    %v3681 = vmul.f32 %v3665, %v3679
    %s3682 = scalar_lea.vmem %s12, 64
    %v3683 = vld [vmem:[%s3682] sm:$0xff]
    %v3684 = vld [vmem:[%s3682 + $0x8] sm:$0xff]
    %v3685 = vld [vmem:[%s3682 + $0x10] sm:$0xff]
    %v3686 = vld [vmem:[%s3682 + $0x18] sm:$0xff]
    %v3687 = vld [vmem:[%s3682 + $0x20] sm:$0xff]
    %v3688 = vld [vmem:[%s3682 + $0x28] sm:$0xff]
    %v3689 = vld [vmem:[%s3682 + $0x30] sm:$0xff]
    %v3690 = vld [vmem:[%s3682 + $0x38] sm:$0xff]
    %s3691 = scalar_lea.vmem %s13, 1
    %v3692 = vld [vmem:[%s3691] sm:$0x1]
    %v3694 = vlaneseq
    %v3695 = vshrl.u32 %v3694, 7
    %v3696 = vsub.s32 0, %v3695
    %v3697 = vrot.slane %v3692, %v3696
    %v3700 = vsel %vm1842, %v3680, 0
    %v3703 = vsel %vm1842, %v3681, 0
    %3705 = vmatprep.subr.mxu0 0.0
    %3706 = vmatpush1.msra.mxu0 %v3683
    %3707 = vmatprep.subr.mxu0 0.0
    %3708 = vmatpush1.msra.mxu0 %v3684
    %3709 = vmatprep.subr.mxu0 0.0
    %3710 = vmatpush1.msra.mxu0 %v3685
    %3711 = vmatprep.subr.mxu0 0.0
    %3712 = vmatpush1.msra.mxu0 %v3686
    %3713 = vmatprep.subr.mxu0 0.0
    %3714 = vmatpush1.msra.mxu0 %v3687
    %3715 = vmatprep.subr.mxu0 0.0
    %3716 = vmatpush1.msra.mxu0 %v3688
    %3717 = vmatprep.subr.mxu0 0.0
    %3718 = vmatpush1.msra.mxu0 %v3689
    %3719 = vmatprep.subr.mxu0 0.0
    %3720 = vmatpush1.msra.mxu0 %v3690
    %3721 = vmatprep.subr.mxu0 0.0
    %3722 = vmatpush1.msra.mxu0 0.0
    %3723 = vmatprep.subr.mxu0 0.0
    %3724 = vmatpush1.msra.mxu0 0.0
    %3725 = vmatprep.subr.mxu0 0.0
    %3726 = vmatpush1.msra.mxu0 0.0
    %3727 = vmatprep.subr.mxu0 0.0
    %3728 = vmatpush1.msra.mxu0 0.0
    %3729 = vmatprep.subr.mxu0 0.0
    %3730 = vmatpush1.msra.mxu0 0.0
    %3731 = vmatprep.subr.mxu0 0.0
    %3732 = vmatpush1.msra.mxu0 0.0
    %3733 = vmatprep.subr.mxu0 0.0
    %3734 = vmatpush1.msra.mxu0 0.0
    %3735 = vmatprep.subr.mxu0 0.0
    %3736 = vmatpush1.msra.mxu0 0.0
    %3737 = vmatprep.subr.mxu0 0.0
    %3738 = vmatpush1.msra.mxu0 0.0
    %3739 = vmatprep.subr.mxu0 0.0
    %3740 = vmatpush1.msra.mxu0 0.0
    %3741 = vmatprep.subr.mxu0 0.0
    %3742 = vmatpush1.msra.mxu0 0.0
    %3743 = vmatprep.subr.mxu0 0.0
    %3744 = vmatpush1.msra.mxu0 0.0
    %3745 = vmatprep.subr.mxu0 0.0
    %3746 = vmatpush1.msra.mxu0 0.0
    %3747 = vmatprep.subr.mxu0 0.0
    %3748 = vmatpush1.msra.mxu0 0.0
    %3749 = vmatprep.subr.mxu0 0.0
    %3750 = vmatpush1.msra.mxu0 0.0
    %3751 = vmatprep.subr.mxu0 0.0
    %3752 = vmatpush1.msra.mxu0 0.0
    %3753 = vmatprep.subr.mxu0 0.0
    %3754 = vmatpush1.msra.mxu0 0.0
    %3755 = vmatprep.subr.mxu0 0.0
    %3756 = vmatpush1.msra.mxu0 0.0
    %3757 = vmatprep.subr.mxu0 0.0
    %3758 = vmatpush1.msra.mxu0 0.0
    %3759 = vmatprep.subr.mxu0 0.0
    %3760 = vmatpush1.msra.mxu0 0.0
    %3761 = vmatprep.subr.mxu0 0.0
    %3762 = vmatpush1.msra.mxu0 0.0
    %3763 = vmatprep.subr.mxu0 0.0
    %3764 = vmatpush1.msra.mxu0 0.0
    %3765 = vmatprep.subr.mxu0 0.0
    %3766 = vmatpush1.msra.mxu0 0.0
    %3767 = vmatprep.subr.mxu0 0.0
    %3768 = vmatpush1.msra.mxu0 0.0
    %3769 = vmatprep.mubr.f32.mxu0 0.0
    %3770 = vmatmul.mubr.f32.gmra.mrb[0].mxu0 %v3700
    %v3771 = vpop.f32.mrb[0].mxu0
    %v3772 = vadd.f32 %v3697, %v3771
    %v3773 = vpop.f32.mrb[0].mxu0
    %3774 = vmatprep.mubr.f32.mxu0 0.0
    %3775 = vmatmul.mubr.f32.gmra.mrb[0].mxu0 %v3703
    %v3776 = vpop.f32.mrb[0].mxu0
    %v3777 = vadd.f32 %v3697, %v3776
    %v3778 = vpop.f32.mrb[0].mxu0
    %3779 = vdwg.mxu0
    %v3780 = vadd.f32 %v3772, %v3568
    %v3781 = vadd.f32 %v3777, %v3569
    %s3782 = scalar_lea.vmem %s14, 1
    %v3783 = vld [vmem:[%s3782] sm:$0x1]
    %s3784 = scalar_lea.vmem %s15, 1
    %v3785 = vld [vmem:[%s3784] sm:$0x1]
    %v3786 = vsel %vm68, %v3780, 0.0
    %3787 = vadd.xlane.f32.xlu0 %v3786
    %v3788 = vpop.xlane.xlu0 %3787
    %v3789 = vsel %vm68, %v3781, 0.0
    %3790 = vadd.xlane.f32.xlu0 %v3789
    %v3791 = vpop.xlane.xlu0 %3790
    %v3792 = vmul.f32 %v3788, %v75
    %v3793 = vmul.f32 %v3791, %v75
    %v3794 = vsub.f32 %v3780, %v3792
    %v3795 = vsub.f32 %v3781, %v3793
    %v3796 = vmul.f32 %v3794, %v3794
    %v3797 = vmul.f32 %v3795, %v3795
    %v3798 = vsel %vm68, %v3796, 0.0
    %3799 = vadd.xlane.f32.xlu0 %v3798
    %v3800 = vpop.xlane.xlu0 %3799
    %v3801 = vsel %vm68, %v3797, 0.0
    %3802 = vadd.xlane.f32.xlu0 %v3801
    %v3803 = vpop.xlane.xlu0 %3802
    %v3804 = vmul.f32 %v3800, %v75
    %v3805 = vmul.f32 %v3803, %v75
    %v3806 = vadd.f32 %v3804, 1e-12
    %v3807 = vadd.f32 %v3805, 1e-12
    %v3808 = vrsqrt.pop %v3806
    %v3809 = vrsqrt.pop %v3807
    %v3810 = vmul.f32 %v3794, %v3808
    %v3811 = vmul.f32 %v3795, %v3809
    %v3813 = vlaneseq
    %v3814 = vshrl.u32 %v3813, 7
    %v3815 = vsub.s32 0, %v3814
    %v3816 = vrot.slane %v3783, %v3815
    %v3818 = vmul.f32 %v3810, %v3816
    %v3819 = vmul.f32 %v3811, %v3816
    %v3821 = vlaneseq
    %v3822 = vshrl.u32 %v3821, 7
    %v3823 = vsub.s32 0, %v3822
    %v3824 = vrot.slane %v3785, %v3823
    %v3826 = vadd.f32 %v3818, %v3824
    %v3827 = vadd.f32 %v3819, %v3824
    %v3829 = vrot.slane %v3827, 7
    %vm3831 = vcmask 1040384
    %v3832 = vsel %vm3831, %v3826, %v3829
    %v3833 = vld [vmem:[%s16] sm:$0xff]
    %v3834 = vld [vmem:[%s16 + $0x8] sm:$0xff]
    %v3835 = vld [vmem:[%s16 + $0x10] sm:$0xff]
    %v3836 = vld [vmem:[%s16 + $0x18] sm:$0xff]
    %v3837 = vld [vmem:[%s17] sm:$0x1]
    %v3839 = vlaneseq
    %v3840 = vshrl.u32 %v3839, 7
    %v3841 = vsub.s32 0, %v3840
    %v3842 = vrot.slane %v3837, %v3841
    %v3845 = vsel %vm68, %v3832, 0
    %3847 = vmatprep.subr.mxu0 0.0
    %3848 = vmatpush1.msra.mxu0 %v3833
    %3849 = vmatprep.subr.mxu0 0.0
    %3850 = vmatpush1.msra.mxu0 %v3834
    %3851 = vmatprep.subr.mxu0 0.0
    %3852 = vmatpush1.msra.mxu0 %v3835
    %3853 = vmatprep.subr.mxu0 0.0
    %3854 = vmatpush1.msra.mxu0 %v3836
    %3855 = vmatprep.subr.mxu0 0.0
    %3856 = vmatpush1.msra.mxu0 0.0
    %3857 = vmatprep.subr.mxu0 0.0
    %3858 = vmatpush1.msra.mxu0 0.0
    %3859 = vmatprep.subr.mxu0 0.0
    %3860 = vmatpush1.msra.mxu0 0.0
    %3861 = vmatprep.subr.mxu0 0.0
    %3862 = vmatpush1.msra.mxu0 0.0
    %3863 = vmatprep.subr.mxu0 0.0
    %3864 = vmatpush1.msra.mxu0 0.0
    %3865 = vmatprep.subr.mxu0 0.0
    %3866 = vmatpush1.msra.mxu0 0.0
    %3867 = vmatprep.subr.mxu0 0.0
    %3868 = vmatpush1.msra.mxu0 0.0
    %3869 = vmatprep.subr.mxu0 0.0
    %3870 = vmatpush1.msra.mxu0 0.0
    %3871 = vmatprep.subr.mxu0 0.0
    %3872 = vmatpush1.msra.mxu0 0.0
    %3873 = vmatprep.subr.mxu0 0.0
    %3874 = vmatpush1.msra.mxu0 0.0
    %3875 = vmatprep.subr.mxu0 0.0
    %3876 = vmatpush1.msra.mxu0 0.0
    %3877 = vmatprep.subr.mxu0 0.0
    %3878 = vmatpush1.msra.mxu0 0.0
    %3879 = vmatprep.subr.mxu0 0.0
    %3880 = vmatpush1.msra.mxu0 0.0
    %3881 = vmatprep.subr.mxu0 0.0
    %3882 = vmatpush1.msra.mxu0 0.0
    %3883 = vmatprep.subr.mxu0 0.0
    %3884 = vmatpush1.msra.mxu0 0.0
    %3885 = vmatprep.subr.mxu0 0.0
    %3886 = vmatpush1.msra.mxu0 0.0
    %3887 = vmatprep.subr.mxu0 0.0
    %3888 = vmatpush1.msra.mxu0 0.0
    %3889 = vmatprep.subr.mxu0 0.0
    %3890 = vmatpush1.msra.mxu0 0.0
    %3891 = vmatprep.subr.mxu0 0.0
    %3892 = vmatpush1.msra.mxu0 0.0
    %3893 = vmatprep.subr.mxu0 0.0
    %3894 = vmatpush1.msra.mxu0 0.0
    %3895 = vmatprep.subr.mxu0 0.0
    %3896 = vmatpush1.msra.mxu0 0.0
    %3897 = vmatprep.subr.mxu0 0.0
    %3898 = vmatpush1.msra.mxu0 0.0
    %3899 = vmatprep.subr.mxu0 0.0
    %3900 = vmatpush1.msra.mxu0 0.0
    %3901 = vmatprep.subr.mxu0 0.0
    %3902 = vmatpush1.msra.mxu0 0.0
    %3903 = vmatprep.subr.mxu0 0.0
    %3904 = vmatpush1.msra.mxu0 0.0
    %3905 = vmatprep.subr.mxu0 0.0
    %3906 = vmatpush1.msra.mxu0 0.0
    %3907 = vmatprep.subr.mxu0 0.0
    %3908 = vmatpush1.msra.mxu0 0.0
    %3909 = vmatprep.subr.mxu0 0.0
    %3910 = vmatpush1.msra.mxu0 0.0
    %3911 = vmatprep.mubr.f32.mxu0 0.0
    %3912 = vmatmul.mubr.f32.gmra.mrb[0].mxu0 %v3845
    %v3913 = vpop.f32.mrb[0].mxu0
    %v3914 = vadd.f32 %v3842, %v3913
    %v3915 = vpop.f32.mrb[0].mxu0
    %3916 = vdwg.mxu0
    %vm3917 = vcmask 1041408
    %v3918 = vsel %vm3917, %v3914, -inf
    %3919 = vmax.xlane.f32.xlu0 %v3918
    %v3920 = vpop.xlane.xlu0 %3919
    %v3921 = vsub.f32 %v3914, %v3920
    %v3922 = vmul.f32 %v3921, 1.442695
    %v3923 = vpow.pop %v3922
    %v3924 = vsel %vm3917, %v3923, 0.0
    %3925 = vadd.xlane.f32.xlu0 %v3924
    %v3926 = vpop.xlane.xlu0 %3925
    %v3927 = vrcp.pop %v3926
    %v3928 = vmul.f32 %v3923, %v3927
    %3929 = vst [vmem:[#allocation2] sm:$0x3] %v3928
    // Predicated region
    $region74: #{substrate_classifier_forward.1} parent=1 // pred_check
      _
    $region75: #{substrate_classifier_forward.1} parent=1 // pred_check_branch
      %3931 = sbr.rel (0) target = $region77
    $region76: #{substrate_classifier_forward.1} parent=1 // pred_region
      %s3933 = ssub.s32 32, 32
      %3934 = vsyncadd [#allocation3], %s3933
      %s3936 = sshll.u32 [#allocation2], 4
      %s3937 = int_to_ptr.vmem [resolvable:$true] %s3936
      %3939 = dma.vmem_to_hbm [thread:$0]  %s3937, 32, %s18, [#allocation3]
    $region77: #{substrate_classifier_forward.1} parent=1 // pred_fallthru
      _
    // Predicated region
    $region78: #{substrate_classifier_forward.1} parent=1 // pred_check
      _
    $region79: #{substrate_classifier_forward.1} parent=1 // pred_check_branch
      %3941 = sbr.rel (0) target = $region81
    $region80: #{substrate_classifier_forward.1} parent=1 // pred_region
      %3942 = dma.done [#allocation3], 32
    $region81: #{substrate_classifier_forward.1} parent=1 // pred_fallthru
      _
    %3943 = vsyncpa [#allocation3], 1

</llo_original>
